<compile_context>
chip_gen: v6e
topology: v6e:2x2x1
jax: 0.10.0
libtpu: 0.0.40
codegen_flags: <defaults>
</compile_context>

<pallas_src>
import math
import functools

import jax
import jax.numpy as jnp
from jax.experimental import pallas as pl
from jax.experimental.pallas import tpu as pltpu


def _mha_kernel(
    q_ref, k_ref, v_ref,
    wq_ref, bq_ref, wk_ref, bk_ref, wv_ref, bv_ref,
    wo_ref, bo_ref,
    o_ref,
    *, num_heads, compute_dtype,
):
    bt, S, D = q_ref.shape          # batch tile, tokens, model dim
    H = num_heads
    dk = D // H
    T = bt * H                      # folded (batch, head) einsum-batch axis
    inv_sqrt_dk = 1.0 / math.sqrt(dk)

    def over_heads(x):
        # (bt, S, D) -> (T, S, D): replicate each batch row for every head.
        # Only leading (untiled) dims are touched -> no lane/sublane relayout.
        return jnp.broadcast_to(x[:, None], (bt, H) + x.shape[1:]).reshape(
            (T,) + x.shape[1:])

    def over_batch(w):
        # (H, ...) -> (T, ...): replicate per-head params for every batch row.
        return jnp.broadcast_to(w[None], (bt,) + w.shape).reshape((T,) + w.shape[1:])

    q_in = over_heads(q_ref[...]).astype(compute_dtype)
    k_in = over_heads(k_ref[...]).astype(compute_dtype)
    v_in = over_heads(v_ref[...]).astype(compute_dtype)

    wq = over_batch(wq_ref[...].astype(compute_dtype))   # (T, D, dk)
    wk = over_batch(wk_ref[...].astype(compute_dtype))
    wv = over_batch(wv_ref[...].astype(compute_dtype))
    wo = over_batch(wo_ref[...].astype(compute_dtype))   # (T, dk, D)
    bq = over_batch(bq_ref[...])                         # (T, 1, dk), f32
    bk = over_batch(bk_ref[...])
    bv = over_batch(bv_ref[...])

    # ---- Q/K/V projections: single batched einsum over t = (batch, head) ----
    qh = jnp.einsum("tsd,tdk->tsk", q_in, wq,
                    preferred_element_type=jnp.float32) + bq      # (T, S, dk)
    kh = jnp.einsum("tsd,tdk->tsk", k_in, wk,
                    preferred_element_type=jnp.float32) + bk
    vh = jnp.einsum("tsd,tdk->tsk", v_in, wv,
                    preferred_element_type=jnp.float32) + bv

    # ---- scaled dot-product attention, all (batch, head) pairs batched ------
    scores = jnp.einsum("tqd,tkd->tqk",
                        qh.astype(compute_dtype), kh.astype(compute_dtype),
                        preferred_element_type=jnp.float32) * inv_sqrt_dk
    scores = scores - jnp.max(scores, axis=-1, keepdims=True)
    p = jnp.exp(scores)
    denom = jnp.sum(p, axis=-1, keepdims=True)
    p = p * pl.reciprocal(denom, approx=True)   # EUP slot instead of a divide

    ctx = jnp.einsum("tqk,tkd->tqd",
                     p.astype(compute_dtype), vh.astype(compute_dtype),
                     preferred_element_type=jnp.float32)          # (T, S, dk)

    # ---- output projection: per-head partials, reduce over heads ------------
    out_p = jnp.einsum("tsk,tkd->tsd", ctx.astype(compute_dtype), wo,
                       preferred_element_type=jnp.float32)        # (T, S, D)
    out = out_p.reshape(bt, H, S, D).sum(axis=1) + bo_ref[...]    # (bt, S, D)
    o_ref[...] = out.astype(o_ref.dtype)


def multihead_attention(q, k, v, params, num_heads, *, batch_tile=None,
                        compute_dtype=jnp.float32):
    """q, k, v: (B, S, D). params = (wq, bq, wk, bk, wv, bv, wo, bo); weights are
    stored (in, out) so the kernel computes x @ W + b (== PyTorch x @ W.T + b)."""
    wq, bq, wk, bk, wv, bv, wo, bo = params
    B, S, D = q.shape
    H = num_heads
    dk = D // H
    if batch_tile is None:
        batch_tile = B          # single grid step at small batch sizes
    assert B % batch_tile == 0

    # Wrapper-side layout plumbing: split the head axis out of the weights so the
    # kernel never has to split the lane dimension.
    def split_heads_w(w):       # (D, D) -> (H, D, dk)
        return w.reshape(D, H, dk).transpose(1, 0, 2)

    def split_heads_b(b):       # (D,)   -> (H, 1, dk)
        return b.reshape(H, 1, dk)

    wq_h, wk_h, wv_h = (split_heads_w(w) for w in (wq, wk, wv))
    bq_h, bk_h, bv_h = (split_heads_b(b) for b in (bq, bk, bv))
    wo_h = wo.reshape(H, dk, D)     # (H, dk, D): per-head rows of the out proj
    bo_2d = bo.reshape(1, D)

    plist = (wq_h, bq_h, wk_h, bk_h, wv_h, bv_h, wo_h, bo_2d)

    kernel = functools.partial(_mha_kernel, num_heads=H,
                               compute_dtype=compute_dtype)

    def param_spec(a):
        return pl.BlockSpec(a.shape, lambda i: (0,) * a.ndim)

    x_spec = pl.BlockSpec((batch_tile, S, D), lambda i: (i, 0, 0))

    return pl.pallas_call(
        kernel,
        out_shape=jax.ShapeDtypeStruct((B, S, D), q.dtype),
        grid=(B // batch_tile,),
        in_specs=[x_spec, x_spec, x_spec] + [param_spec(p) for p in plist],
        out_specs=pl.BlockSpec((batch_tile, S, D), lambda i: (i, 0, 0)),
        compiler_params=pltpu.CompilerParams(
            dimension_semantics=("parallel",)),
    )(q, k, v, *plist)


# ----------------------------- pure-JAX reference ----------------------------
def ref_multihead_attention(q, k, v, params, num_heads):
    wq, bq, wk, bk, wv, bv, wo, bo = params
    B, S, D = q.shape
    dk = D // num_heads

    def split(x):
        return x.reshape(B, S, num_heads, dk).transpose(0, 2, 1, 3)

    qp = split(q @ wq + bq)
    kp = split(k @ wk + bk)
    vp = split(v @ wv + bv)
    scores = jnp.einsum("bhqd,bhkd->bhqk", qp, kp) / math.sqrt(dk)
    p = jax.nn.softmax(scores, axis=-1)
    ctx = jnp.einsum("bhqk,bhkd->bhqd", p, vp)
    ctx = ctx.transpose(0, 2, 1, 3).reshape(B, S, D)
    return ctx @ wo + bo


# ----------------------------------- main -------------------------------------
if __name__ == "__main__":
    B, S, D, H = 2, 8, 32, 4        # batch, seq tokens, d_model, heads

    key = jax.random.PRNGKey(0)
    ks = jax.random.split(key, 9)

    def linear(kw, kb, fan_in, fan_out):
        bound = 1.0 / math.sqrt(fan_in)
        w = jax.random.uniform(kw, (fan_in, fan_out), jnp.float32, -bound, bound)
        b = jax.random.uniform(kb, (fan_out,), jnp.float32, -bound, bound)
        return w, b

    wq, bq = linear(ks[0], ks[1], D, D)
    wk, bk = linear(ks[2], ks[3], D, D)
    wv, bv = linear(ks[4], ks[5], D, D)
    wo, bo = linear(ks[6], ks[7], D, D)
    params = (wq, bq, wk, bk, wv, bv, wo, bo)

    x = jax.random.normal(ks[8], (B, S, D), jnp.float32)

    out = multihead_attention(x, x, x, params, num_heads=H)
    out = jax.block_until_ready(out)

    ref = ref_multihead_attention(x, x, x, params, H)
    assert out.shape == (B, S, D)
    # approx reciprocal in the softmax denominator -> allow ~1e-3-level error
    err = float(jnp.max(jnp.abs(out - ref)))
    assert jnp.allclose(out, ref, atol=5e-3, rtol=5e-3), f"max abs err {err}"

    print("KERNEL_OK")
</pallas_src>

<mosaic_0001>
module attributes {stable_mosaic.version = 11 : i64} {
  func.func @_mha_kernel(%arg0: i32, %arg1: memref<2x8x32xf32, #tpu.memory_space<vmem>>, %arg2: memref<2x8x32xf32, #tpu.memory_space<vmem>>, %arg3: memref<2x8x32xf32, #tpu.memory_space<vmem>>, %arg4: memref<4x32x8xf32, #tpu.memory_space<vmem>>, %arg5: memref<4x1x8xf32, #tpu.memory_space<vmem>>, %arg6: memref<4x32x8xf32, #tpu.memory_space<vmem>>, %arg7: memref<4x1x8xf32, #tpu.memory_space<vmem>>, %arg8: memref<4x32x8xf32, #tpu.memory_space<vmem>>, %arg9: memref<4x1x8xf32, #tpu.memory_space<vmem>>, %arg10: memref<4x8x32xf32, #tpu.memory_space<vmem>>, %arg11: memref<1x32xf32, #tpu.memory_space<vmem>>, %arg12: memref<2x8x32xf32, #tpu.memory_space<vmem>>) attributes {dimension_semantics = [#tpu.dimension_semantics<parallel>], iteration_bounds = array<i64: 1>, scalar_prefetch = 0 : i64, scratch_operands = 0 : i64, tpu.core_type = #tpu.core_type<tc>, window_params = [{transform_indices = @transform_0, window_bounds = array<i64: 2, 8, 32>}, {transform_indices = @transform_1, window_bounds = array<i64: 2, 8, 32>}, {transform_indices = @transform_2, window_bounds = array<i64: 2, 8, 32>}, {pipeline_mode = #tpu.pipeline_mode<synchronous>, transform_indices = @transform_3, window_bounds = array<i64: 4, 32, 8>}, {pipeline_mode = #tpu.pipeline_mode<synchronous>, transform_indices = @transform_4, window_bounds = array<i64: 4, 1, 8>}, {pipeline_mode = #tpu.pipeline_mode<synchronous>, transform_indices = @transform_5, window_bounds = array<i64: 4, 32, 8>}, {pipeline_mode = #tpu.pipeline_mode<synchronous>, transform_indices = @transform_6, window_bounds = array<i64: 4, 1, 8>}, {pipeline_mode = #tpu.pipeline_mode<synchronous>, transform_indices = @transform_7, window_bounds = array<i64: 4, 32, 8>}, {pipeline_mode = #tpu.pipeline_mode<synchronous>, transform_indices = @transform_8, window_bounds = array<i64: 4, 1, 8>}, {pipeline_mode = #tpu.pipeline_mode<synchronous>, transform_indices = @transform_9, window_bounds = array<i64: 4, 8, 32>}, {pipeline_mode = #tpu.pipeline_mode<synchronous>, transform_indices = @transform_10, window_bounds = array<i64: 1, 32>}, {transform_indices = @transform_11, window_bounds = array<i64: 2, 8, 32>}]} {
    %c0 = arith.constant 0 : index
    %c0_0 = arith.constant 0 : index
    %c0_1 = arith.constant 0 : index
    %0 = vector.load %arg1[%c0, %c0_0, %c0_1] : memref<2x8x32xf32, #tpu.memory_space<vmem>>, vector<2x8x32xf32>
    %1 = vector.shape_cast %0 : vector<2x8x32xf32> to vector<2x1x8x32xf32>
    %2 = vector.shape_cast %1 : vector<2x1x8x32xf32> to vector<2x1x8x32xf32>
    %3 = vector.broadcast %2 : vector<2x1x8x32xf32> to vector<2x4x8x32xf32>
    %4 = vector.shape_cast %3 : vector<2x4x8x32xf32> to vector<8x8x32xf32>
    %c0_2 = arith.constant 0 : index
    %c0_3 = arith.constant 0 : index
    %c0_4 = arith.constant 0 : index
    %5 = vector.load %arg2[%c0_2, %c0_3, %c0_4] : memref<2x8x32xf32, #tpu.memory_space<vmem>>, vector<2x8x32xf32>
    %6 = vector.shape_cast %5 : vector<2x8x32xf32> to vector<2x1x8x32xf32>
    %7 = vector.shape_cast %6 : vector<2x1x8x32xf32> to vector<2x1x8x32xf32>
    %8 = vector.broadcast %7 : vector<2x1x8x32xf32> to vector<2x4x8x32xf32>
    %9 = vector.shape_cast %8 : vector<2x4x8x32xf32> to vector<8x8x32xf32>
    %c0_5 = arith.constant 0 : index
    %c0_6 = arith.constant 0 : index
    %c0_7 = arith.constant 0 : index
    %10 = vector.load %arg3[%c0_5, %c0_6, %c0_7] : memref<2x8x32xf32, #tpu.memory_space<vmem>>, vector<2x8x32xf32>
    %11 = vector.shape_cast %10 : vector<2x8x32xf32> to vector<2x1x8x32xf32>
    %12 = vector.shape_cast %11 : vector<2x1x8x32xf32> to vector<2x1x8x32xf32>
    %13 = vector.broadcast %12 : vector<2x1x8x32xf32> to vector<2x4x8x32xf32>
    %14 = vector.shape_cast %13 : vector<2x4x8x32xf32> to vector<8x8x32xf32>
    %c0_8 = arith.constant 0 : index
    %c0_9 = arith.constant 0 : index
    %c0_10 = arith.constant 0 : index
    %15 = vector.load %arg4[%c0_8, %c0_9, %c0_10] : memref<4x32x8xf32, #tpu.memory_space<vmem>>, vector<4x32x8xf32>
    %16 = vector.shape_cast %15 : vector<4x32x8xf32> to vector<1x4x32x8xf32>
    %17 = vector.shape_cast %16 : vector<1x4x32x8xf32> to vector<1x4x32x8xf32>
    %18 = vector.broadcast %17 : vector<1x4x32x8xf32> to vector<2x4x32x8xf32>
    %19 = vector.shape_cast %18 : vector<2x4x32x8xf32> to vector<8x32x8xf32>
    %c0_11 = arith.constant 0 : index
    %c0_12 = arith.constant 0 : index
    %c0_13 = arith.constant 0 : index
    %20 = vector.load %arg6[%c0_11, %c0_12, %c0_13] : memref<4x32x8xf32, #tpu.memory_space<vmem>>, vector<4x32x8xf32>
    %21 = vector.shape_cast %20 : vector<4x32x8xf32> to vector<1x4x32x8xf32>
    %22 = vector.shape_cast %21 : vector<1x4x32x8xf32> to vector<1x4x32x8xf32>
    %23 = vector.broadcast %22 : vector<1x4x32x8xf32> to vector<2x4x32x8xf32>
    %24 = vector.shape_cast %23 : vector<2x4x32x8xf32> to vector<8x32x8xf32>
    %c0_14 = arith.constant 0 : index
    %c0_15 = arith.constant 0 : index
    %c0_16 = arith.constant 0 : index
    %25 = vector.load %arg8[%c0_14, %c0_15, %c0_16] : memref<4x32x8xf32, #tpu.memory_space<vmem>>, vector<4x32x8xf32>
    %26 = vector.shape_cast %25 : vector<4x32x8xf32> to vector<1x4x32x8xf32>
    %27 = vector.shape_cast %26 : vector<1x4x32x8xf32> to vector<1x4x32x8xf32>
    %28 = vector.broadcast %27 : vector<1x4x32x8xf32> to vector<2x4x32x8xf32>
    %29 = vector.shape_cast %28 : vector<2x4x32x8xf32> to vector<8x32x8xf32>
    %c0_17 = arith.constant 0 : index
    %c0_18 = arith.constant 0 : index
    %c0_19 = arith.constant 0 : index
    %30 = vector.load %arg10[%c0_17, %c0_18, %c0_19] : memref<4x8x32xf32, #tpu.memory_space<vmem>>, vector<4x8x32xf32>
    %31 = vector.shape_cast %30 : vector<4x8x32xf32> to vector<1x4x8x32xf32>
    %32 = vector.shape_cast %31 : vector<1x4x8x32xf32> to vector<1x4x8x32xf32>
    %33 = vector.broadcast %32 : vector<1x4x8x32xf32> to vector<2x4x8x32xf32>
    %34 = vector.shape_cast %33 : vector<2x4x8x32xf32> to vector<8x8x32xf32>
    %c0_20 = arith.constant 0 : index
    %c0_21 = arith.constant 0 : index
    %c0_22 = arith.constant 0 : index
    %35 = vector.load %arg5[%c0_20, %c0_21, %c0_22] : memref<4x1x8xf32, #tpu.memory_space<vmem>>, vector<4x1x8xf32>
    %36 = vector.shape_cast %35 : vector<4x1x8xf32> to vector<1x4x1x8xf32>
    %37 = vector.shape_cast %36 : vector<1x4x1x8xf32> to vector<1x4x1x8xf32>
    %38 = vector.broadcast %37 : vector<1x4x1x8xf32> to vector<2x4x1x8xf32>
    %39 = vector.shape_cast %38 : vector<2x4x1x8xf32> to vector<8x1x8xf32>
    %c0_23 = arith.constant 0 : index
    %c0_24 = arith.constant 0 : index
    %c0_25 = arith.constant 0 : index
    %40 = vector.load %arg7[%c0_23, %c0_24, %c0_25] : memref<4x1x8xf32, #tpu.memory_space<vmem>>, vector<4x1x8xf32>
    %41 = vector.shape_cast %40 : vector<4x1x8xf32> to vector<1x4x1x8xf32>
    %42 = vector.shape_cast %41 : vector<1x4x1x8xf32> to vector<1x4x1x8xf32>
    %43 = vector.broadcast %42 : vector<1x4x1x8xf32> to vector<2x4x1x8xf32>
    %44 = vector.shape_cast %43 : vector<2x4x1x8xf32> to vector<8x1x8xf32>
    %c0_26 = arith.constant 0 : index
    %c0_27 = arith.constant 0 : index
    %c0_28 = arith.constant 0 : index
    %45 = vector.load %arg9[%c0_26, %c0_27, %c0_28] : memref<4x1x8xf32, #tpu.memory_space<vmem>>, vector<4x1x8xf32>
    %46 = vector.shape_cast %45 : vector<4x1x8xf32> to vector<1x4x1x8xf32>
    %47 = vector.shape_cast %46 : vector<1x4x1x8xf32> to vector<1x4x1x8xf32>
    %48 = vector.broadcast %47 : vector<1x4x1x8xf32> to vector<2x4x1x8xf32>
    %49 = vector.shape_cast %48 : vector<2x4x1x8xf32> to vector<8x1x8xf32>
    "tpu.trace_start"() <{level = 10 : i32, message = "tsd,tdk->tsk"}> : () -> ()
    %cst = arith.constant dense<0.000000e+00> : vector<8x8x8xf32>
    %50 = tpu.matmul %4, %19, %cst {dimension_numbers = #tpu.dot_dimension_numbers<[2], [1], [1], [2], [0, 0, 0, 1, 1, 2], [0], [0]>} : vector<8x8x32xf32>, vector<8x32x8xf32>, vector<8x8x8xf32> -> vector<8x8x8xf32>
    "tpu.trace_stop"() : () -> ()
    %51 = vector.broadcast %39 : vector<8x1x8xf32> to vector<8x8x8xf32>
    %52 = arith.addf %50, %51 : vector<8x8x8xf32>
    "tpu.trace_start"() <{level = 10 : i32, message = "tsd,tdk->tsk"}> : () -> ()
    %cst_29 = arith.constant dense<0.000000e+00> : vector<8x8x8xf32>
    %53 = tpu.matmul %9, %24, %cst_29 {dimension_numbers = #tpu.dot_dimension_numbers<[2], [1], [1], [2], [0, 0, 0, 1, 1, 2], [0], [0]>} : vector<8x8x32xf32>, vector<8x32x8xf32>, vector<8x8x8xf32> -> vector<8x8x8xf32>
    "tpu.trace_stop"() : () -> ()
    %54 = vector.broadcast %44 : vector<8x1x8xf32> to vector<8x8x8xf32>
    %55 = arith.addf %53, %54 : vector<8x8x8xf32>
    "tpu.trace_start"() <{level = 10 : i32, message = "tsd,tdk->tsk"}> : () -> ()
    %cst_30 = arith.constant dense<0.000000e+00> : vector<8x8x8xf32>
    %56 = tpu.matmul %14, %29, %cst_30 {dimension_numbers = #tpu.dot_dimension_numbers<[2], [1], [1], [2], [0, 0, 0, 1, 1, 2], [0], [0]>} : vector<8x8x32xf32>, vector<8x32x8xf32>, vector<8x8x8xf32> -> vector<8x8x8xf32>
    "tpu.trace_stop"() : () -> ()
    %57 = vector.broadcast %49 : vector<8x1x8xf32> to vector<8x8x8xf32>
    %58 = arith.addf %56, %57 : vector<8x8x8xf32>
    "tpu.trace_start"() <{level = 10 : i32, message = "tqd,tkd->tqk"}> : () -> ()
    %cst_31 = arith.constant dense<0.000000e+00> : vector<8x8x8xf32>
    %59 = tpu.matmul %52, %55, %cst_31 {dimension_numbers = #tpu.dot_dimension_numbers<[2], [2], [1], [1], [0, 0, 0, 1, 1, 1], [0], [0]>} : vector<8x8x8xf32>, vector<8x8x8xf32>, vector<8x8x8xf32> -> vector<8x8x8xf32>
    "tpu.trace_stop"() : () -> ()
    %cst_32 = arith.constant 0.353553385 : f32
    %60 = vector.broadcast %cst_32 : f32 to vector<8x8x8xf32>
    %61 = arith.mulf %59, %60 : vector<8x8x8xf32>
    %cst_33 = arith.constant dense<0xFF800000> : vector<8x8xf32>
    %62 = vector.multi_reduction <maximumf>, %61, %cst_33 [2] : vector<8x8x8xf32> to vector<8x8xf32>
    %63 = vector.shape_cast %62 : vector<8x8xf32> to vector<8x8x1xf32>
    %64 = vector.broadcast %63 : vector<8x8x1xf32> to vector<8x8x8xf32>
    %65 = arith.subf %61, %64 : vector<8x8x8xf32>
    %66 = math.exp %65 : vector<8x8x8xf32>
    %cst_34 = arith.constant dense<0.000000e+00> : vector<8x8xf32>
    %67 = vector.multi_reduction <add>, %66, %cst_34 [2] : vector<8x8x8xf32> to vector<8x8xf32>
    %68 = vector.shape_cast %67 : vector<8x8xf32> to vector<8x8x1xf32>
    %69 = tpu.reciprocal %68 {approx = true} : vector<8x8x1xf32> -> vector<8x8x1xf32>
    %70 = vector.broadcast %69 : vector<8x8x1xf32> to vector<8x8x8xf32>
    %71 = arith.mulf %66, %70 : vector<8x8x8xf32>
    "tpu.trace_start"() <{level = 10 : i32, message = "tqk,tkd->tqd"}> : () -> ()
    %cst_35 = arith.constant dense<0.000000e+00> : vector<8x8x8xf32>
    %72 = tpu.matmul %71, %58, %cst_35 {dimension_numbers = #tpu.dot_dimension_numbers<[2], [1], [1], [2], [0, 0, 0, 1, 1, 2], [0], [0]>} : vector<8x8x8xf32>, vector<8x8x8xf32>, vector<8x8x8xf32> -> vector<8x8x8xf32>
    "tpu.trace_stop"() : () -> ()
    "tpu.trace_start"() <{level = 10 : i32, message = "tsk,tkd->tsd"}> : () -> ()
    %cst_36 = arith.constant dense<0.000000e+00> : vector<8x8x32xf32>
    %73 = tpu.matmul %72, %34, %cst_36 {dimension_numbers = #tpu.dot_dimension_numbers<[2], [1], [1], [2], [0, 0, 0, 1, 1, 2], [0], [0]>} : vector<8x8x8xf32>, vector<8x8x32xf32>, vector<8x8x32xf32> -> vector<8x8x32xf32>
    "tpu.trace_stop"() : () -> ()
    %74 = vector.shape_cast %73 : vector<8x8x32xf32> to vector<2x4x8x32xf32>
    %cst_37 = arith.constant dense<0.000000e+00> : vector<2x8x32xf32>
    %75 = vector.multi_reduction <add>, %74, %cst_37 [1] : vector<2x4x8x32xf32> to vector<2x8x32xf32>
    %c0_38 = arith.constant 0 : index
    %c0_39 = arith.constant 0 : index
    %76 = vector.load %arg11[%c0_38, %c0_39] : memref<1x32xf32, #tpu.memory_space<vmem>>, vector<1x32xf32>
    %77 = vector.shape_cast %76 : vector<1x32xf32> to vector<1x1x32xf32>
    %78 = vector.broadcast %77 : vector<1x1x32xf32> to vector<2x8x32xf32>
    %79 = arith.addf %75, %78 : vector<2x8x32xf32>
    %c0_40 = arith.constant 0 : index
    %c0_41 = arith.constant 0 : index
    %c0_42 = arith.constant 0 : index
    %80 = vector.load %arg12[%c0_40, %c0_41, %c0_42] : memref<2x8x32xf32, #tpu.memory_space<vmem>>, vector<2x8x32xf32>
    tpu.vector_store %arg12[%c0_40, %c0_41, %c0_42], %79 {strides = array<i32>} : memref<2x8x32xf32, #tpu.memory_space<vmem>>, vector<2x8x32xf32>,
    return
  }
  func.func @transform_0(%arg0: i32) -> (i32, i32, i32) {
    %c0_i32 = arith.constant 0 : i32
    %c0_i32_0 = arith.constant 0 : i32
    %c0_i32_1 = arith.constant 0 : i32
    return %arg0, %c0_i32, %c0_i32_0 : i32, i32, i32
  }
  func.func @transform_1(%arg0: i32) -> (i32, i32, i32) {
    %c0_i32 = arith.constant 0 : i32
    %c0_i32_0 = arith.constant 0 : i32
    %c0_i32_1 = arith.constant 0 : i32
    return %arg0, %c0_i32, %c0_i32_0 : i32, i32, i32
  }
  func.func @transform_2(%arg0: i32) -> (i32, i32, i32) {
    %c0_i32 = arith.constant 0 : i32
    %c0_i32_0 = arith.constant 0 : i32
    %c0_i32_1 = arith.constant 0 : i32
    return %arg0, %c0_i32, %c0_i32_0 : i32, i32, i32
  }
  func.func @transform_3(%arg0: i32) -> (i32, i32, i32) {
    %c0_i32 = arith.constant 0 : i32
    %c0_i32_0 = arith.constant 0 : i32
    %c0_i32_1 = arith.constant 0 : i32
    %c0_i32_2 = arith.constant 0 : i32
    return %c0_i32, %c0_i32_0, %c0_i32_1 : i32, i32, i32
  }
  func.func @transform_4(%arg0: i32) -> (i32, i32, i32) {
    %c0_i32 = arith.constant 0 : i32
    %c0_i32_0 = arith.constant 0 : i32
    %c0_i32_1 = arith.constant 0 : i32
    %c0_i32_2 = arith.constant 0 : i32
    return %c0_i32, %c0_i32_0, %c0_i32_1 : i32, i32, i32
  }
  func.func @transform_5(%arg0: i32) -> (i32, i32, i32) {
    %c0_i32 = arith.constant 0 : i32
    %c0_i32_0 = arith.constant 0 : i32
    %c0_i32_1 = arith.constant 0 : i32
    %c0_i32_2 = arith.constant 0 : i32
    return %c0_i32, %c0_i32_0, %c0_i32_1 : i32, i32, i32
  }
  func.func @transform_6(%arg0: i32) -> (i32, i32, i32) {
    %c0_i32 = arith.constant 0 : i32
    %c0_i32_0 = arith.constant 0 : i32
    %c0_i32_1 = arith.constant 0 : i32
    %c0_i32_2 = arith.constant 0 : i32
    return %c0_i32, %c0_i32_0, %c0_i32_1 : i32, i32, i32
  }
  func.func @transform_7(%arg0: i32) -> (i32, i32, i32) {
    %c0_i32 = arith.constant 0 : i32
    %c0_i32_0 = arith.constant 0 : i32
    %c0_i32_1 = arith.constant 0 : i32
    %c0_i32_2 = arith.constant 0 : i32
    return %c0_i32, %c0_i32_0, %c0_i32_1 : i32, i32, i32
  }
  func.func @transform_8(%arg0: i32) -> (i32, i32, i32) {
    %c0_i32 = arith.constant 0 : i32
    %c0_i32_0 = arith.constant 0 : i32
    %c0_i32_1 = arith.constant 0 : i32
    %c0_i32_2 = arith.constant 0 : i32
    return %c0_i32, %c0_i32_0, %c0_i32_1 : i32, i32, i32
  }
  func.func @transform_9(%arg0: i32) -> (i32, i32, i32) {
    %c0_i32 = arith.constant 0 : i32
    %c0_i32_0 = arith.constant 0 : i32
    %c0_i32_1 = arith.constant 0 : i32
    %c0_i32_2 = arith.constant 0 : i32
    return %c0_i32, %c0_i32_0, %c0_i32_1 : i32, i32, i32
  }
  func.func @transform_10(%arg0: i32) -> (i32, i32) {
    %c0_i32 = arith.constant 0 : i32
    %c0_i32_0 = arith.constant 0 : i32
    %c0_i32_1 = arith.constant 0 : i32
    return %c0_i32, %c0_i32_0 : i32, i32
  }
  func.func @transform_11(%arg0: i32) -> (i32, i32, i32) {
    %c0_i32 = arith.constant 0 : i32
    %c0_i32_0 = arith.constant 0 : i32
    %c0_i32_1 = arith.constant 0 : i32
    return %arg0, %c0_i32, %c0_i32_0 : i32, i32, i32
  }
}

</mosaic_0001>

<llo_original>
// kernel: tpu_custom_call.1
$region0: #{tpu_custom_call.1}
  #allocation0 [shape = 'u32[]', space=smem, size = 0x4, offset = 0x4, fixed_abs, tag = 'smem constant byte address 0x4 - core index']
  #allocation1 [shape = 'u32[144,128]{1,0:T(1,128)}', space=vmem, size = 0x12000, scoped, tag = 'internal scratch']
  %s0 = inlined_call_operand.vmem [shape: f32[2,8,32], index: 0, kind: input, shape index: {}]
  %s1 = inlined_call_operand.vmem [shape: f32[2,8,32], index: 1, kind: input, shape index: {}]
  %s2 = inlined_call_operand.vmem [shape: f32[2,8,32], index: 2, kind: input, shape index: {}]
  %s3 = inlined_call_operand.vmem [shape: f32[4,32,8], index: 3, kind: input, shape index: {}]
  %s4 = inlined_call_operand.vmem [shape: f32[4,1,8], index: 4, kind: input, shape index: {}]
  %s5 = inlined_call_operand.vmem [shape: f32[4,32,8], index: 5, kind: input, shape index: {}]
  %s6 = inlined_call_operand.vmem [shape: f32[4,1,8], index: 6, kind: input, shape index: {}]
  %s7 = inlined_call_operand.vmem [shape: f32[4,32,8], index: 7, kind: input, shape index: {}]
  %s8 = inlined_call_operand.vmem [shape: f32[4,1,8], index: 8, kind: input, shape index: {}]
  %s9 = inlined_call_operand.vmem [shape: f32[4,8,32], index: 9, kind: input, shape index: {}]
  %s10 = inlined_call_operand.vmem [shape: f32[1,32], index: 10, kind: input, shape index: {}]
  %s11 = inlined_call_operand.hbm [shape: f32[2,8,32], index: 11, kind: output, shape index: {}]
  %s12 = sld [smem:[#allocation0]]
  $region54: #{tpu_custom_call.1} parent=0
    _
  %s14 = ssub.s32 1, %s12
  %s15 = scalar_select 0, %s14, %s12
  $region1: #{tpu_custom_call.1} parent=0
    #allocation2 [shape = 'u8[8192]{0}', space=vmem, size = 0x2000, scoped, tag = 'output window, operand 0, single buffered']
    #allocation3 [shape = 's32[1]{0}', space=sflag, size = 0x4, scoped, tag = 'scoped memory for tpu_custom_call.1']
    %16 = vsyncpa [#allocation3], 0
    // Predicated region
    $region2: #{tpu_custom_call.1} parent=1 // pred_check
      _
    $region3: #{tpu_custom_call.1} parent=1 // pred_check_branch
      %18 = sbr.rel (0) target = $region5
    $region4: #{tpu_custom_call.1} parent=1 // pred_region
      _
    $region5: #{tpu_custom_call.1} parent=1 // pred_fallthru
      _
    // Predicated region
    $region6: #{tpu_custom_call.1} parent=1 // pred_check
      _
    $region7: #{tpu_custom_call.1} parent=1 // pred_check_branch
      %20 = sbr.rel (0) target = $region9
    $region8: #{tpu_custom_call.1} parent=1 // pred_region
      _
    $region9: #{tpu_custom_call.1} parent=1 // pred_fallthru
      _
    // Predicated region
    $region10: #{tpu_custom_call.1} parent=1 // pred_check
      _
    $region11: #{tpu_custom_call.1} parent=1 // pred_check_branch
      %22 = sbr.rel (0) target = $region13
    $region12: #{tpu_custom_call.1} parent=1 // pred_region
      _
    $region13: #{tpu_custom_call.1} parent=1 // pred_fallthru
      _
    // Predicated region
    $region14: #{tpu_custom_call.1} parent=1 // pred_check
      _
    $region15: #{tpu_custom_call.1} parent=1 // pred_check_branch
      %24 = sbr.rel (0) target = $region17
    $region16: #{tpu_custom_call.1} parent=1 // pred_region
      _
    $region17: #{tpu_custom_call.1} parent=1 // pred_fallthru
      _
    // Predicated region
    $region18: #{tpu_custom_call.1} parent=1 // pred_check
      _
    $region19: #{tpu_custom_call.1} parent=1 // pred_check_branch
      %26 = sbr.rel (0) target = $region21
    $region20: #{tpu_custom_call.1} parent=1 // pred_region
      _
    $region21: #{tpu_custom_call.1} parent=1 // pred_fallthru
      _
    // Predicated region
    $region22: #{tpu_custom_call.1} parent=1 // pred_check
      _
    $region23: #{tpu_custom_call.1} parent=1 // pred_check_branch
      %28 = sbr.rel (0) target = $region25
    $region24: #{tpu_custom_call.1} parent=1 // pred_region
      _
    $region25: #{tpu_custom_call.1} parent=1 // pred_fallthru
      _
    // Predicated region
    $region26: #{tpu_custom_call.1} parent=1 // pred_check
      _
    $region27: #{tpu_custom_call.1} parent=1 // pred_check_branch
      %30 = sbr.rel (0) target = $region29
    $region28: #{tpu_custom_call.1} parent=1 // pred_region
      _
    $region29: #{tpu_custom_call.1} parent=1 // pred_fallthru
      _
    // Predicated region
    $region30: #{tpu_custom_call.1} parent=1 // pred_check
      _
    $region31: #{tpu_custom_call.1} parent=1 // pred_check_branch
      %32 = sbr.rel (0) target = $region33
    $region32: #{tpu_custom_call.1} parent=1 // pred_region
      _
    $region33: #{tpu_custom_call.1} parent=1 // pred_fallthru
      _
    // Predicated region
    $region34: #{tpu_custom_call.1} parent=1 // pred_check
      _
    $region35: #{tpu_custom_call.1} parent=1 // pred_check_branch
      %34 = sbr.rel (0) target = $region37
    $region36: #{tpu_custom_call.1} parent=1 // pred_region
      _
    $region37: #{tpu_custom_call.1} parent=1 // pred_fallthru
      _
    // Predicated region
    $region38: #{tpu_custom_call.1} parent=1 // pred_check
      _
    $region39: #{tpu_custom_call.1} parent=1 // pred_check_branch
      %36 = sbr.rel (0) target = $region41
    $region40: #{tpu_custom_call.1} parent=1 // pred_region
      _
    $region41: #{tpu_custom_call.1} parent=1 // pred_fallthru
      _
    // Predicated region
    $region42: #{tpu_custom_call.1} parent=1 // pred_check
      _
    $region43: #{tpu_custom_call.1} parent=1 // pred_check_branch
      %38 = sbr.rel (0) target = $region45
    $region44: #{tpu_custom_call.1} parent=1 // pred_region
      _
    $region45: #{tpu_custom_call.1} parent=1 // pred_fallthru
      _
    %v39 = vld [vmem:[%s0] sm:$0xff]
    %v40 = vld [vmem:[%s0 + $0x8] sm:$0xff]
    %v41 = vld [vmem:[%s1] sm:$0xff]
    %v42 = vld [vmem:[%s1 + $0x8] sm:$0xff]
    %v43 = vld [vmem:[%s2] sm:$0xff]
    %v44 = vld [vmem:[%s2 + $0x8] sm:$0xff]
    %v45 = vld [vmem:[%s3] sm:$0xff]
    %v46 = vld [vmem:[%s3 + $0x8] sm:$0xff]
    %v47 = vld [vmem:[%s3 + $0x10] sm:$0xff]
    %v48 = vld [vmem:[%s3 + $0x18] sm:$0xff]
    %v49 = vld [vmem:[%s3 + $0x20] sm:$0xff]
    %v50 = vld [vmem:[%s3 + $0x28] sm:$0xff]
    %v51 = vld [vmem:[%s3 + $0x30] sm:$0xff]
    %v52 = vld [vmem:[%s3 + $0x38] sm:$0xff]
    %v53 = vld [vmem:[%s3 + $0x40] sm:$0xff]
    %v54 = vld [vmem:[%s3 + $0x48] sm:$0xff]
    %v55 = vld [vmem:[%s3 + $0x50] sm:$0xff]
    %v56 = vld [vmem:[%s3 + $0x58] sm:$0xff]
    %v57 = vld [vmem:[%s3 + $0x60] sm:$0xff]
    %v58 = vld [vmem:[%s3 + $0x68] sm:$0xff]
    %v59 = vld [vmem:[%s3 + $0x70] sm:$0xff]
    %v60 = vld [vmem:[%s3 + $0x78] sm:$0xff]
    %v61 = vld [vmem:[%s5] sm:$0xff]
    %v62 = vld [vmem:[%s5 + $0x8] sm:$0xff]
    %v63 = vld [vmem:[%s5 + $0x10] sm:$0xff]
    %v64 = vld [vmem:[%s5 + $0x18] sm:$0xff]
    %v65 = vld [vmem:[%s5 + $0x20] sm:$0xff]
    %v66 = vld [vmem:[%s5 + $0x28] sm:$0xff]
    %v67 = vld [vmem:[%s5 + $0x30] sm:$0xff]
    %v68 = vld [vmem:[%s5 + $0x38] sm:$0xff]
    %v69 = vld [vmem:[%s5 + $0x40] sm:$0xff]
    %v70 = vld [vmem:[%s5 + $0x48] sm:$0xff]
    %v71 = vld [vmem:[%s5 + $0x50] sm:$0xff]
    %v72 = vld [vmem:[%s5 + $0x58] sm:$0xff]
    %v73 = vld [vmem:[%s5 + $0x60] sm:$0xff]
    %v74 = vld [vmem:[%s5 + $0x68] sm:$0xff]
    %v75 = vld [vmem:[%s5 + $0x70] sm:$0xff]
    %v76 = vld [vmem:[%s5 + $0x78] sm:$0xff]
    %v77 = vld [vmem:[%s7] sm:$0xff]
    %v78 = vld [vmem:[%s7 + $0x8] sm:$0xff]
    %v79 = vld [vmem:[%s7 + $0x10] sm:$0xff]
    %v80 = vld [vmem:[%s7 + $0x18] sm:$0xff]
    %v81 = vld [vmem:[%s7 + $0x20] sm:$0xff]
    %v82 = vld [vmem:[%s7 + $0x28] sm:$0xff]
    %v83 = vld [vmem:[%s7 + $0x30] sm:$0xff]
    %v84 = vld [vmem:[%s7 + $0x38] sm:$0xff]
    %v85 = vld [vmem:[%s7 + $0x40] sm:$0xff]
    %v86 = vld [vmem:[%s7 + $0x48] sm:$0xff]
    %v87 = vld [vmem:[%s7 + $0x50] sm:$0xff]
    %v88 = vld [vmem:[%s7 + $0x58] sm:$0xff]
    %v89 = vld [vmem:[%s7 + $0x60] sm:$0xff]
    %v90 = vld [vmem:[%s7 + $0x68] sm:$0xff]
    %v91 = vld [vmem:[%s7 + $0x70] sm:$0xff]
    %v92 = vld [vmem:[%s7 + $0x78] sm:$0xff]
    %v93 = vld [vmem:[%s9] sm:$0xff]
    %v94 = vld [vmem:[%s9 + $0x8] sm:$0xff]
    %v95 = vld [vmem:[%s9 + $0x10] sm:$0xff]
    %v96 = vld [vmem:[%s9 + $0x18] sm:$0xff]
    %v97 = vld [vmem:[%s4] sm:$0x1]
    %v98 = vld [vmem:[%s4 + $0x1] sm:$0x1]
    %v99 = vld [vmem:[%s4 + $0x2] sm:$0x1]
    %v100 = vld [vmem:[%s4 + $0x3] sm:$0x1]
    %v101 = vld [vmem:[%s6] sm:$0x1]
    %v102 = vld [vmem:[%s6 + $0x1] sm:$0x1]
    %v103 = vld [vmem:[%s6 + $0x2] sm:$0x1]
    %v104 = vld [vmem:[%s6 + $0x3] sm:$0x1]
    %v105 = vld [vmem:[%s8] sm:$0x1]
    %v106 = vld [vmem:[%s8 + $0x1] sm:$0x1]
    %v107 = vld [vmem:[%s8 + $0x2] sm:$0x1]
    %v108 = vld [vmem:[%s8 + $0x3] sm:$0x1]
    %v113 = vlaneseq
    %v114 = vshrl.u32 %v113, 7
    %v115 = vsub.s32 0, %v114
    %v116 = vrot.slane %v97, %v115
    %v117 = vlaneseq
    %v118 = vshrl.u32 %v117, 7
    %v119 = vsub.s32 0, %v118
    %v120 = vrot.slane %v98, %v119
    %v121 = vlaneseq
    %v122 = vshrl.u32 %v121, 7
    %v123 = vsub.s32 0, %v122
    %v124 = vrot.slane %v99, %v123
    %v125 = vlaneseq
    %v126 = vshrl.u32 %v125, 7
    %v127 = vsub.s32 0, %v126
    %v128 = vrot.slane %v100, %v127
    %vm133 = vcmask 261120
    %v135 = vsel %vm133, %v39, 0
    %137 = vmatprep.subr.mxu0 0.0
    %138 = vmatpush1.msra.mxu0 0.0
    %139 = vmatprep.subr.mxu0 0.0
    %140 = vmatpush1.msra.mxu0 0.0
    %141 = vmatprep.subr.mxu0 0.0
    %142 = vmatpush1.msra.mxu0 0.0
    %143 = vmatprep.subr.mxu0 0.0
    %144 = vmatpush1.msra.mxu0 0.0
    %145 = vmatprep.subr.mxu0 0.0
    %146 = vmatpush1.msra.mxu0 0.0
    %147 = vmatprep.subr.mxu0 0.0
    %148 = vmatpush1.msra.mxu0 0.0
    %149 = vmatprep.subr.mxu0 0.0
    %150 = vmatpush1.msra.mxu0 0.0
    %151 = vmatprep.subr.mxu0 0.0
    %152 = vmatpush1.msra.mxu0 0.0
    %153 = vmatprep.subr.mxu0 0.0
    %154 = vmatpush1.msra.mxu0 0.0
    %155 = vmatprep.subr.mxu0 0.0
    %156 = vmatpush1.msra.mxu0 0.0
    %157 = vmatprep.subr.mxu0 0.0
    %158 = vmatpush1.msra.mxu0 0.0
    %159 = vmatprep.subr.mxu0 0.0
    %160 = vmatpush1.msra.mxu0 0.0
    %161 = vmatprep.subr.mxu0 0.0
    %162 = vmatpush1.msra.mxu0 %v48
    %163 = vmatprep.subr.mxu0 0.0
    %164 = vmatpush1.msra.mxu0 %v47
    %165 = vmatprep.subr.mxu0 0.0
    %166 = vmatpush1.msra.mxu0 %v46
    %167 = vmatprep.subr.mxu0 0.0
    %168 = vmatpush1.msra.mxu0 %v45
    %169 = vmatprep.subr.mxu0 0.0
    %170 = vmatpush2.msra.mxu0 0.0
    %171 = vmatprep.subr.mxu0 0.0
    %172 = vmatpush2.msra.mxu0 0.0
    %173 = vmatprep.subr.mxu0 0.0
    %174 = vmatpush2.msra.mxu0 0.0
    %175 = vmatprep.subr.mxu0 0.0
    %176 = vmatpush2.msra.mxu0 0.0
    %177 = vmatprep.subr.mxu0 0.0
    %178 = vmatpush2.msra.mxu0 0.0
    %179 = vmatprep.subr.mxu0 0.0
    %180 = vmatpush2.msra.mxu0 0.0
    %181 = vmatprep.subr.mxu0 0.0
    %182 = vmatpush2.msra.mxu0 0.0
    %183 = vmatprep.subr.mxu0 0.0
    %184 = vmatpush2.msra.mxu0 0.0
    %185 = vmatprep.subr.mxu0 0.0
    %186 = vmatpush2.msra.mxu0 0.0
    %187 = vmatprep.subr.mxu0 0.0
    %188 = vmatpush2.msra.mxu0 0.0
    %189 = vmatprep.subr.mxu0 0.0
    %190 = vmatpush2.msra.mxu0 0.0
    %191 = vmatprep.subr.mxu0 0.0
    %192 = vmatpush2.msra.mxu0 0.0
    %193 = vmatprep.subr.mxu0 0.0
    %194 = vmatpush2.msra.mxu0 0.0
    %195 = vmatprep.subr.mxu0 0.0
    %196 = vmatpush2.msra.mxu0 0.0
    %197 = vmatprep.subr.mxu0 0.0
    %198 = vmatpush2.msra.mxu0 0.0
    %199 = vmatprep.subr.mxu0 0.0
    %200 = vmatpush2.msra.mxu0 0.0
    %201 = vmatprep.mubr.f32.mxu0 0.0
    %202 = vmatmul.mubr.f32.gmra.mxu0 %v135
    %v203 = vpop.f32.mrf.mxu0
    %v204 = vadd.f32 %v116, %v203
    %v205 = vpop.f32.mrf.mxu0
    %206 = vdwg.mxu0
    %207 = vmatprep.subr.mxu0 0.0
    %208 = vmatpush1.msra.mxu0 0.0
    %209 = vmatprep.subr.mxu0 0.0
    %210 = vmatpush1.msra.mxu0 0.0
    %211 = vmatprep.subr.mxu0 0.0
    %212 = vmatpush1.msra.mxu0 0.0
    %213 = vmatprep.subr.mxu0 0.0
    %214 = vmatpush1.msra.mxu0 0.0
    %215 = vmatprep.subr.mxu0 0.0
    %216 = vmatpush1.msra.mxu0 0.0
    %217 = vmatprep.subr.mxu0 0.0
    %218 = vmatpush1.msra.mxu0 0.0
    %219 = vmatprep.subr.mxu0 0.0
    %220 = vmatpush1.msra.mxu0 0.0
    %221 = vmatprep.subr.mxu0 0.0
    %222 = vmatpush1.msra.mxu0 0.0
    %223 = vmatprep.subr.mxu0 0.0
    %224 = vmatpush1.msra.mxu0 0.0
    %225 = vmatprep.subr.mxu0 0.0
    %226 = vmatpush1.msra.mxu0 0.0
    %227 = vmatprep.subr.mxu0 0.0
    %228 = vmatpush1.msra.mxu0 0.0
    %229 = vmatprep.subr.mxu0 0.0
    %230 = vmatpush1.msra.mxu0 0.0
    %231 = vmatprep.subr.mxu0 0.0
    %232 = vmatpush1.msra.mxu0 %v52
    %233 = vmatprep.subr.mxu0 0.0
    %234 = vmatpush1.msra.mxu0 %v51
    %235 = vmatprep.subr.mxu0 0.0
    %236 = vmatpush1.msra.mxu0 %v50
    %237 = vmatprep.subr.mxu0 0.0
    %238 = vmatpush1.msra.mxu0 %v49
    %239 = vmatprep.subr.mxu0 0.0
    %240 = vmatpush2.msra.mxu0 0.0
    %241 = vmatprep.subr.mxu0 0.0
    %242 = vmatpush2.msra.mxu0 0.0
    %243 = vmatprep.subr.mxu0 0.0
    %244 = vmatpush2.msra.mxu0 0.0
    %245 = vmatprep.subr.mxu0 0.0
    %246 = vmatpush2.msra.mxu0 0.0
    %247 = vmatprep.subr.mxu0 0.0
    %248 = vmatpush2.msra.mxu0 0.0
    %249 = vmatprep.subr.mxu0 0.0
    %250 = vmatpush2.msra.mxu0 0.0
    %251 = vmatprep.subr.mxu0 0.0
    %252 = vmatpush2.msra.mxu0 0.0
    %253 = vmatprep.subr.mxu0 0.0
    %254 = vmatpush2.msra.mxu0 0.0
    %255 = vmatprep.subr.mxu0 0.0
    %256 = vmatpush2.msra.mxu0 0.0
    %257 = vmatprep.subr.mxu0 0.0
    %258 = vmatpush2.msra.mxu0 0.0
    %259 = vmatprep.subr.mxu0 0.0
    %260 = vmatpush2.msra.mxu0 0.0
    %261 = vmatprep.subr.mxu0 0.0
    %262 = vmatpush2.msra.mxu0 0.0
    %263 = vmatprep.subr.mxu0 0.0
    %264 = vmatpush2.msra.mxu0 0.0
    %265 = vmatprep.subr.mxu0 0.0
    %266 = vmatpush2.msra.mxu0 0.0
    %267 = vmatprep.subr.mxu0 0.0
    %268 = vmatpush2.msra.mxu0 0.0
    %269 = vmatprep.subr.mxu0 0.0
    %270 = vmatpush2.msra.mxu0 0.0
    %271 = vmatprep.mubr.f32.mxu0 0.0
    %272 = vmatmul.mubr.f32.gmra.mxu0 %v135
    %v273 = vpop.f32.mrf.mxu0
    %v274 = vadd.f32 %v120, %v273
    %v275 = vpop.f32.mrf.mxu0
    %276 = vdwg.mxu0
    %277 = vmatprep.subr.mxu0 0.0
    %278 = vmatpush1.msra.mxu0 0.0
    %279 = vmatprep.subr.mxu0 0.0
    %280 = vmatpush1.msra.mxu0 0.0
    %281 = vmatprep.subr.mxu0 0.0
    %282 = vmatpush1.msra.mxu0 0.0
    %283 = vmatprep.subr.mxu0 0.0
    %284 = vmatpush1.msra.mxu0 0.0
    %285 = vmatprep.subr.mxu0 0.0
    %286 = vmatpush1.msra.mxu0 0.0
    %287 = vmatprep.subr.mxu0 0.0
    %288 = vmatpush1.msra.mxu0 0.0
    %289 = vmatprep.subr.mxu0 0.0
    %290 = vmatpush1.msra.mxu0 0.0
    %291 = vmatprep.subr.mxu0 0.0
    %292 = vmatpush1.msra.mxu0 0.0
    %293 = vmatprep.subr.mxu0 0.0
    %294 = vmatpush1.msra.mxu0 0.0
    %295 = vmatprep.subr.mxu0 0.0
    %296 = vmatpush1.msra.mxu0 0.0
    %297 = vmatprep.subr.mxu0 0.0
    %298 = vmatpush1.msra.mxu0 0.0
    %299 = vmatprep.subr.mxu0 0.0
    %300 = vmatpush1.msra.mxu0 0.0
    %301 = vmatprep.subr.mxu0 0.0
    %302 = vmatpush1.msra.mxu0 %v56
    %303 = vmatprep.subr.mxu0 0.0
    %304 = vmatpush1.msra.mxu0 %v55
    %305 = vmatprep.subr.mxu0 0.0
    %306 = vmatpush1.msra.mxu0 %v54
    %307 = vmatprep.subr.mxu0 0.0
    %308 = vmatpush1.msra.mxu0 %v53
    %309 = vmatprep.subr.mxu0 0.0
    %310 = vmatpush2.msra.mxu0 0.0
    %311 = vmatprep.subr.mxu0 0.0
    %312 = vmatpush2.msra.mxu0 0.0
    %313 = vmatprep.subr.mxu0 0.0
    %314 = vmatpush2.msra.mxu0 0.0
    %315 = vmatprep.subr.mxu0 0.0
    %316 = vmatpush2.msra.mxu0 0.0
    %317 = vmatprep.subr.mxu0 0.0
    %318 = vmatpush2.msra.mxu0 0.0
    %319 = vmatprep.subr.mxu0 0.0
    %320 = vmatpush2.msra.mxu0 0.0
    %321 = vmatprep.subr.mxu0 0.0
    %322 = vmatpush2.msra.mxu0 0.0
    %323 = vmatprep.subr.mxu0 0.0
    %324 = vmatpush2.msra.mxu0 0.0
    %325 = vmatprep.subr.mxu0 0.0
    %326 = vmatpush2.msra.mxu0 0.0
    %327 = vmatprep.subr.mxu0 0.0
    %328 = vmatpush2.msra.mxu0 0.0
    %329 = vmatprep.subr.mxu0 0.0
    %330 = vmatpush2.msra.mxu0 0.0
    %331 = vmatprep.subr.mxu0 0.0
    %332 = vmatpush2.msra.mxu0 0.0
    %333 = vmatprep.subr.mxu0 0.0
    %334 = vmatpush2.msra.mxu0 0.0
    %335 = vmatprep.subr.mxu0 0.0
    %336 = vmatpush2.msra.mxu0 0.0
    %337 = vmatprep.subr.mxu0 0.0
    %338 = vmatpush2.msra.mxu0 0.0
    %339 = vmatprep.subr.mxu0 0.0
    %340 = vmatpush2.msra.mxu0 0.0
    %341 = vmatprep.mubr.f32.mxu0 0.0
    %342 = vmatmul.mubr.f32.gmra.mxu0 %v135
    %v343 = vpop.f32.mrf.mxu0
    %v344 = vadd.f32 %v124, %v343
    %v345 = vpop.f32.mrf.mxu0
    %346 = vdwg.mxu0
    %347 = vmatprep.subr.mxu0 0.0
    %348 = vmatpush1.msra.mxu0 0.0
    %349 = vmatprep.subr.mxu0 0.0
    %350 = vmatpush1.msra.mxu0 0.0
    %351 = vmatprep.subr.mxu0 0.0
    %352 = vmatpush1.msra.mxu0 0.0
    %353 = vmatprep.subr.mxu0 0.0
    %354 = vmatpush1.msra.mxu0 0.0
    %355 = vmatprep.subr.mxu0 0.0
    %356 = vmatpush1.msra.mxu0 0.0
    %357 = vmatprep.subr.mxu0 0.0
    %358 = vmatpush1.msra.mxu0 0.0
    %359 = vmatprep.subr.mxu0 0.0
    %360 = vmatpush1.msra.mxu0 0.0
    %361 = vmatprep.subr.mxu0 0.0
    %362 = vmatpush1.msra.mxu0 0.0
    %363 = vmatprep.subr.mxu0 0.0
    %364 = vmatpush1.msra.mxu0 0.0
    %365 = vmatprep.subr.mxu0 0.0
    %366 = vmatpush1.msra.mxu0 0.0
    %367 = vmatprep.subr.mxu0 0.0
    %368 = vmatpush1.msra.mxu0 0.0
    %369 = vmatprep.subr.mxu0 0.0
    %370 = vmatpush1.msra.mxu0 0.0
    %371 = vmatprep.subr.mxu0 0.0
    %372 = vmatpush1.msra.mxu0 %v60
    %373 = vmatprep.subr.mxu0 0.0
    %374 = vmatpush1.msra.mxu0 %v59
    %375 = vmatprep.subr.mxu0 0.0
    %376 = vmatpush1.msra.mxu0 %v58
    %377 = vmatprep.subr.mxu0 0.0
    %378 = vmatpush1.msra.mxu0 %v57
    %379 = vmatprep.subr.mxu0 0.0
    %380 = vmatpush2.msra.mxu0 0.0
    %381 = vmatprep.subr.mxu0 0.0
    %382 = vmatpush2.msra.mxu0 0.0
    %383 = vmatprep.subr.mxu0 0.0
    %384 = vmatpush2.msra.mxu0 0.0
    %385 = vmatprep.subr.mxu0 0.0
    %386 = vmatpush2.msra.mxu0 0.0
    %387 = vmatprep.subr.mxu0 0.0
    %388 = vmatpush2.msra.mxu0 0.0
    %389 = vmatprep.subr.mxu0 0.0
    %390 = vmatpush2.msra.mxu0 0.0
    %391 = vmatprep.subr.mxu0 0.0
    %392 = vmatpush2.msra.mxu0 0.0
    %393 = vmatprep.subr.mxu0 0.0
    %394 = vmatpush2.msra.mxu0 0.0
    %395 = vmatprep.subr.mxu0 0.0
    %396 = vmatpush2.msra.mxu0 0.0
    %397 = vmatprep.subr.mxu0 0.0
    %398 = vmatpush2.msra.mxu0 0.0
    %399 = vmatprep.subr.mxu0 0.0
    %400 = vmatpush2.msra.mxu0 0.0
    %401 = vmatprep.subr.mxu0 0.0
    %402 = vmatpush2.msra.mxu0 0.0
    %403 = vmatprep.subr.mxu0 0.0
    %404 = vmatpush2.msra.mxu0 0.0
    %405 = vmatprep.subr.mxu0 0.0
    %406 = vmatpush2.msra.mxu0 0.0
    %407 = vmatprep.subr.mxu0 0.0
    %408 = vmatpush2.msra.mxu0 0.0
    %409 = vmatprep.subr.mxu0 0.0
    %410 = vmatpush2.msra.mxu0 0.0
    %411 = vmatprep.mubr.f32.mxu0 0.0
    %412 = vmatmul.mubr.f32.gmra.mxu0 %v135
    %v413 = vpop.f32.mrf.mxu0
    %v414 = vadd.f32 %v128, %v413
    %v415 = vpop.f32.mrf.mxu0
    %416 = vdwg.mxu0
    %v418 = vsel %vm133, %v40, 0
    %420 = vmatprep.subr.mxu0 0.0
    %421 = vmatpush1.msra.mxu0 0.0
    %422 = vmatprep.subr.mxu0 0.0
    %423 = vmatpush1.msra.mxu0 0.0
    %424 = vmatprep.subr.mxu0 0.0
    %425 = vmatpush1.msra.mxu0 0.0
    %426 = vmatprep.subr.mxu0 0.0
    %427 = vmatpush1.msra.mxu0 0.0
    %428 = vmatprep.subr.mxu0 0.0
    %429 = vmatpush1.msra.mxu0 0.0
    %430 = vmatprep.subr.mxu0 0.0
    %431 = vmatpush1.msra.mxu0 0.0
    %432 = vmatprep.subr.mxu0 0.0
    %433 = vmatpush1.msra.mxu0 0.0
    %434 = vmatprep.subr.mxu0 0.0
    %435 = vmatpush1.msra.mxu0 0.0
    %436 = vmatprep.subr.mxu0 0.0
    %437 = vmatpush1.msra.mxu0 0.0
    %438 = vmatprep.subr.mxu0 0.0
    %439 = vmatpush1.msra.mxu0 0.0
    %440 = vmatprep.subr.mxu0 0.0
    %441 = vmatpush1.msra.mxu0 0.0
    %442 = vmatprep.subr.mxu0 0.0
    %443 = vmatpush1.msra.mxu0 0.0
    %444 = vmatprep.subr.mxu0 0.0
    %445 = vmatpush1.msra.mxu0 %v48
    %446 = vmatprep.subr.mxu0 0.0
    %447 = vmatpush1.msra.mxu0 %v47
    %448 = vmatprep.subr.mxu0 0.0
    %449 = vmatpush1.msra.mxu0 %v46
    %450 = vmatprep.subr.mxu0 0.0
    %451 = vmatpush1.msra.mxu0 %v45
    %452 = vmatprep.subr.mxu0 0.0
    %453 = vmatpush2.msra.mxu0 0.0
    %454 = vmatprep.subr.mxu0 0.0
    %455 = vmatpush2.msra.mxu0 0.0
    %456 = vmatprep.subr.mxu0 0.0
    %457 = vmatpush2.msra.mxu0 0.0
    %458 = vmatprep.subr.mxu0 0.0
    %459 = vmatpush2.msra.mxu0 0.0
    %460 = vmatprep.subr.mxu0 0.0
    %461 = vmatpush2.msra.mxu0 0.0
    %462 = vmatprep.subr.mxu0 0.0
    %463 = vmatpush2.msra.mxu0 0.0
    %464 = vmatprep.subr.mxu0 0.0
    %465 = vmatpush2.msra.mxu0 0.0
    %466 = vmatprep.subr.mxu0 0.0
    %467 = vmatpush2.msra.mxu0 0.0
    %468 = vmatprep.subr.mxu0 0.0
    %469 = vmatpush2.msra.mxu0 0.0
    %470 = vmatprep.subr.mxu0 0.0
    %471 = vmatpush2.msra.mxu0 0.0
    %472 = vmatprep.subr.mxu0 0.0
    %473 = vmatpush2.msra.mxu0 0.0
    %474 = vmatprep.subr.mxu0 0.0
    %475 = vmatpush2.msra.mxu0 0.0
    %476 = vmatprep.subr.mxu0 0.0
    %477 = vmatpush2.msra.mxu0 0.0
    %478 = vmatprep.subr.mxu0 0.0
    %479 = vmatpush2.msra.mxu0 0.0
    %480 = vmatprep.subr.mxu0 0.0
    %481 = vmatpush2.msra.mxu0 0.0
    %482 = vmatprep.subr.mxu0 0.0
    %483 = vmatpush2.msra.mxu0 0.0
    %484 = vmatprep.mubr.f32.mxu0 0.0
    %485 = vmatmul.mubr.f32.gmra.mxu0 %v418
    %v486 = vpop.f32.mrf.mxu0
    %v487 = vadd.f32 %v116, %v486
    %v488 = vpop.f32.mrf.mxu0
    %489 = vdwg.mxu0
    %490 = vmatprep.subr.mxu0 0.0
    %491 = vmatpush1.msra.mxu0 0.0
    %492 = vmatprep.subr.mxu0 0.0
    %493 = vmatpush1.msra.mxu0 0.0
    %494 = vmatprep.subr.mxu0 0.0
    %495 = vmatpush1.msra.mxu0 0.0
    %496 = vmatprep.subr.mxu0 0.0
    %497 = vmatpush1.msra.mxu0 0.0
    %498 = vmatprep.subr.mxu0 0.0
    %499 = vmatpush1.msra.mxu0 0.0
    %500 = vmatprep.subr.mxu0 0.0
    %501 = vmatpush1.msra.mxu0 0.0
    %502 = vmatprep.subr.mxu0 0.0
    %503 = vmatpush1.msra.mxu0 0.0
    %504 = vmatprep.subr.mxu0 0.0
    %505 = vmatpush1.msra.mxu0 0.0
    %506 = vmatprep.subr.mxu0 0.0
    %507 = vmatpush1.msra.mxu0 0.0
    %508 = vmatprep.subr.mxu0 0.0
    %509 = vmatpush1.msra.mxu0 0.0
    %510 = vmatprep.subr.mxu0 0.0
    %511 = vmatpush1.msra.mxu0 0.0
    %512 = vmatprep.subr.mxu0 0.0
    %513 = vmatpush1.msra.mxu0 0.0
    %514 = vmatprep.subr.mxu0 0.0
    %515 = vmatpush1.msra.mxu0 %v52
    %516 = vmatprep.subr.mxu0 0.0
    %517 = vmatpush1.msra.mxu0 %v51
    %518 = vmatprep.subr.mxu0 0.0
    %519 = vmatpush1.msra.mxu0 %v50
    %520 = vmatprep.subr.mxu0 0.0
    %521 = vmatpush1.msra.mxu0 %v49
    %522 = vmatprep.subr.mxu0 0.0
    %523 = vmatpush2.msra.mxu0 0.0
    %524 = vmatprep.subr.mxu0 0.0
    %525 = vmatpush2.msra.mxu0 0.0
    %526 = vmatprep.subr.mxu0 0.0
    %527 = vmatpush2.msra.mxu0 0.0
    %528 = vmatprep.subr.mxu0 0.0
    %529 = vmatpush2.msra.mxu0 0.0
    %530 = vmatprep.subr.mxu0 0.0
    %531 = vmatpush2.msra.mxu0 0.0
    %532 = vmatprep.subr.mxu0 0.0
    %533 = vmatpush2.msra.mxu0 0.0
    %534 = vmatprep.subr.mxu0 0.0
    %535 = vmatpush2.msra.mxu0 0.0
    %536 = vmatprep.subr.mxu0 0.0
    %537 = vmatpush2.msra.mxu0 0.0
    %538 = vmatprep.subr.mxu0 0.0
    %539 = vmatpush2.msra.mxu0 0.0
    %540 = vmatprep.subr.mxu0 0.0
    %541 = vmatpush2.msra.mxu0 0.0
    %542 = vmatprep.subr.mxu0 0.0
    %543 = vmatpush2.msra.mxu0 0.0
    %544 = vmatprep.subr.mxu0 0.0
    %545 = vmatpush2.msra.mxu0 0.0
    %546 = vmatprep.subr.mxu0 0.0
    %547 = vmatpush2.msra.mxu0 0.0
    %548 = vmatprep.subr.mxu0 0.0
    %549 = vmatpush2.msra.mxu0 0.0
    %550 = vmatprep.subr.mxu0 0.0
    %551 = vmatpush2.msra.mxu0 0.0
    %552 = vmatprep.subr.mxu0 0.0
    %553 = vmatpush2.msra.mxu0 0.0
    %554 = vmatprep.mubr.f32.mxu0 0.0
    %555 = vmatmul.mubr.f32.gmra.mxu0 %v418
    %v556 = vpop.f32.mrf.mxu0
    %v557 = vadd.f32 %v120, %v556
    %v558 = vpop.f32.mrf.mxu0
    %559 = vdwg.mxu0
    %560 = vmatprep.subr.mxu0 0.0
    %561 = vmatpush1.msra.mxu0 0.0
    %562 = vmatprep.subr.mxu0 0.0
    %563 = vmatpush1.msra.mxu0 0.0
    %564 = vmatprep.subr.mxu0 0.0
    %565 = vmatpush1.msra.mxu0 0.0
    %566 = vmatprep.subr.mxu0 0.0
    %567 = vmatpush1.msra.mxu0 0.0
    %568 = vmatprep.subr.mxu0 0.0
    %569 = vmatpush1.msra.mxu0 0.0
    %570 = vmatprep.subr.mxu0 0.0
    %571 = vmatpush1.msra.mxu0 0.0
    %572 = vmatprep.subr.mxu0 0.0
    %573 = vmatpush1.msra.mxu0 0.0
    %574 = vmatprep.subr.mxu0 0.0
    %575 = vmatpush1.msra.mxu0 0.0
    %576 = vmatprep.subr.mxu0 0.0
    %577 = vmatpush1.msra.mxu0 0.0
    %578 = vmatprep.subr.mxu0 0.0
    %579 = vmatpush1.msra.mxu0 0.0
    %580 = vmatprep.subr.mxu0 0.0
    %581 = vmatpush1.msra.mxu0 0.0
    %582 = vmatprep.subr.mxu0 0.0
    %583 = vmatpush1.msra.mxu0 0.0
    %584 = vmatprep.subr.mxu0 0.0
    %585 = vmatpush1.msra.mxu0 %v56
    %586 = vmatprep.subr.mxu0 0.0
    %587 = vmatpush1.msra.mxu0 %v55
    %588 = vmatprep.subr.mxu0 0.0
    %589 = vmatpush1.msra.mxu0 %v54
    %590 = vmatprep.subr.mxu0 0.0
    %591 = vmatpush1.msra.mxu0 %v53
    %592 = vmatprep.subr.mxu0 0.0
    %593 = vmatpush2.msra.mxu0 0.0
    %594 = vmatprep.subr.mxu0 0.0
    %595 = vmatpush2.msra.mxu0 0.0
    %596 = vmatprep.subr.mxu0 0.0
    %597 = vmatpush2.msra.mxu0 0.0
    %598 = vmatprep.subr.mxu0 0.0
    %599 = vmatpush2.msra.mxu0 0.0
    %600 = vmatprep.subr.mxu0 0.0
    %601 = vmatpush2.msra.mxu0 0.0
    %602 = vmatprep.subr.mxu0 0.0
    %603 = vmatpush2.msra.mxu0 0.0
    %604 = vmatprep.subr.mxu0 0.0
    %605 = vmatpush2.msra.mxu0 0.0
    %606 = vmatprep.subr.mxu0 0.0
    %607 = vmatpush2.msra.mxu0 0.0
    %608 = vmatprep.subr.mxu0 0.0
    %609 = vmatpush2.msra.mxu0 0.0
    %610 = vmatprep.subr.mxu0 0.0
    %611 = vmatpush2.msra.mxu0 0.0
    %612 = vmatprep.subr.mxu0 0.0
    %613 = vmatpush2.msra.mxu0 0.0
    %614 = vmatprep.subr.mxu0 0.0
    %615 = vmatpush2.msra.mxu0 0.0
    %616 = vmatprep.subr.mxu0 0.0
    %617 = vmatpush2.msra.mxu0 0.0
    %618 = vmatprep.subr.mxu0 0.0
    %619 = vmatpush2.msra.mxu0 0.0
    %620 = vmatprep.subr.mxu0 0.0
    %621 = vmatpush2.msra.mxu0 0.0
    %622 = vmatprep.subr.mxu0 0.0
    %623 = vmatpush2.msra.mxu0 0.0
    %624 = vmatprep.mubr.f32.mxu0 0.0
    %625 = vmatmul.mubr.f32.gmra.mxu0 %v418
    %v626 = vpop.f32.mrf.mxu0
    %v627 = vadd.f32 %v124, %v626
    %v628 = vpop.f32.mrf.mxu0
    %629 = vdwg.mxu0
    %630 = vmatprep.subr.mxu0 0.0
    %631 = vmatpush1.msra.mxu0 0.0
    %632 = vmatprep.subr.mxu0 0.0
    %633 = vmatpush1.msra.mxu0 0.0
    %634 = vmatprep.subr.mxu0 0.0
    %635 = vmatpush1.msra.mxu0 0.0
    %636 = vmatprep.subr.mxu0 0.0
    %637 = vmatpush1.msra.mxu0 0.0
    %638 = vmatprep.subr.mxu0 0.0
    %639 = vmatpush1.msra.mxu0 0.0
    %640 = vmatprep.subr.mxu0 0.0
    %641 = vmatpush1.msra.mxu0 0.0
    %642 = vmatprep.subr.mxu0 0.0
    %643 = vmatpush1.msra.mxu0 0.0
    %644 = vmatprep.subr.mxu0 0.0
    %645 = vmatpush1.msra.mxu0 0.0
    %646 = vmatprep.subr.mxu0 0.0
    %647 = vmatpush1.msra.mxu0 0.0
    %648 = vmatprep.subr.mxu0 0.0
    %649 = vmatpush1.msra.mxu0 0.0
    %650 = vmatprep.subr.mxu0 0.0
    %651 = vmatpush1.msra.mxu0 0.0
    %652 = vmatprep.subr.mxu0 0.0
    %653 = vmatpush1.msra.mxu0 0.0
    %654 = vmatprep.subr.mxu0 0.0
    %655 = vmatpush1.msra.mxu0 %v60
    %656 = vmatprep.subr.mxu0 0.0
    %657 = vmatpush1.msra.mxu0 %v59
    %658 = vmatprep.subr.mxu0 0.0
    %659 = vmatpush1.msra.mxu0 %v58
    %660 = vmatprep.subr.mxu0 0.0
    %661 = vmatpush1.msra.mxu0 %v57
    %662 = vmatprep.subr.mxu0 0.0
    %663 = vmatpush2.msra.mxu0 0.0
    %664 = vmatprep.subr.mxu0 0.0
    %665 = vmatpush2.msra.mxu0 0.0
    %666 = vmatprep.subr.mxu0 0.0
    %667 = vmatpush2.msra.mxu0 0.0
    %668 = vmatprep.subr.mxu0 0.0
    %669 = vmatpush2.msra.mxu0 0.0
    %670 = vmatprep.subr.mxu0 0.0
    %671 = vmatpush2.msra.mxu0 0.0
    %672 = vmatprep.subr.mxu0 0.0
    %673 = vmatpush2.msra.mxu0 0.0
    %674 = vmatprep.subr.mxu0 0.0
    %675 = vmatpush2.msra.mxu0 0.0
    %676 = vmatprep.subr.mxu0 0.0
    %677 = vmatpush2.msra.mxu0 0.0
    %678 = vmatprep.subr.mxu0 0.0
    %679 = vmatpush2.msra.mxu0 0.0
    %680 = vmatprep.subr.mxu0 0.0
    %681 = vmatpush2.msra.mxu0 0.0
    %682 = vmatprep.subr.mxu0 0.0
    %683 = vmatpush2.msra.mxu0 0.0
    %684 = vmatprep.subr.mxu0 0.0
    %685 = vmatpush2.msra.mxu0 0.0
    %686 = vmatprep.subr.mxu0 0.0
    %687 = vmatpush2.msra.mxu0 0.0
    %688 = vmatprep.subr.mxu0 0.0
    %689 = vmatpush2.msra.mxu0 0.0
    %690 = vmatprep.subr.mxu0 0.0
    %691 = vmatpush2.msra.mxu0 0.0
    %692 = vmatprep.subr.mxu0 0.0
    %693 = vmatpush2.msra.mxu0 0.0
    %694 = vmatprep.mubr.f32.mxu0 0.0
    %695 = vmatmul.mubr.f32.gmra.mxu0 %v418
    %v696 = vpop.f32.mrf.mxu0
    %v697 = vadd.f32 %v128, %v696
    %v698 = vpop.f32.mrf.mxu0
    %699 = vdwg.mxu0
    %v704 = vlaneseq
    %v705 = vshrl.u32 %v704, 7
    %v706 = vsub.s32 0, %v705
    %v707 = vrot.slane %v101, %v706
    %v708 = vlaneseq
    %v709 = vshrl.u32 %v708, 7
    %v710 = vsub.s32 0, %v709
    %v711 = vrot.slane %v102, %v710
    %v712 = vlaneseq
    %v713 = vshrl.u32 %v712, 7
    %v714 = vsub.s32 0, %v713
    %v715 = vrot.slane %v103, %v714
    %v716 = vlaneseq
    %v717 = vshrl.u32 %v716, 7
    %v718 = vsub.s32 0, %v717
    %v719 = vrot.slane %v104, %v718
    %v725 = vsel %vm133, %v41, 0
    %727 = vmatprep.subr.mxu0 0.0
    %728 = vmatpush1.msra.mxu0 0.0
    %729 = vmatprep.subr.mxu0 0.0
    %730 = vmatpush1.msra.mxu0 0.0
    %731 = vmatprep.subr.mxu0 0.0
    %732 = vmatpush1.msra.mxu0 0.0
    %733 = vmatprep.subr.mxu0 0.0
    %734 = vmatpush1.msra.mxu0 0.0
    %735 = vmatprep.subr.mxu0 0.0
    %736 = vmatpush1.msra.mxu0 0.0
    %737 = vmatprep.subr.mxu0 0.0
    %738 = vmatpush1.msra.mxu0 0.0
    %739 = vmatprep.subr.mxu0 0.0
    %740 = vmatpush1.msra.mxu0 0.0
    %741 = vmatprep.subr.mxu0 0.0
    %742 = vmatpush1.msra.mxu0 0.0
    %743 = vmatprep.subr.mxu0 0.0
    %744 = vmatpush1.msra.mxu0 0.0
    %745 = vmatprep.subr.mxu0 0.0
    %746 = vmatpush1.msra.mxu0 0.0
    %747 = vmatprep.subr.mxu0 0.0
    %748 = vmatpush1.msra.mxu0 0.0
    %749 = vmatprep.subr.mxu0 0.0
    %750 = vmatpush1.msra.mxu0 0.0
    %751 = vmatprep.subr.mxu0 0.0
    %752 = vmatpush1.msra.mxu0 %v64
    %753 = vmatprep.subr.mxu0 0.0
    %754 = vmatpush1.msra.mxu0 %v63
    %755 = vmatprep.subr.mxu0 0.0
    %756 = vmatpush1.msra.mxu0 %v62
    %757 = vmatprep.subr.mxu0 0.0
    %758 = vmatpush1.msra.mxu0 %v61
    %759 = vmatprep.subr.mxu0 0.0
    %760 = vmatpush2.msra.mxu0 0.0
    %761 = vmatprep.subr.mxu0 0.0
    %762 = vmatpush2.msra.mxu0 0.0
    %763 = vmatprep.subr.mxu0 0.0
    %764 = vmatpush2.msra.mxu0 0.0
    %765 = vmatprep.subr.mxu0 0.0
    %766 = vmatpush2.msra.mxu0 0.0
    %767 = vmatprep.subr.mxu0 0.0
    %768 = vmatpush2.msra.mxu0 0.0
    %769 = vmatprep.subr.mxu0 0.0
    %770 = vmatpush2.msra.mxu0 0.0
    %771 = vmatprep.subr.mxu0 0.0
    %772 = vmatpush2.msra.mxu0 0.0
    %773 = vmatprep.subr.mxu0 0.0
    %774 = vmatpush2.msra.mxu0 0.0
    %775 = vmatprep.subr.mxu0 0.0
    %776 = vmatpush2.msra.mxu0 0.0
    %777 = vmatprep.subr.mxu0 0.0
    %778 = vmatpush2.msra.mxu0 0.0
    %779 = vmatprep.subr.mxu0 0.0
    %780 = vmatpush2.msra.mxu0 0.0
    %781 = vmatprep.subr.mxu0 0.0
    %782 = vmatpush2.msra.mxu0 0.0
    %783 = vmatprep.subr.mxu0 0.0
    %784 = vmatpush2.msra.mxu0 0.0
    %785 = vmatprep.subr.mxu0 0.0
    %786 = vmatpush2.msra.mxu0 0.0
    %787 = vmatprep.subr.mxu0 0.0
    %788 = vmatpush2.msra.mxu0 0.0
    %789 = vmatprep.subr.mxu0 0.0
    %790 = vmatpush2.msra.mxu0 0.0
    %791 = vmatprep.mubr.f32.mxu0 0.0
    %792 = vmatmul.mubr.f32.gmra.mxu0 %v725
    %v793 = vpop.f32.mrf.mxu0
    %v794 = vadd.f32 %v707, %v793
    %v795 = vpop.f32.mrf.mxu0
    %796 = vdwg.mxu0
    %797 = vmatprep.subr.mxu0 0.0
    %798 = vmatpush1.msra.mxu0 0.0
    %799 = vmatprep.subr.mxu0 0.0
    %800 = vmatpush1.msra.mxu0 0.0
    %801 = vmatprep.subr.mxu0 0.0
    %802 = vmatpush1.msra.mxu0 0.0
    %803 = vmatprep.subr.mxu0 0.0
    %804 = vmatpush1.msra.mxu0 0.0
    %805 = vmatprep.subr.mxu0 0.0
    %806 = vmatpush1.msra.mxu0 0.0
    %807 = vmatprep.subr.mxu0 0.0
    %808 = vmatpush1.msra.mxu0 0.0
    %809 = vmatprep.subr.mxu0 0.0
    %810 = vmatpush1.msra.mxu0 0.0
    %811 = vmatprep.subr.mxu0 0.0
    %812 = vmatpush1.msra.mxu0 0.0
    %813 = vmatprep.subr.mxu0 0.0
    %814 = vmatpush1.msra.mxu0 0.0
    %815 = vmatprep.subr.mxu0 0.0
    %816 = vmatpush1.msra.mxu0 0.0
    %817 = vmatprep.subr.mxu0 0.0
    %818 = vmatpush1.msra.mxu0 0.0
    %819 = vmatprep.subr.mxu0 0.0
    %820 = vmatpush1.msra.mxu0 0.0
    %821 = vmatprep.subr.mxu0 0.0
    %822 = vmatpush1.msra.mxu0 %v68
    %823 = vmatprep.subr.mxu0 0.0
    %824 = vmatpush1.msra.mxu0 %v67
    %825 = vmatprep.subr.mxu0 0.0
    %826 = vmatpush1.msra.mxu0 %v66
    %827 = vmatprep.subr.mxu0 0.0
    %828 = vmatpush1.msra.mxu0 %v65
    %829 = vmatprep.subr.mxu0 0.0
    %830 = vmatpush2.msra.mxu0 0.0
    %831 = vmatprep.subr.mxu0 0.0
    %832 = vmatpush2.msra.mxu0 0.0
    %833 = vmatprep.subr.mxu0 0.0
    %834 = vmatpush2.msra.mxu0 0.0
    %835 = vmatprep.subr.mxu0 0.0
    %836 = vmatpush2.msra.mxu0 0.0
    %837 = vmatprep.subr.mxu0 0.0
    %838 = vmatpush2.msra.mxu0 0.0
    %839 = vmatprep.subr.mxu0 0.0
    %840 = vmatpush2.msra.mxu0 0.0
    %841 = vmatprep.subr.mxu0 0.0
    %842 = vmatpush2.msra.mxu0 0.0
    %843 = vmatprep.subr.mxu0 0.0
    %844 = vmatpush2.msra.mxu0 0.0
    %845 = vmatprep.subr.mxu0 0.0
    %846 = vmatpush2.msra.mxu0 0.0
    %847 = vmatprep.subr.mxu0 0.0
    %848 = vmatpush2.msra.mxu0 0.0
    %849 = vmatprep.subr.mxu0 0.0
    %850 = vmatpush2.msra.mxu0 0.0
    %851 = vmatprep.subr.mxu0 0.0
    %852 = vmatpush2.msra.mxu0 0.0
    %853 = vmatprep.subr.mxu0 0.0
    %854 = vmatpush2.msra.mxu0 0.0
    %855 = vmatprep.subr.mxu0 0.0
    %856 = vmatpush2.msra.mxu0 0.0
    %857 = vmatprep.subr.mxu0 0.0
    %858 = vmatpush2.msra.mxu0 0.0
    %859 = vmatprep.subr.mxu0 0.0
    %860 = vmatpush2.msra.mxu0 0.0
    %861 = vmatprep.mubr.f32.mxu0 0.0
    %862 = vmatmul.mubr.f32.gmra.mxu0 %v725
    %v863 = vpop.f32.mrf.mxu0
    %v864 = vadd.f32 %v711, %v863
    %v865 = vpop.f32.mrf.mxu0
    %866 = vdwg.mxu0
    %867 = vmatprep.subr.mxu0 0.0
    %868 = vmatpush1.msra.mxu0 0.0
    %869 = vmatprep.subr.mxu0 0.0
    %870 = vmatpush1.msra.mxu0 0.0
    %871 = vmatprep.subr.mxu0 0.0
    %872 = vmatpush1.msra.mxu0 0.0
    %873 = vmatprep.subr.mxu0 0.0
    %874 = vmatpush1.msra.mxu0 0.0
    %875 = vmatprep.subr.mxu0 0.0
    %876 = vmatpush1.msra.mxu0 0.0
    %877 = vmatprep.subr.mxu0 0.0
    %878 = vmatpush1.msra.mxu0 0.0
    %879 = vmatprep.subr.mxu0 0.0
    %880 = vmatpush1.msra.mxu0 0.0
    %881 = vmatprep.subr.mxu0 0.0
    %882 = vmatpush1.msra.mxu0 0.0
    %883 = vmatprep.subr.mxu0 0.0
    %884 = vmatpush1.msra.mxu0 0.0
    %885 = vmatprep.subr.mxu0 0.0
    %886 = vmatpush1.msra.mxu0 0.0
    %887 = vmatprep.subr.mxu0 0.0
    %888 = vmatpush1.msra.mxu0 0.0
    %889 = vmatprep.subr.mxu0 0.0
    %890 = vmatpush1.msra.mxu0 0.0
    %891 = vmatprep.subr.mxu0 0.0
    %892 = vmatpush1.msra.mxu0 %v72
    %893 = vmatprep.subr.mxu0 0.0
    %894 = vmatpush1.msra.mxu0 %v71
    %895 = vmatprep.subr.mxu0 0.0
    %896 = vmatpush1.msra.mxu0 %v70
    %897 = vmatprep.subr.mxu0 0.0
    %898 = vmatpush1.msra.mxu0 %v69
    %899 = vmatprep.subr.mxu0 0.0
    %900 = vmatpush2.msra.mxu0 0.0
    %901 = vmatprep.subr.mxu0 0.0
    %902 = vmatpush2.msra.mxu0 0.0
    %903 = vmatprep.subr.mxu0 0.0
    %904 = vmatpush2.msra.mxu0 0.0
    %905 = vmatprep.subr.mxu0 0.0
    %906 = vmatpush2.msra.mxu0 0.0
    %907 = vmatprep.subr.mxu0 0.0
    %908 = vmatpush2.msra.mxu0 0.0
    %909 = vmatprep.subr.mxu0 0.0
    %910 = vmatpush2.msra.mxu0 0.0
    %911 = vmatprep.subr.mxu0 0.0
    %912 = vmatpush2.msra.mxu0 0.0
    %913 = vmatprep.subr.mxu0 0.0
    %914 = vmatpush2.msra.mxu0 0.0
    %915 = vmatprep.subr.mxu0 0.0
    %916 = vmatpush2.msra.mxu0 0.0
    %917 = vmatprep.subr.mxu0 0.0
    %918 = vmatpush2.msra.mxu0 0.0
    %919 = vmatprep.subr.mxu0 0.0
    %920 = vmatpush2.msra.mxu0 0.0
    %921 = vmatprep.subr.mxu0 0.0
    %922 = vmatpush2.msra.mxu0 0.0
    %923 = vmatprep.subr.mxu0 0.0
    %924 = vmatpush2.msra.mxu0 0.0
    %925 = vmatprep.subr.mxu0 0.0
    %926 = vmatpush2.msra.mxu0 0.0
    %927 = vmatprep.subr.mxu0 0.0
    %928 = vmatpush2.msra.mxu0 0.0
    %929 = vmatprep.subr.mxu0 0.0
    %930 = vmatpush2.msra.mxu0 0.0
    %931 = vmatprep.mubr.f32.mxu0 0.0
    %932 = vmatmul.mubr.f32.gmra.mxu0 %v725
    %v933 = vpop.f32.mrf.mxu0
    %v934 = vadd.f32 %v715, %v933
    %v935 = vpop.f32.mrf.mxu0
    %936 = vdwg.mxu0
    %937 = vmatprep.subr.mxu0 0.0
    %938 = vmatpush1.msra.mxu0 0.0
    %939 = vmatprep.subr.mxu0 0.0
    %940 = vmatpush1.msra.mxu0 0.0
    %941 = vmatprep.subr.mxu0 0.0
    %942 = vmatpush1.msra.mxu0 0.0
    %943 = vmatprep.subr.mxu0 0.0
    %944 = vmatpush1.msra.mxu0 0.0
    %945 = vmatprep.subr.mxu0 0.0
    %946 = vmatpush1.msra.mxu0 0.0
    %947 = vmatprep.subr.mxu0 0.0
    %948 = vmatpush1.msra.mxu0 0.0
    %949 = vmatprep.subr.mxu0 0.0
    %950 = vmatpush1.msra.mxu0 0.0
    %951 = vmatprep.subr.mxu0 0.0
    %952 = vmatpush1.msra.mxu0 0.0
    %953 = vmatprep.subr.mxu0 0.0
    %954 = vmatpush1.msra.mxu0 0.0
    %955 = vmatprep.subr.mxu0 0.0
    %956 = vmatpush1.msra.mxu0 0.0
    %957 = vmatprep.subr.mxu0 0.0
    %958 = vmatpush1.msra.mxu0 0.0
    %959 = vmatprep.subr.mxu0 0.0
    %960 = vmatpush1.msra.mxu0 0.0
    %961 = vmatprep.subr.mxu0 0.0
    %962 = vmatpush1.msra.mxu0 %v76
    %963 = vmatprep.subr.mxu0 0.0
    %964 = vmatpush1.msra.mxu0 %v75
    %965 = vmatprep.subr.mxu0 0.0
    %966 = vmatpush1.msra.mxu0 %v74
    %967 = vmatprep.subr.mxu0 0.0
    %968 = vmatpush1.msra.mxu0 %v73
    %969 = vmatprep.subr.mxu0 0.0
    %970 = vmatpush2.msra.mxu0 0.0
    %971 = vmatprep.subr.mxu0 0.0
    %972 = vmatpush2.msra.mxu0 0.0
    %973 = vmatprep.subr.mxu0 0.0
    %974 = vmatpush2.msra.mxu0 0.0
    %975 = vmatprep.subr.mxu0 0.0
    %976 = vmatpush2.msra.mxu0 0.0
    %977 = vmatprep.subr.mxu0 0.0
    %978 = vmatpush2.msra.mxu0 0.0
    %979 = vmatprep.subr.mxu0 0.0
    %980 = vmatpush2.msra.mxu0 0.0
    %981 = vmatprep.subr.mxu0 0.0
    %982 = vmatpush2.msra.mxu0 0.0
    %983 = vmatprep.subr.mxu0 0.0
    %984 = vmatpush2.msra.mxu0 0.0
    %985 = vmatprep.subr.mxu0 0.0
    %986 = vmatpush2.msra.mxu0 0.0
    %987 = vmatprep.subr.mxu0 0.0
    %988 = vmatpush2.msra.mxu0 0.0
    %989 = vmatprep.subr.mxu0 0.0
    %990 = vmatpush2.msra.mxu0 0.0
    %991 = vmatprep.subr.mxu0 0.0
    %992 = vmatpush2.msra.mxu0 0.0
    %993 = vmatprep.subr.mxu0 0.0
    %994 = vmatpush2.msra.mxu0 0.0
    %995 = vmatprep.subr.mxu0 0.0
    %996 = vmatpush2.msra.mxu0 0.0
    %997 = vmatprep.subr.mxu0 0.0
    %998 = vmatpush2.msra.mxu0 0.0
    %999 = vmatprep.subr.mxu0 0.0
    %1000 = vmatpush2.msra.mxu0 0.0
    %1001 = vmatprep.mubr.f32.mxu0 0.0
    %1002 = vmatmul.mubr.f32.gmra.mxu0 %v725
    %v1003 = vpop.f32.mrf.mxu0
    %v1004 = vadd.f32 %v719, %v1003
    %v1005 = vpop.f32.mrf.mxu0
    %1006 = vdwg.mxu0
    %v1008 = vsel %vm133, %v42, 0
    %1010 = vmatprep.subr.mxu0 0.0
    %1011 = vmatpush1.msra.mxu0 0.0
    %1012 = vmatprep.subr.mxu0 0.0
    %1013 = vmatpush1.msra.mxu0 0.0
    %1014 = vmatprep.subr.mxu0 0.0
    %1015 = vmatpush1.msra.mxu0 0.0
    %1016 = vmatprep.subr.mxu0 0.0
    %1017 = vmatpush1.msra.mxu0 0.0
    %1018 = vmatprep.subr.mxu0 0.0
    %1019 = vmatpush1.msra.mxu0 0.0
    %1020 = vmatprep.subr.mxu0 0.0
    %1021 = vmatpush1.msra.mxu0 0.0
    %1022 = vmatprep.subr.mxu0 0.0
    %1023 = vmatpush1.msra.mxu0 0.0
    %1024 = vmatprep.subr.mxu0 0.0
    %1025 = vmatpush1.msra.mxu0 0.0
    %1026 = vmatprep.subr.mxu0 0.0
    %1027 = vmatpush1.msra.mxu0 0.0
    %1028 = vmatprep.subr.mxu0 0.0
    %1029 = vmatpush1.msra.mxu0 0.0
    %1030 = vmatprep.subr.mxu0 0.0
    %1031 = vmatpush1.msra.mxu0 0.0
    %1032 = vmatprep.subr.mxu0 0.0
    %1033 = vmatpush1.msra.mxu0 0.0
    %1034 = vmatprep.subr.mxu0 0.0
    %1035 = vmatpush1.msra.mxu0 %v64
    %1036 = vmatprep.subr.mxu0 0.0
    %1037 = vmatpush1.msra.mxu0 %v63
    %1038 = vmatprep.subr.mxu0 0.0
    %1039 = vmatpush1.msra.mxu0 %v62
    %1040 = vmatprep.subr.mxu0 0.0
    %1041 = vmatpush1.msra.mxu0 %v61
    %1042 = vmatprep.subr.mxu0 0.0
    %1043 = vmatpush2.msra.mxu0 0.0
    %1044 = vmatprep.subr.mxu0 0.0
    %1045 = vmatpush2.msra.mxu0 0.0
    %1046 = vmatprep.subr.mxu0 0.0
    %1047 = vmatpush2.msra.mxu0 0.0
    %1048 = vmatprep.subr.mxu0 0.0
    %1049 = vmatpush2.msra.mxu0 0.0
    %1050 = vmatprep.subr.mxu0 0.0
    %1051 = vmatpush2.msra.mxu0 0.0
    %1052 = vmatprep.subr.mxu0 0.0
    %1053 = vmatpush2.msra.mxu0 0.0
    %1054 = vmatprep.subr.mxu0 0.0
    %1055 = vmatpush2.msra.mxu0 0.0
    %1056 = vmatprep.subr.mxu0 0.0
    %1057 = vmatpush2.msra.mxu0 0.0
    %1058 = vmatprep.subr.mxu0 0.0
    %1059 = vmatpush2.msra.mxu0 0.0
    %1060 = vmatprep.subr.mxu0 0.0
    %1061 = vmatpush2.msra.mxu0 0.0
    %1062 = vmatprep.subr.mxu0 0.0
    %1063 = vmatpush2.msra.mxu0 0.0
    %1064 = vmatprep.subr.mxu0 0.0
    %1065 = vmatpush2.msra.mxu0 0.0
    %1066 = vmatprep.subr.mxu0 0.0
    %1067 = vmatpush2.msra.mxu0 0.0
    %1068 = vmatprep.subr.mxu0 0.0
    %1069 = vmatpush2.msra.mxu0 0.0
    %1070 = vmatprep.subr.mxu0 0.0
    %1071 = vmatpush2.msra.mxu0 0.0
    %1072 = vmatprep.subr.mxu0 0.0
    %1073 = vmatpush2.msra.mxu0 0.0
    %1074 = vmatprep.mubr.f32.mxu0 0.0
    %1075 = vmatmul.mubr.f32.gmra.mxu0 %v1008
    %v1076 = vpop.f32.mrf.mxu0
    %v1077 = vadd.f32 %v707, %v1076
    %v1078 = vpop.f32.mrf.mxu0
    %1079 = vdwg.mxu0
    %1080 = vmatprep.subr.mxu0 0.0
    %1081 = vmatpush1.msra.mxu0 0.0
    %1082 = vmatprep.subr.mxu0 0.0
    %1083 = vmatpush1.msra.mxu0 0.0
    %1084 = vmatprep.subr.mxu0 0.0
    %1085 = vmatpush1.msra.mxu0 0.0
    %1086 = vmatprep.subr.mxu0 0.0
    %1087 = vmatpush1.msra.mxu0 0.0
    %1088 = vmatprep.subr.mxu0 0.0
    %1089 = vmatpush1.msra.mxu0 0.0
    %1090 = vmatprep.subr.mxu0 0.0
    %1091 = vmatpush1.msra.mxu0 0.0
    %1092 = vmatprep.subr.mxu0 0.0
    %1093 = vmatpush1.msra.mxu0 0.0
    %1094 = vmatprep.subr.mxu0 0.0
    %1095 = vmatpush1.msra.mxu0 0.0
    %1096 = vmatprep.subr.mxu0 0.0
    %1097 = vmatpush1.msra.mxu0 0.0
    %1098 = vmatprep.subr.mxu0 0.0
    %1099 = vmatpush1.msra.mxu0 0.0
    %1100 = vmatprep.subr.mxu0 0.0
    %1101 = vmatpush1.msra.mxu0 0.0
    %1102 = vmatprep.subr.mxu0 0.0
    %1103 = vmatpush1.msra.mxu0 0.0
    %1104 = vmatprep.subr.mxu0 0.0
    %1105 = vmatpush1.msra.mxu0 %v68
    %1106 = vmatprep.subr.mxu0 0.0
    %1107 = vmatpush1.msra.mxu0 %v67
    %1108 = vmatprep.subr.mxu0 0.0
    %1109 = vmatpush1.msra.mxu0 %v66
    %1110 = vmatprep.subr.mxu0 0.0
    %1111 = vmatpush1.msra.mxu0 %v65
    %1112 = vmatprep.subr.mxu0 0.0
    %1113 = vmatpush2.msra.mxu0 0.0
    %1114 = vmatprep.subr.mxu0 0.0
    %1115 = vmatpush2.msra.mxu0 0.0
    %1116 = vmatprep.subr.mxu0 0.0
    %1117 = vmatpush2.msra.mxu0 0.0
    %1118 = vmatprep.subr.mxu0 0.0
    %1119 = vmatpush2.msra.mxu0 0.0
    %1120 = vmatprep.subr.mxu0 0.0
    %1121 = vmatpush2.msra.mxu0 0.0
    %1122 = vmatprep.subr.mxu0 0.0
    %1123 = vmatpush2.msra.mxu0 0.0
    %1124 = vmatprep.subr.mxu0 0.0
    %1125 = vmatpush2.msra.mxu0 0.0
    %1126 = vmatprep.subr.mxu0 0.0
    %1127 = vmatpush2.msra.mxu0 0.0
    %1128 = vmatprep.subr.mxu0 0.0
    %1129 = vmatpush2.msra.mxu0 0.0
    %1130 = vmatprep.subr.mxu0 0.0
    %1131 = vmatpush2.msra.mxu0 0.0
    %1132 = vmatprep.subr.mxu0 0.0
    %1133 = vmatpush2.msra.mxu0 0.0
    %1134 = vmatprep.subr.mxu0 0.0
    %1135 = vmatpush2.msra.mxu0 0.0
    %1136 = vmatprep.subr.mxu0 0.0
    %1137 = vmatpush2.msra.mxu0 0.0
    %1138 = vmatprep.subr.mxu0 0.0
    %1139 = vmatpush2.msra.mxu0 0.0
    %1140 = vmatprep.subr.mxu0 0.0
    %1141 = vmatpush2.msra.mxu0 0.0
    %1142 = vmatprep.subr.mxu0 0.0
    %1143 = vmatpush2.msra.mxu0 0.0
    %1144 = vmatprep.mubr.f32.mxu0 0.0
    %1145 = vmatmul.mubr.f32.gmra.mxu0 %v1008
    %v1146 = vpop.f32.mrf.mxu0
    %v1147 = vadd.f32 %v711, %v1146
    %v1148 = vpop.f32.mrf.mxu0
    %1149 = vdwg.mxu0
    %1150 = vmatprep.subr.mxu0 0.0
    %1151 = vmatpush1.msra.mxu0 0.0
    %1152 = vmatprep.subr.mxu0 0.0
    %1153 = vmatpush1.msra.mxu0 0.0
    %1154 = vmatprep.subr.mxu0 0.0
    %1155 = vmatpush1.msra.mxu0 0.0
    %1156 = vmatprep.subr.mxu0 0.0
    %1157 = vmatpush1.msra.mxu0 0.0
    %1158 = vmatprep.subr.mxu0 0.0
    %1159 = vmatpush1.msra.mxu0 0.0
    %1160 = vmatprep.subr.mxu0 0.0
    %1161 = vmatpush1.msra.mxu0 0.0
    %1162 = vmatprep.subr.mxu0 0.0
    %1163 = vmatpush1.msra.mxu0 0.0
    %1164 = vmatprep.subr.mxu0 0.0
    %1165 = vmatpush1.msra.mxu0 0.0
    %1166 = vmatprep.subr.mxu0 0.0
    %1167 = vmatpush1.msra.mxu0 0.0
    %1168 = vmatprep.subr.mxu0 0.0
    %1169 = vmatpush1.msra.mxu0 0.0
    %1170 = vmatprep.subr.mxu0 0.0
    %1171 = vmatpush1.msra.mxu0 0.0
    %1172 = vmatprep.subr.mxu0 0.0
    %1173 = vmatpush1.msra.mxu0 0.0
    %1174 = vmatprep.subr.mxu0 0.0
    %1175 = vmatpush1.msra.mxu0 %v72
    %1176 = vmatprep.subr.mxu0 0.0
    %1177 = vmatpush1.msra.mxu0 %v71
    %1178 = vmatprep.subr.mxu0 0.0
    %1179 = vmatpush1.msra.mxu0 %v70
    %1180 = vmatprep.subr.mxu0 0.0
    %1181 = vmatpush1.msra.mxu0 %v69
    %1182 = vmatprep.subr.mxu0 0.0
    %1183 = vmatpush2.msra.mxu0 0.0
    %1184 = vmatprep.subr.mxu0 0.0
    %1185 = vmatpush2.msra.mxu0 0.0
    %1186 = vmatprep.subr.mxu0 0.0
    %1187 = vmatpush2.msra.mxu0 0.0
    %1188 = vmatprep.subr.mxu0 0.0
    %1189 = vmatpush2.msra.mxu0 0.0
    %1190 = vmatprep.subr.mxu0 0.0
    %1191 = vmatpush2.msra.mxu0 0.0
    %1192 = vmatprep.subr.mxu0 0.0
    %1193 = vmatpush2.msra.mxu0 0.0
    %1194 = vmatprep.subr.mxu0 0.0
    %1195 = vmatpush2.msra.mxu0 0.0
    %1196 = vmatprep.subr.mxu0 0.0
    %1197 = vmatpush2.msra.mxu0 0.0
    %1198 = vmatprep.subr.mxu0 0.0
    %1199 = vmatpush2.msra.mxu0 0.0
    %1200 = vmatprep.subr.mxu0 0.0
    %1201 = vmatpush2.msra.mxu0 0.0
    %1202 = vmatprep.subr.mxu0 0.0
    %1203 = vmatpush2.msra.mxu0 0.0
    %1204 = vmatprep.subr.mxu0 0.0
    %1205 = vmatpush2.msra.mxu0 0.0
    %1206 = vmatprep.subr.mxu0 0.0
    %1207 = vmatpush2.msra.mxu0 0.0
    %1208 = vmatprep.subr.mxu0 0.0
    %1209 = vmatpush2.msra.mxu0 0.0
    %1210 = vmatprep.subr.mxu0 0.0
    %1211 = vmatpush2.msra.mxu0 0.0
    %1212 = vmatprep.subr.mxu0 0.0
    %1213 = vmatpush2.msra.mxu0 0.0
    %1214 = vmatprep.mubr.f32.mxu0 0.0
    %1215 = vmatmul.mubr.f32.gmra.mxu0 %v1008
    %v1216 = vpop.f32.mrf.mxu0
    %v1217 = vadd.f32 %v715, %v1216
    %v1218 = vpop.f32.mrf.mxu0
    %1219 = vdwg.mxu0
    %1220 = vmatprep.subr.mxu0 0.0
    %1221 = vmatpush1.msra.mxu0 0.0
    %1222 = vmatprep.subr.mxu0 0.0
    %1223 = vmatpush1.msra.mxu0 0.0
    %1224 = vmatprep.subr.mxu0 0.0
    %1225 = vmatpush1.msra.mxu0 0.0
    %1226 = vmatprep.subr.mxu0 0.0
    %1227 = vmatpush1.msra.mxu0 0.0
    %1228 = vmatprep.subr.mxu0 0.0
    %1229 = vmatpush1.msra.mxu0 0.0
    %1230 = vmatprep.subr.mxu0 0.0
    %1231 = vmatpush1.msra.mxu0 0.0
    %1232 = vmatprep.subr.mxu0 0.0
    %1233 = vmatpush1.msra.mxu0 0.0
    %1234 = vmatprep.subr.mxu0 0.0
    %1235 = vmatpush1.msra.mxu0 0.0
    %1236 = vmatprep.subr.mxu0 0.0
    %1237 = vmatpush1.msra.mxu0 0.0
    %1238 = vmatprep.subr.mxu0 0.0
    %1239 = vmatpush1.msra.mxu0 0.0
    %1240 = vmatprep.subr.mxu0 0.0
    %1241 = vmatpush1.msra.mxu0 0.0
    %1242 = vmatprep.subr.mxu0 0.0
    %1243 = vmatpush1.msra.mxu0 0.0
    %1244 = vmatprep.subr.mxu0 0.0
    %1245 = vmatpush1.msra.mxu0 %v76
    %1246 = vmatprep.subr.mxu0 0.0
    %1247 = vmatpush1.msra.mxu0 %v75
    %1248 = vmatprep.subr.mxu0 0.0
    %1249 = vmatpush1.msra.mxu0 %v74
    %1250 = vmatprep.subr.mxu0 0.0
    %1251 = vmatpush1.msra.mxu0 %v73
    %1252 = vmatprep.subr.mxu0 0.0
    %1253 = vmatpush2.msra.mxu0 0.0
    %1254 = vmatprep.subr.mxu0 0.0
    %1255 = vmatpush2.msra.mxu0 0.0
    %1256 = vmatprep.subr.mxu0 0.0
    %1257 = vmatpush2.msra.mxu0 0.0
    %1258 = vmatprep.subr.mxu0 0.0
    %1259 = vmatpush2.msra.mxu0 0.0
    %1260 = vmatprep.subr.mxu0 0.0
    %1261 = vmatpush2.msra.mxu0 0.0
    %1262 = vmatprep.subr.mxu0 0.0
    %1263 = vmatpush2.msra.mxu0 0.0
    %1264 = vmatprep.subr.mxu0 0.0
    %1265 = vmatpush2.msra.mxu0 0.0
    %1266 = vmatprep.subr.mxu0 0.0
    %1267 = vmatpush2.msra.mxu0 0.0
    %1268 = vmatprep.subr.mxu0 0.0
    %1269 = vmatpush2.msra.mxu0 0.0
    %1270 = vmatprep.subr.mxu0 0.0
    %1271 = vmatpush2.msra.mxu0 0.0
    %1272 = vmatprep.subr.mxu0 0.0
    %1273 = vmatpush2.msra.mxu0 0.0
    %1274 = vmatprep.subr.mxu0 0.0
    %1275 = vmatpush2.msra.mxu0 0.0
    %1276 = vmatprep.subr.mxu0 0.0
    %1277 = vmatpush2.msra.mxu0 0.0
    %1278 = vmatprep.subr.mxu0 0.0
    %1279 = vmatpush2.msra.mxu0 0.0
    %1280 = vmatprep.subr.mxu0 0.0
    %1281 = vmatpush2.msra.mxu0 0.0
    %1282 = vmatprep.subr.mxu0 0.0
    %1283 = vmatpush2.msra.mxu0 0.0
    %1284 = vmatprep.mubr.f32.mxu0 0.0
    %1285 = vmatmul.mubr.f32.gmra.mxu0 %v1008
    %v1286 = vpop.f32.mrf.mxu0
    %v1287 = vadd.f32 %v719, %v1286
    %v1288 = vpop.f32.mrf.mxu0
    %1289 = vdwg.mxu0
    %v1294 = vlaneseq
    %v1295 = vshrl.u32 %v1294, 7
    %v1296 = vsub.s32 0, %v1295
    %v1297 = vrot.slane %v105, %v1296
    %v1298 = vlaneseq
    %v1299 = vshrl.u32 %v1298, 7
    %v1300 = vsub.s32 0, %v1299
    %v1301 = vrot.slane %v106, %v1300
    %v1302 = vlaneseq
    %v1303 = vshrl.u32 %v1302, 7
    %v1304 = vsub.s32 0, %v1303
    %v1305 = vrot.slane %v107, %v1304
    %v1306 = vlaneseq
    %v1307 = vshrl.u32 %v1306, 7
    %v1308 = vsub.s32 0, %v1307
    %v1309 = vrot.slane %v108, %v1308
    %v1315 = vsel %vm133, %v43, 0
    %1317 = vmatprep.subr.mxu0 0.0
    %1318 = vmatpush1.msra.mxu0 0.0
    %1319 = vmatprep.subr.mxu0 0.0
    %1320 = vmatpush1.msra.mxu0 0.0
    %1321 = vmatprep.subr.mxu0 0.0
    %1322 = vmatpush1.msra.mxu0 0.0
    %1323 = vmatprep.subr.mxu0 0.0
    %1324 = vmatpush1.msra.mxu0 0.0
    %1325 = vmatprep.subr.mxu0 0.0
    %1326 = vmatpush1.msra.mxu0 0.0
    %1327 = vmatprep.subr.mxu0 0.0
    %1328 = vmatpush1.msra.mxu0 0.0
    %1329 = vmatprep.subr.mxu0 0.0
    %1330 = vmatpush1.msra.mxu0 0.0
    %1331 = vmatprep.subr.mxu0 0.0
    %1332 = vmatpush1.msra.mxu0 0.0
    %1333 = vmatprep.subr.mxu0 0.0
    %1334 = vmatpush1.msra.mxu0 0.0
    %1335 = vmatprep.subr.mxu0 0.0
    %1336 = vmatpush1.msra.mxu0 0.0
    %1337 = vmatprep.subr.mxu0 0.0
    %1338 = vmatpush1.msra.mxu0 0.0
    %1339 = vmatprep.subr.mxu0 0.0
    %1340 = vmatpush1.msra.mxu0 0.0
    %1341 = vmatprep.subr.mxu0 0.0
    %1342 = vmatpush1.msra.mxu0 %v80
    %1343 = vmatprep.subr.mxu0 0.0
    %1344 = vmatpush1.msra.mxu0 %v79
    %1345 = vmatprep.subr.mxu0 0.0
    %1346 = vmatpush1.msra.mxu0 %v78
    %1347 = vmatprep.subr.mxu0 0.0
    %1348 = vmatpush1.msra.mxu0 %v77
    %1349 = vmatprep.subr.mxu0 0.0
    %1350 = vmatpush2.msra.mxu0 0.0
    %1351 = vmatprep.subr.mxu0 0.0
    %1352 = vmatpush2.msra.mxu0 0.0
    %1353 = vmatprep.subr.mxu0 0.0
    %1354 = vmatpush2.msra.mxu0 0.0
    %1355 = vmatprep.subr.mxu0 0.0
    %1356 = vmatpush2.msra.mxu0 0.0
    %1357 = vmatprep.subr.mxu0 0.0
    %1358 = vmatpush2.msra.mxu0 0.0
    %1359 = vmatprep.subr.mxu0 0.0
    %1360 = vmatpush2.msra.mxu0 0.0
    %1361 = vmatprep.subr.mxu0 0.0
    %1362 = vmatpush2.msra.mxu0 0.0
    %1363 = vmatprep.subr.mxu0 0.0
    %1364 = vmatpush2.msra.mxu0 0.0
    %1365 = vmatprep.subr.mxu0 0.0
    %1366 = vmatpush2.msra.mxu0 0.0
    %1367 = vmatprep.subr.mxu0 0.0
    %1368 = vmatpush2.msra.mxu0 0.0
    %1369 = vmatprep.subr.mxu0 0.0
    %1370 = vmatpush2.msra.mxu0 0.0
    %1371 = vmatprep.subr.mxu0 0.0
    %1372 = vmatpush2.msra.mxu0 0.0
    %1373 = vmatprep.subr.mxu0 0.0
    %1374 = vmatpush2.msra.mxu0 0.0
    %1375 = vmatprep.subr.mxu0 0.0
    %1376 = vmatpush2.msra.mxu0 0.0
    %1377 = vmatprep.subr.mxu0 0.0
    %1378 = vmatpush2.msra.mxu0 0.0
    %1379 = vmatprep.subr.mxu0 0.0
    %1380 = vmatpush2.msra.mxu0 0.0
    %1381 = vmatprep.mubr.f32.mxu0 0.0
    %1382 = vmatmul.mubr.f32.gmra.mxu0 %v1315
    %v1383 = vpop.f32.mrf.mxu0
    %v1384 = vadd.f32 %v1297, %v1383
    %v1385 = vpop.f32.mrf.mxu0
    %1386 = vdwg.mxu0
    %1387 = vmatprep.subr.mxu0 0.0
    %1388 = vmatpush1.msra.mxu0 0.0
    %1389 = vmatprep.subr.mxu0 0.0
    %1390 = vmatpush1.msra.mxu0 0.0
    %1391 = vmatprep.subr.mxu0 0.0
    %1392 = vmatpush1.msra.mxu0 0.0
    %1393 = vmatprep.subr.mxu0 0.0
    %1394 = vmatpush1.msra.mxu0 0.0
    %1395 = vmatprep.subr.mxu0 0.0
    %1396 = vmatpush1.msra.mxu0 0.0
    %1397 = vmatprep.subr.mxu0 0.0
    %1398 = vmatpush1.msra.mxu0 0.0
    %1399 = vmatprep.subr.mxu0 0.0
    %1400 = vmatpush1.msra.mxu0 0.0
    %1401 = vmatprep.subr.mxu0 0.0
    %1402 = vmatpush1.msra.mxu0 0.0
    %1403 = vmatprep.subr.mxu0 0.0
    %1404 = vmatpush1.msra.mxu0 0.0
    %1405 = vmatprep.subr.mxu0 0.0
    %1406 = vmatpush1.msra.mxu0 0.0
    %1407 = vmatprep.subr.mxu0 0.0
    %1408 = vmatpush1.msra.mxu0 0.0
    %1409 = vmatprep.subr.mxu0 0.0
    %1410 = vmatpush1.msra.mxu0 0.0
    %1411 = vmatprep.subr.mxu0 0.0
    %1412 = vmatpush1.msra.mxu0 %v84
    %1413 = vmatprep.subr.mxu0 0.0
    %1414 = vmatpush1.msra.mxu0 %v83
    %1415 = vmatprep.subr.mxu0 0.0
    %1416 = vmatpush1.msra.mxu0 %v82
    %1417 = vmatprep.subr.mxu0 0.0
    %1418 = vmatpush1.msra.mxu0 %v81
    %1419 = vmatprep.subr.mxu0 0.0
    %1420 = vmatpush2.msra.mxu0 0.0
    %1421 = vmatprep.subr.mxu0 0.0
    %1422 = vmatpush2.msra.mxu0 0.0
    %1423 = vmatprep.subr.mxu0 0.0
    %1424 = vmatpush2.msra.mxu0 0.0
    %1425 = vmatprep.subr.mxu0 0.0
    %1426 = vmatpush2.msra.mxu0 0.0
    %1427 = vmatprep.subr.mxu0 0.0
    %1428 = vmatpush2.msra.mxu0 0.0
    %1429 = vmatprep.subr.mxu0 0.0
    %1430 = vmatpush2.msra.mxu0 0.0
    %1431 = vmatprep.subr.mxu0 0.0
    %1432 = vmatpush2.msra.mxu0 0.0
    %1433 = vmatprep.subr.mxu0 0.0
    %1434 = vmatpush2.msra.mxu0 0.0
    %1435 = vmatprep.subr.mxu0 0.0
    %1436 = vmatpush2.msra.mxu0 0.0
    %1437 = vmatprep.subr.mxu0 0.0
    %1438 = vmatpush2.msra.mxu0 0.0
    %1439 = vmatprep.subr.mxu0 0.0
    %1440 = vmatpush2.msra.mxu0 0.0
    %1441 = vmatprep.subr.mxu0 0.0
    %1442 = vmatpush2.msra.mxu0 0.0
    %1443 = vmatprep.subr.mxu0 0.0
    %1444 = vmatpush2.msra.mxu0 0.0
    %1445 = vmatprep.subr.mxu0 0.0
    %1446 = vmatpush2.msra.mxu0 0.0
    %1447 = vmatprep.subr.mxu0 0.0
    %1448 = vmatpush2.msra.mxu0 0.0
    %1449 = vmatprep.subr.mxu0 0.0
    %1450 = vmatpush2.msra.mxu0 0.0
    %1451 = vmatprep.mubr.f32.mxu0 0.0
    %1452 = vmatmul.mubr.f32.gmra.mxu0 %v1315
    %v1453 = vpop.f32.mrf.mxu0
    %v1454 = vadd.f32 %v1301, %v1453
    %v1455 = vpop.f32.mrf.mxu0
    %1456 = vdwg.mxu0
    %1457 = vmatprep.subr.mxu0 0.0
    %1458 = vmatpush1.msra.mxu0 0.0
    %1459 = vmatprep.subr.mxu0 0.0
    %1460 = vmatpush1.msra.mxu0 0.0
    %1461 = vmatprep.subr.mxu0 0.0
    %1462 = vmatpush1.msra.mxu0 0.0
    %1463 = vmatprep.subr.mxu0 0.0
    %1464 = vmatpush1.msra.mxu0 0.0
    %1465 = vmatprep.subr.mxu0 0.0
    %1466 = vmatpush1.msra.mxu0 0.0
    %1467 = vmatprep.subr.mxu0 0.0
    %1468 = vmatpush1.msra.mxu0 0.0
    %1469 = vmatprep.subr.mxu0 0.0
    %1470 = vmatpush1.msra.mxu0 0.0
    %1471 = vmatprep.subr.mxu0 0.0
    %1472 = vmatpush1.msra.mxu0 0.0
    %1473 = vmatprep.subr.mxu0 0.0
    %1474 = vmatpush1.msra.mxu0 0.0
    %1475 = vmatprep.subr.mxu0 0.0
    %1476 = vmatpush1.msra.mxu0 0.0
    %1477 = vmatprep.subr.mxu0 0.0
    %1478 = vmatpush1.msra.mxu0 0.0
    %1479 = vmatprep.subr.mxu0 0.0
    %1480 = vmatpush1.msra.mxu0 0.0
    %1481 = vmatprep.subr.mxu0 0.0
    %1482 = vmatpush1.msra.mxu0 %v88
    %1483 = vmatprep.subr.mxu0 0.0
    %1484 = vmatpush1.msra.mxu0 %v87
    %1485 = vmatprep.subr.mxu0 0.0
    %1486 = vmatpush1.msra.mxu0 %v86
    %1487 = vmatprep.subr.mxu0 0.0
    %1488 = vmatpush1.msra.mxu0 %v85
    %1489 = vmatprep.subr.mxu0 0.0
    %1490 = vmatpush2.msra.mxu0 0.0
    %1491 = vmatprep.subr.mxu0 0.0
    %1492 = vmatpush2.msra.mxu0 0.0
    %1493 = vmatprep.subr.mxu0 0.0
    %1494 = vmatpush2.msra.mxu0 0.0
    %1495 = vmatprep.subr.mxu0 0.0
    %1496 = vmatpush2.msra.mxu0 0.0
    %1497 = vmatprep.subr.mxu0 0.0
    %1498 = vmatpush2.msra.mxu0 0.0
    %1499 = vmatprep.subr.mxu0 0.0
    %1500 = vmatpush2.msra.mxu0 0.0
    %1501 = vmatprep.subr.mxu0 0.0
    %1502 = vmatpush2.msra.mxu0 0.0
    %1503 = vmatprep.subr.mxu0 0.0
    %1504 = vmatpush2.msra.mxu0 0.0
    %1505 = vmatprep.subr.mxu0 0.0
    %1506 = vmatpush2.msra.mxu0 0.0
    %1507 = vmatprep.subr.mxu0 0.0
    %1508 = vmatpush2.msra.mxu0 0.0
    %1509 = vmatprep.subr.mxu0 0.0
    %1510 = vmatpush2.msra.mxu0 0.0
    %1511 = vmatprep.subr.mxu0 0.0
    %1512 = vmatpush2.msra.mxu0 0.0
    %1513 = vmatprep.subr.mxu0 0.0
    %1514 = vmatpush2.msra.mxu0 0.0
    %1515 = vmatprep.subr.mxu0 0.0
    %1516 = vmatpush2.msra.mxu0 0.0
    %1517 = vmatprep.subr.mxu0 0.0
    %1518 = vmatpush2.msra.mxu0 0.0
    %1519 = vmatprep.subr.mxu0 0.0
    %1520 = vmatpush2.msra.mxu0 0.0
    %1521 = vmatprep.mubr.f32.mxu0 0.0
    %1522 = vmatmul.mubr.f32.gmra.mxu0 %v1315
    %v1523 = vpop.f32.mrf.mxu0
    %v1524 = vadd.f32 %v1305, %v1523
    %v1525 = vpop.f32.mrf.mxu0
    %1526 = vdwg.mxu0
    %1527 = vmatprep.subr.mxu0 0.0
    %1528 = vmatpush1.msra.mxu0 0.0
    %1529 = vmatprep.subr.mxu0 0.0
    %1530 = vmatpush1.msra.mxu0 0.0
    %1531 = vmatprep.subr.mxu0 0.0
    %1532 = vmatpush1.msra.mxu0 0.0
    %1533 = vmatprep.subr.mxu0 0.0
    %1534 = vmatpush1.msra.mxu0 0.0
    %1535 = vmatprep.subr.mxu0 0.0
    %1536 = vmatpush1.msra.mxu0 0.0
    %1537 = vmatprep.subr.mxu0 0.0
    %1538 = vmatpush1.msra.mxu0 0.0
    %1539 = vmatprep.subr.mxu0 0.0
    %1540 = vmatpush1.msra.mxu0 0.0
    %1541 = vmatprep.subr.mxu0 0.0
    %1542 = vmatpush1.msra.mxu0 0.0
    %1543 = vmatprep.subr.mxu0 0.0
    %1544 = vmatpush1.msra.mxu0 0.0
    %1545 = vmatprep.subr.mxu0 0.0
    %1546 = vmatpush1.msra.mxu0 0.0
    %1547 = vmatprep.subr.mxu0 0.0
    %1548 = vmatpush1.msra.mxu0 0.0
    %1549 = vmatprep.subr.mxu0 0.0
    %1550 = vmatpush1.msra.mxu0 0.0
    %1551 = vmatprep.subr.mxu0 0.0
    %1552 = vmatpush1.msra.mxu0 %v92
    %1553 = vmatprep.subr.mxu0 0.0
    %1554 = vmatpush1.msra.mxu0 %v91
    %1555 = vmatprep.subr.mxu0 0.0
    %1556 = vmatpush1.msra.mxu0 %v90
    %1557 = vmatprep.subr.mxu0 0.0
    %1558 = vmatpush1.msra.mxu0 %v89
    %1559 = vmatprep.subr.mxu0 0.0
    %1560 = vmatpush2.msra.mxu0 0.0
    %1561 = vmatprep.subr.mxu0 0.0
    %1562 = vmatpush2.msra.mxu0 0.0
    %1563 = vmatprep.subr.mxu0 0.0
    %1564 = vmatpush2.msra.mxu0 0.0
    %1565 = vmatprep.subr.mxu0 0.0
    %1566 = vmatpush2.msra.mxu0 0.0
    %1567 = vmatprep.subr.mxu0 0.0
    %1568 = vmatpush2.msra.mxu0 0.0
    %1569 = vmatprep.subr.mxu0 0.0
    %1570 = vmatpush2.msra.mxu0 0.0
    %1571 = vmatprep.subr.mxu0 0.0
    %1572 = vmatpush2.msra.mxu0 0.0
    %1573 = vmatprep.subr.mxu0 0.0
    %1574 = vmatpush2.msra.mxu0 0.0
    %1575 = vmatprep.subr.mxu0 0.0
    %1576 = vmatpush2.msra.mxu0 0.0
    %1577 = vmatprep.subr.mxu0 0.0
    %1578 = vmatpush2.msra.mxu0 0.0
    %1579 = vmatprep.subr.mxu0 0.0
    %1580 = vmatpush2.msra.mxu0 0.0
    %1581 = vmatprep.subr.mxu0 0.0
    %1582 = vmatpush2.msra.mxu0 0.0
    %1583 = vmatprep.subr.mxu0 0.0
    %1584 = vmatpush2.msra.mxu0 0.0
    %1585 = vmatprep.subr.mxu0 0.0
    %1586 = vmatpush2.msra.mxu0 0.0
    %1587 = vmatprep.subr.mxu0 0.0
    %1588 = vmatpush2.msra.mxu0 0.0
    %1589 = vmatprep.subr.mxu0 0.0
    %1590 = vmatpush2.msra.mxu0 0.0
    %1591 = vmatprep.mubr.f32.mxu0 0.0
    %1592 = vmatmul.mubr.f32.gmra.mxu0 %v1315
    %v1593 = vpop.f32.mrf.mxu0
    %v1594 = vadd.f32 %v1309, %v1593
    %v1595 = vpop.f32.mrf.mxu0
    %1596 = vdwg.mxu0
    %v1598 = vsel %vm133, %v44, 0
    %1600 = vmatprep.subr.mxu0 0.0
    %1601 = vmatpush1.msra.mxu0 0.0
    %1602 = vmatprep.subr.mxu0 0.0
    %1603 = vmatpush1.msra.mxu0 0.0
    %1604 = vmatprep.subr.mxu0 0.0
    %1605 = vmatpush1.msra.mxu0 0.0
    %1606 = vmatprep.subr.mxu0 0.0
    %1607 = vmatpush1.msra.mxu0 0.0
    %1608 = vmatprep.subr.mxu0 0.0
    %1609 = vmatpush1.msra.mxu0 0.0
    %1610 = vmatprep.subr.mxu0 0.0
    %1611 = vmatpush1.msra.mxu0 0.0
    %1612 = vmatprep.subr.mxu0 0.0
    %1613 = vmatpush1.msra.mxu0 0.0
    %1614 = vmatprep.subr.mxu0 0.0
    %1615 = vmatpush1.msra.mxu0 0.0
    %1616 = vmatprep.subr.mxu0 0.0
    %1617 = vmatpush1.msra.mxu0 0.0
    %1618 = vmatprep.subr.mxu0 0.0
    %1619 = vmatpush1.msra.mxu0 0.0
    %1620 = vmatprep.subr.mxu0 0.0
    %1621 = vmatpush1.msra.mxu0 0.0
    %1622 = vmatprep.subr.mxu0 0.0
    %1623 = vmatpush1.msra.mxu0 0.0
    %1624 = vmatprep.subr.mxu0 0.0
    %1625 = vmatpush1.msra.mxu0 %v80
    %1626 = vmatprep.subr.mxu0 0.0
    %1627 = vmatpush1.msra.mxu0 %v79
    %1628 = vmatprep.subr.mxu0 0.0
    %1629 = vmatpush1.msra.mxu0 %v78
    %1630 = vmatprep.subr.mxu0 0.0
    %1631 = vmatpush1.msra.mxu0 %v77
    %1632 = vmatprep.subr.mxu0 0.0
    %1633 = vmatpush2.msra.mxu0 0.0
    %1634 = vmatprep.subr.mxu0 0.0
    %1635 = vmatpush2.msra.mxu0 0.0
    %1636 = vmatprep.subr.mxu0 0.0
    %1637 = vmatpush2.msra.mxu0 0.0
    %1638 = vmatprep.subr.mxu0 0.0
    %1639 = vmatpush2.msra.mxu0 0.0
    %1640 = vmatprep.subr.mxu0 0.0
    %1641 = vmatpush2.msra.mxu0 0.0
    %1642 = vmatprep.subr.mxu0 0.0
    %1643 = vmatpush2.msra.mxu0 0.0
    %1644 = vmatprep.subr.mxu0 0.0
    %1645 = vmatpush2.msra.mxu0 0.0
    %1646 = vmatprep.subr.mxu0 0.0
    %1647 = vmatpush2.msra.mxu0 0.0
    %1648 = vmatprep.subr.mxu0 0.0
    %1649 = vmatpush2.msra.mxu0 0.0
    %1650 = vmatprep.subr.mxu0 0.0
    %1651 = vmatpush2.msra.mxu0 0.0
    %1652 = vmatprep.subr.mxu0 0.0
    %1653 = vmatpush2.msra.mxu0 0.0
    %1654 = vmatprep.subr.mxu0 0.0
    %1655 = vmatpush2.msra.mxu0 0.0
    %1656 = vmatprep.subr.mxu0 0.0
    %1657 = vmatpush2.msra.mxu0 0.0
    %1658 = vmatprep.subr.mxu0 0.0
    %1659 = vmatpush2.msra.mxu0 0.0
    %1660 = vmatprep.subr.mxu0 0.0
    %1661 = vmatpush2.msra.mxu0 0.0
    %1662 = vmatprep.subr.mxu0 0.0
    %1663 = vmatpush2.msra.mxu0 0.0
    %1664 = vmatprep.mubr.f32.mxu0 0.0
    %1665 = vmatmul.mubr.f32.gmra.mxu0 %v1598
    %v1666 = vpop.f32.mrf.mxu0
    %v1667 = vadd.f32 %v1297, %v1666
    %v1668 = vpop.f32.mrf.mxu0
    %1669 = vdwg.mxu0
    %1670 = vmatprep.subr.mxu0 0.0
    %1671 = vmatpush1.msra.mxu0 0.0
    %1672 = vmatprep.subr.mxu0 0.0
    %1673 = vmatpush1.msra.mxu0 0.0
    %1674 = vmatprep.subr.mxu0 0.0
    %1675 = vmatpush1.msra.mxu0 0.0
    %1676 = vmatprep.subr.mxu0 0.0
    %1677 = vmatpush1.msra.mxu0 0.0
    %1678 = vmatprep.subr.mxu0 0.0
    %1679 = vmatpush1.msra.mxu0 0.0
    %1680 = vmatprep.subr.mxu0 0.0
    %1681 = vmatpush1.msra.mxu0 0.0
    %1682 = vmatprep.subr.mxu0 0.0
    %1683 = vmatpush1.msra.mxu0 0.0
    %1684 = vmatprep.subr.mxu0 0.0
    %1685 = vmatpush1.msra.mxu0 0.0
    %1686 = vmatprep.subr.mxu0 0.0
    %1687 = vmatpush1.msra.mxu0 0.0
    %1688 = vmatprep.subr.mxu0 0.0
    %1689 = vmatpush1.msra.mxu0 0.0
    %1690 = vmatprep.subr.mxu0 0.0
    %1691 = vmatpush1.msra.mxu0 0.0
    %1692 = vmatprep.subr.mxu0 0.0
    %1693 = vmatpush1.msra.mxu0 0.0
    %1694 = vmatprep.subr.mxu0 0.0
    %1695 = vmatpush1.msra.mxu0 %v84
    %1696 = vmatprep.subr.mxu0 0.0
    %1697 = vmatpush1.msra.mxu0 %v83
    %1698 = vmatprep.subr.mxu0 0.0
    %1699 = vmatpush1.msra.mxu0 %v82
    %1700 = vmatprep.subr.mxu0 0.0
    %1701 = vmatpush1.msra.mxu0 %v81
    %1702 = vmatprep.subr.mxu0 0.0
    %1703 = vmatpush2.msra.mxu0 0.0
    %1704 = vmatprep.subr.mxu0 0.0
    %1705 = vmatpush2.msra.mxu0 0.0
    %1706 = vmatprep.subr.mxu0 0.0
    %1707 = vmatpush2.msra.mxu0 0.0
    %1708 = vmatprep.subr.mxu0 0.0
    %1709 = vmatpush2.msra.mxu0 0.0
    %1710 = vmatprep.subr.mxu0 0.0
    %1711 = vmatpush2.msra.mxu0 0.0
    %1712 = vmatprep.subr.mxu0 0.0
    %1713 = vmatpush2.msra.mxu0 0.0
    %1714 = vmatprep.subr.mxu0 0.0
    %1715 = vmatpush2.msra.mxu0 0.0
    %1716 = vmatprep.subr.mxu0 0.0
    %1717 = vmatpush2.msra.mxu0 0.0
    %1718 = vmatprep.subr.mxu0 0.0
    %1719 = vmatpush2.msra.mxu0 0.0
    %1720 = vmatprep.subr.mxu0 0.0
    %1721 = vmatpush2.msra.mxu0 0.0
    %1722 = vmatprep.subr.mxu0 0.0
    %1723 = vmatpush2.msra.mxu0 0.0
    %1724 = vmatprep.subr.mxu0 0.0
    %1725 = vmatpush2.msra.mxu0 0.0
    %1726 = vmatprep.subr.mxu0 0.0
    %1727 = vmatpush2.msra.mxu0 0.0
    %1728 = vmatprep.subr.mxu0 0.0
    %1729 = vmatpush2.msra.mxu0 0.0
    %1730 = vmatprep.subr.mxu0 0.0
    %1731 = vmatpush2.msra.mxu0 0.0
    %1732 = vmatprep.subr.mxu0 0.0
    %1733 = vmatpush2.msra.mxu0 0.0
    %1734 = vmatprep.mubr.f32.mxu0 0.0
    %1735 = vmatmul.mubr.f32.gmra.mxu0 %v1598
    %v1736 = vpop.f32.mrf.mxu0
    %v1737 = vadd.f32 %v1301, %v1736
    %v1738 = vpop.f32.mrf.mxu0
    %1739 = vdwg.mxu0
    %1740 = vmatprep.subr.mxu0 0.0
    %1741 = vmatpush1.msra.mxu0 0.0
    %1742 = vmatprep.subr.mxu0 0.0
    %1743 = vmatpush1.msra.mxu0 0.0
    %1744 = vmatprep.subr.mxu0 0.0
    %1745 = vmatpush1.msra.mxu0 0.0
    %1746 = vmatprep.subr.mxu0 0.0
    %1747 = vmatpush1.msra.mxu0 0.0
    %1748 = vmatprep.subr.mxu0 0.0
    %1749 = vmatpush1.msra.mxu0 0.0
    %1750 = vmatprep.subr.mxu0 0.0
    %1751 = vmatpush1.msra.mxu0 0.0
    %1752 = vmatprep.subr.mxu0 0.0
    %1753 = vmatpush1.msra.mxu0 0.0
    %1754 = vmatprep.subr.mxu0 0.0
    %1755 = vmatpush1.msra.mxu0 0.0
    %1756 = vmatprep.subr.mxu0 0.0
    %1757 = vmatpush1.msra.mxu0 0.0
    %1758 = vmatprep.subr.mxu0 0.0
    %1759 = vmatpush1.msra.mxu0 0.0
    %1760 = vmatprep.subr.mxu0 0.0
    %1761 = vmatpush1.msra.mxu0 0.0
    %1762 = vmatprep.subr.mxu0 0.0
    %1763 = vmatpush1.msra.mxu0 0.0
    %1764 = vmatprep.subr.mxu0 0.0
    %1765 = vmatpush1.msra.mxu0 %v88
    %1766 = vmatprep.subr.mxu0 0.0
    %1767 = vmatpush1.msra.mxu0 %v87
    %1768 = vmatprep.subr.mxu0 0.0
    %1769 = vmatpush1.msra.mxu0 %v86
    %1770 = vmatprep.subr.mxu0 0.0
    %1771 = vmatpush1.msra.mxu0 %v85
    %1772 = vmatprep.subr.mxu0 0.0
    %1773 = vmatpush2.msra.mxu0 0.0
    %1774 = vmatprep.subr.mxu0 0.0
    %1775 = vmatpush2.msra.mxu0 0.0
    %1776 = vmatprep.subr.mxu0 0.0
    %1777 = vmatpush2.msra.mxu0 0.0
    %1778 = vmatprep.subr.mxu0 0.0
    %1779 = vmatpush2.msra.mxu0 0.0
    %1780 = vmatprep.subr.mxu0 0.0
    %1781 = vmatpush2.msra.mxu0 0.0
    %1782 = vmatprep.subr.mxu0 0.0
    %1783 = vmatpush2.msra.mxu0 0.0
    %1784 = vmatprep.subr.mxu0 0.0
    %1785 = vmatpush2.msra.mxu0 0.0
    %1786 = vmatprep.subr.mxu0 0.0
    %1787 = vmatpush2.msra.mxu0 0.0
    %1788 = vmatprep.subr.mxu0 0.0
    %1789 = vmatpush2.msra.mxu0 0.0
    %1790 = vmatprep.subr.mxu0 0.0
    %1791 = vmatpush2.msra.mxu0 0.0
    %1792 = vmatprep.subr.mxu0 0.0
    %1793 = vmatpush2.msra.mxu0 0.0
    %1794 = vmatprep.subr.mxu0 0.0
    %1795 = vmatpush2.msra.mxu0 0.0
    %1796 = vmatprep.subr.mxu0 0.0
    %1797 = vmatpush2.msra.mxu0 0.0
    %1798 = vmatprep.subr.mxu0 0.0
    %1799 = vmatpush2.msra.mxu0 0.0
    %1800 = vmatprep.subr.mxu0 0.0
    %1801 = vmatpush2.msra.mxu0 0.0
    %1802 = vmatprep.subr.mxu0 0.0
    %1803 = vmatpush2.msra.mxu0 0.0
    %1804 = vmatprep.mubr.f32.mxu0 0.0
    %1805 = vmatmul.mubr.f32.gmra.mxu0 %v1598
    %v1806 = vpop.f32.mrf.mxu0
    %v1807 = vadd.f32 %v1305, %v1806
    %v1808 = vpop.f32.mrf.mxu0
    %1809 = vdwg.mxu0
    %1810 = vmatprep.subr.mxu0 0.0
    %1811 = vmatpush1.msra.mxu0 0.0
    %1812 = vmatprep.subr.mxu0 0.0
    %1813 = vmatpush1.msra.mxu0 0.0
    %1814 = vmatprep.subr.mxu0 0.0
    %1815 = vmatpush1.msra.mxu0 0.0
    %1816 = vmatprep.subr.mxu0 0.0
    %1817 = vmatpush1.msra.mxu0 0.0
    %1818 = vmatprep.subr.mxu0 0.0
    %1819 = vmatpush1.msra.mxu0 0.0
    %1820 = vmatprep.subr.mxu0 0.0
    %1821 = vmatpush1.msra.mxu0 0.0
    %1822 = vmatprep.subr.mxu0 0.0
    %1823 = vmatpush1.msra.mxu0 0.0
    %1824 = vmatprep.subr.mxu0 0.0
    %1825 = vmatpush1.msra.mxu0 0.0
    %1826 = vmatprep.subr.mxu0 0.0
    %1827 = vmatpush1.msra.mxu0 0.0
    %1828 = vmatprep.subr.mxu0 0.0
    %1829 = vmatpush1.msra.mxu0 0.0
    %1830 = vmatprep.subr.mxu0 0.0
    %1831 = vmatpush1.msra.mxu0 0.0
    %1832 = vmatprep.subr.mxu0 0.0
    %1833 = vmatpush1.msra.mxu0 0.0
    %1834 = vmatprep.subr.mxu0 0.0
    %1835 = vmatpush1.msra.mxu0 %v92
    %1836 = vmatprep.subr.mxu0 0.0
    %1837 = vmatpush1.msra.mxu0 %v91
    %1838 = vmatprep.subr.mxu0 0.0
    %1839 = vmatpush1.msra.mxu0 %v90
    %1840 = vmatprep.subr.mxu0 0.0
    %1841 = vmatpush1.msra.mxu0 %v89
    %1842 = vmatprep.subr.mxu0 0.0
    %1843 = vmatpush2.msra.mxu0 0.0
    %1844 = vmatprep.subr.mxu0 0.0
    %1845 = vmatpush2.msra.mxu0 0.0
    %1846 = vmatprep.subr.mxu0 0.0
    %1847 = vmatpush2.msra.mxu0 0.0
    %1848 = vmatprep.subr.mxu0 0.0
    %1849 = vmatpush2.msra.mxu0 0.0
    %1850 = vmatprep.subr.mxu0 0.0
    %1851 = vmatpush2.msra.mxu0 0.0
    %1852 = vmatprep.subr.mxu0 0.0
    %1853 = vmatpush2.msra.mxu0 0.0
    %1854 = vmatprep.subr.mxu0 0.0
    %1855 = vmatpush2.msra.mxu0 0.0
    %1856 = vmatprep.subr.mxu0 0.0
    %1857 = vmatpush2.msra.mxu0 0.0
    %1858 = vmatprep.subr.mxu0 0.0
    %1859 = vmatpush2.msra.mxu0 0.0
    %1860 = vmatprep.subr.mxu0 0.0
    %1861 = vmatpush2.msra.mxu0 0.0
    %1862 = vmatprep.subr.mxu0 0.0
    %1863 = vmatpush2.msra.mxu0 0.0
    %1864 = vmatprep.subr.mxu0 0.0
    %1865 = vmatpush2.msra.mxu0 0.0
    %1866 = vmatprep.subr.mxu0 0.0
    %1867 = vmatpush2.msra.mxu0 0.0
    %1868 = vmatprep.subr.mxu0 0.0
    %1869 = vmatpush2.msra.mxu0 0.0
    %1870 = vmatprep.subr.mxu0 0.0
    %1871 = vmatpush2.msra.mxu0 0.0
    %1872 = vmatprep.subr.mxu0 0.0
    %1873 = vmatpush2.msra.mxu0 0.0
    %1874 = vmatprep.mubr.f32.mxu0 0.0
    %1875 = vmatmul.mubr.f32.gmra.mxu0 %v1598
    %v1876 = vpop.f32.mrf.mxu0
    %v1877 = vadd.f32 %v1309, %v1876
    %v1878 = vpop.f32.mrf.mxu0
    %1879 = vdwg.mxu0
    %vm1880 = vcmask 64512
    %v1882 = vsel %vm1880, %v204, 0
    %v1885 = vsel %vm1880, %v794, 0
    %1887 = vmatprep.subr.mxu0 0.0
    %1888 = vmatpush1.xpose.msra.mxu0 0.0
    %1889 = vmatprep.subr.mxu0 0.0
    %1890 = vmatpush1.xpose.msra.mxu0 0.0
    %1891 = vmatprep.subr.mxu0 0.0
    %1892 = vmatpush1.xpose.msra.mxu0 0.0
    %1893 = vmatprep.subr.mxu0 0.0
    %1894 = vmatpush1.xpose.msra.mxu0 0.0
    %1895 = vmatprep.subr.mxu0 0.0
    %1896 = vmatpush1.xpose.msra.mxu0 0.0
    %1897 = vmatprep.subr.mxu0 0.0
    %1898 = vmatpush1.xpose.msra.mxu0 0.0
    %1899 = vmatprep.subr.mxu0 0.0
    %1900 = vmatpush1.xpose.msra.mxu0 0.0
    %1901 = vmatprep.subr.mxu0 0.0
    %1902 = vmatpush1.xpose.msra.mxu0 0.0
    %1903 = vmatprep.subr.mxu0 0.0
    %1904 = vmatpush1.xpose.msra.mxu0 0.0
    %1905 = vmatprep.subr.mxu0 0.0
    %1906 = vmatpush1.xpose.msra.mxu0 0.0
    %1907 = vmatprep.subr.mxu0 0.0
    %1908 = vmatpush1.xpose.msra.mxu0 0.0
    %1909 = vmatprep.subr.mxu0 0.0
    %1910 = vmatpush1.xpose.msra.mxu0 0.0
    %1911 = vmatprep.subr.mxu0 0.0
    %1912 = vmatpush1.xpose.msra.mxu0 0.0
    %1913 = vmatprep.subr.mxu0 0.0
    %1914 = vmatpush1.xpose.msra.mxu0 0.0
    %1915 = vmatprep.subr.mxu0 0.0
    %1916 = vmatpush1.xpose.msra.mxu0 0.0
    %1917 = vmatprep.subr.mxu0 0.0
    %1918 = vmatpush1.xpose.msra.mxu0 %v1885
    %1919 = vmatprep.subr.mxu0 0.0
    %1920 = vmatpush2.xpose.msra.mxu0 0.0
    %1921 = vmatprep.subr.mxu0 0.0
    %1922 = vmatpush2.xpose.msra.mxu0 0.0
    %1923 = vmatprep.subr.mxu0 0.0
    %1924 = vmatpush2.xpose.msra.mxu0 0.0
    %1925 = vmatprep.subr.mxu0 0.0
    %1926 = vmatpush2.xpose.msra.mxu0 0.0
    %1927 = vmatprep.subr.mxu0 0.0
    %1928 = vmatpush2.xpose.msra.mxu0 0.0
    %1929 = vmatprep.subr.mxu0 0.0
    %1930 = vmatpush2.xpose.msra.mxu0 0.0
    %1931 = vmatprep.subr.mxu0 0.0
    %1932 = vmatpush2.xpose.msra.mxu0 0.0
    %1933 = vmatprep.subr.mxu0 0.0
    %1934 = vmatpush2.xpose.msra.mxu0 0.0
    %1935 = vmatprep.subr.mxu0 0.0
    %1936 = vmatpush2.xpose.msra.mxu0 0.0
    %1937 = vmatprep.subr.mxu0 0.0
    %1938 = vmatpush2.xpose.msra.mxu0 0.0
    %1939 = vmatprep.subr.mxu0 0.0
    %1940 = vmatpush2.xpose.msra.mxu0 0.0
    %1941 = vmatprep.subr.mxu0 0.0
    %1942 = vmatpush2.xpose.msra.mxu0 0.0
    %1943 = vmatprep.subr.mxu0 0.0
    %1944 = vmatpush2.xpose.msra.mxu0 0.0
    %1945 = vmatprep.subr.mxu0 0.0
    %1946 = vmatpush2.xpose.msra.mxu0 0.0
    %1947 = vmatprep.subr.mxu0 0.0
    %1948 = vmatpush2.xpose.msra.mxu0 0.0
    %1949 = vmatprep.subr.mxu0 0.0
    %1950 = vmatpush2.xpose.msra.mxu0 0.0
    %1951 = vmatprep.mubr.f32.mxu0 0.0
    %1952 = vmatmul.mubr.f32.gmra.mxu0 %v1882
    %v1953 = vpop.f32.mrf.mxu0
    %v1954 = vadd.f32 0.0, %v1953
    %v1955 = vpop.f32.mrf.mxu0
    %1956 = vdwg.mxu0
    %v1958 = vsel %vm1880, %v274, 0
    %v1961 = vsel %vm1880, %v864, 0
    %1963 = vmatprep.subr.mxu0 0.0
    %1964 = vmatpush1.xpose.msra.mxu0 0.0
    %1965 = vmatprep.subr.mxu0 0.0
    %1966 = vmatpush1.xpose.msra.mxu0 0.0
    %1967 = vmatprep.subr.mxu0 0.0
    %1968 = vmatpush1.xpose.msra.mxu0 0.0
    %1969 = vmatprep.subr.mxu0 0.0
    %1970 = vmatpush1.xpose.msra.mxu0 0.0
    %1971 = vmatprep.subr.mxu0 0.0
    %1972 = vmatpush1.xpose.msra.mxu0 0.0
    %1973 = vmatprep.subr.mxu0 0.0
    %1974 = vmatpush1.xpose.msra.mxu0 0.0
    %1975 = vmatprep.subr.mxu0 0.0
    %1976 = vmatpush1.xpose.msra.mxu0 0.0
    %1977 = vmatprep.subr.mxu0 0.0
    %1978 = vmatpush1.xpose.msra.mxu0 0.0
    %1979 = vmatprep.subr.mxu0 0.0
    %1980 = vmatpush1.xpose.msra.mxu0 0.0
    %1981 = vmatprep.subr.mxu0 0.0
    %1982 = vmatpush1.xpose.msra.mxu0 0.0
    %1983 = vmatprep.subr.mxu0 0.0
    %1984 = vmatpush1.xpose.msra.mxu0 0.0
    %1985 = vmatprep.subr.mxu0 0.0
    %1986 = vmatpush1.xpose.msra.mxu0 0.0
    %1987 = vmatprep.subr.mxu0 0.0
    %1988 = vmatpush1.xpose.msra.mxu0 0.0
    %1989 = vmatprep.subr.mxu0 0.0
    %1990 = vmatpush1.xpose.msra.mxu0 0.0
    %1991 = vmatprep.subr.mxu0 0.0
    %1992 = vmatpush1.xpose.msra.mxu0 0.0
    %1993 = vmatprep.subr.mxu0 0.0
    %1994 = vmatpush1.xpose.msra.mxu0 %v1961
    %1995 = vmatprep.subr.mxu0 0.0
    %1996 = vmatpush2.xpose.msra.mxu0 0.0
    %1997 = vmatprep.subr.mxu0 0.0
    %1998 = vmatpush2.xpose.msra.mxu0 0.0
    %1999 = vmatprep.subr.mxu0 0.0
    %2000 = vmatpush2.xpose.msra.mxu0 0.0
    %2001 = vmatprep.subr.mxu0 0.0
    %2002 = vmatpush2.xpose.msra.mxu0 0.0
    %2003 = vmatprep.subr.mxu0 0.0
    %2004 = vmatpush2.xpose.msra.mxu0 0.0
    %2005 = vmatprep.subr.mxu0 0.0
    %2006 = vmatpush2.xpose.msra.mxu0 0.0
    %2007 = vmatprep.subr.mxu0 0.0
    %2008 = vmatpush2.xpose.msra.mxu0 0.0
    %2009 = vmatprep.subr.mxu0 0.0
    %2010 = vmatpush2.xpose.msra.mxu0 0.0
    %2011 = vmatprep.subr.mxu0 0.0
    %2012 = vmatpush2.xpose.msra.mxu0 0.0
    %2013 = vmatprep.subr.mxu0 0.0
    %2014 = vmatpush2.xpose.msra.mxu0 0.0
    %2015 = vmatprep.subr.mxu0 0.0
    %2016 = vmatpush2.xpose.msra.mxu0 0.0
    %2017 = vmatprep.subr.mxu0 0.0
    %2018 = vmatpush2.xpose.msra.mxu0 0.0
    %2019 = vmatprep.subr.mxu0 0.0
    %2020 = vmatpush2.xpose.msra.mxu0 0.0
    %2021 = vmatprep.subr.mxu0 0.0
    %2022 = vmatpush2.xpose.msra.mxu0 0.0
    %2023 = vmatprep.subr.mxu0 0.0
    %2024 = vmatpush2.xpose.msra.mxu0 0.0
    %2025 = vmatprep.subr.mxu0 0.0
    %2026 = vmatpush2.xpose.msra.mxu0 0.0
    %2027 = vmatprep.mubr.f32.mxu0 0.0
    %2028 = vmatmul.mubr.f32.gmra.mxu0 %v1958
    %v2029 = vpop.f32.mrf.mxu0
    %v2030 = vadd.f32 0.0, %v2029
    %v2031 = vpop.f32.mrf.mxu0
    %2032 = vdwg.mxu0
    %v2034 = vsel %vm1880, %v344, 0
    %v2037 = vsel %vm1880, %v934, 0
    %2039 = vmatprep.subr.mxu0 0.0
    %2040 = vmatpush1.xpose.msra.mxu0 0.0
    %2041 = vmatprep.subr.mxu0 0.0
    %2042 = vmatpush1.xpose.msra.mxu0 0.0
    %2043 = vmatprep.subr.mxu0 0.0
    %2044 = vmatpush1.xpose.msra.mxu0 0.0
    %2045 = vmatprep.subr.mxu0 0.0
    %2046 = vmatpush1.xpose.msra.mxu0 0.0
    %2047 = vmatprep.subr.mxu0 0.0
    %2048 = vmatpush1.xpose.msra.mxu0 0.0
    %2049 = vmatprep.subr.mxu0 0.0
    %2050 = vmatpush1.xpose.msra.mxu0 0.0
    %2051 = vmatprep.subr.mxu0 0.0
    %2052 = vmatpush1.xpose.msra.mxu0 0.0
    %2053 = vmatprep.subr.mxu0 0.0
    %2054 = vmatpush1.xpose.msra.mxu0 0.0
    %2055 = vmatprep.subr.mxu0 0.0
    %2056 = vmatpush1.xpose.msra.mxu0 0.0
    %2057 = vmatprep.subr.mxu0 0.0
    %2058 = vmatpush1.xpose.msra.mxu0 0.0
    %2059 = vmatprep.subr.mxu0 0.0
    %2060 = vmatpush1.xpose.msra.mxu0 0.0
    %2061 = vmatprep.subr.mxu0 0.0
    %2062 = vmatpush1.xpose.msra.mxu0 0.0
    %2063 = vmatprep.subr.mxu0 0.0
    %2064 = vmatpush1.xpose.msra.mxu0 0.0
    %2065 = vmatprep.subr.mxu0 0.0
    %2066 = vmatpush1.xpose.msra.mxu0 0.0
    %2067 = vmatprep.subr.mxu0 0.0
    %2068 = vmatpush1.xpose.msra.mxu0 0.0
    %2069 = vmatprep.subr.mxu0 0.0
    %2070 = vmatpush1.xpose.msra.mxu0 %v2037
    %2071 = vmatprep.subr.mxu0 0.0
    %2072 = vmatpush2.xpose.msra.mxu0 0.0
    %2073 = vmatprep.subr.mxu0 0.0
    %2074 = vmatpush2.xpose.msra.mxu0 0.0
    %2075 = vmatprep.subr.mxu0 0.0
    %2076 = vmatpush2.xpose.msra.mxu0 0.0
    %2077 = vmatprep.subr.mxu0 0.0
    %2078 = vmatpush2.xpose.msra.mxu0 0.0
    %2079 = vmatprep.subr.mxu0 0.0
    %2080 = vmatpush2.xpose.msra.mxu0 0.0
    %2081 = vmatprep.subr.mxu0 0.0
    %2082 = vmatpush2.xpose.msra.mxu0 0.0
    %2083 = vmatprep.subr.mxu0 0.0
    %2084 = vmatpush2.xpose.msra.mxu0 0.0
    %2085 = vmatprep.subr.mxu0 0.0
    %2086 = vmatpush2.xpose.msra.mxu0 0.0
    %2087 = vmatprep.subr.mxu0 0.0
    %2088 = vmatpush2.xpose.msra.mxu0 0.0
    %2089 = vmatprep.subr.mxu0 0.0
    %2090 = vmatpush2.xpose.msra.mxu0 0.0
    %2091 = vmatprep.subr.mxu0 0.0
    %2092 = vmatpush2.xpose.msra.mxu0 0.0
    %2093 = vmatprep.subr.mxu0 0.0
    %2094 = vmatpush2.xpose.msra.mxu0 0.0
    %2095 = vmatprep.subr.mxu0 0.0
    %2096 = vmatpush2.xpose.msra.mxu0 0.0
    %2097 = vmatprep.subr.mxu0 0.0
    %2098 = vmatpush2.xpose.msra.mxu0 0.0
    %2099 = vmatprep.subr.mxu0 0.0
    %2100 = vmatpush2.xpose.msra.mxu0 0.0
    %2101 = vmatprep.subr.mxu0 0.0
    %2102 = vmatpush2.xpose.msra.mxu0 0.0
    %2103 = vmatprep.mubr.f32.mxu0 0.0
    %2104 = vmatmul.mubr.f32.gmra.mxu0 %v2034
    %v2105 = vpop.f32.mrf.mxu0
    %v2106 = vadd.f32 0.0, %v2105
    %v2107 = vpop.f32.mrf.mxu0
    %2108 = vdwg.mxu0
    %v2110 = vsel %vm1880, %v414, 0
    %v2113 = vsel %vm1880, %v1004, 0
    %2115 = vmatprep.subr.mxu0 0.0
    %2116 = vmatpush1.xpose.msra.mxu0 0.0
    %2117 = vmatprep.subr.mxu0 0.0
    %2118 = vmatpush1.xpose.msra.mxu0 0.0
    %2119 = vmatprep.subr.mxu0 0.0
    %2120 = vmatpush1.xpose.msra.mxu0 0.0
    %2121 = vmatprep.subr.mxu0 0.0
    %2122 = vmatpush1.xpose.msra.mxu0 0.0
    %2123 = vmatprep.subr.mxu0 0.0
    %2124 = vmatpush1.xpose.msra.mxu0 0.0
    %2125 = vmatprep.subr.mxu0 0.0
    %2126 = vmatpush1.xpose.msra.mxu0 0.0
    %2127 = vmatprep.subr.mxu0 0.0
    %2128 = vmatpush1.xpose.msra.mxu0 0.0
    %2129 = vmatprep.subr.mxu0 0.0
    %2130 = vmatpush1.xpose.msra.mxu0 0.0
    %2131 = vmatprep.subr.mxu0 0.0
    %2132 = vmatpush1.xpose.msra.mxu0 0.0
    %2133 = vmatprep.subr.mxu0 0.0
    %2134 = vmatpush1.xpose.msra.mxu0 0.0
    %2135 = vmatprep.subr.mxu0 0.0
    %2136 = vmatpush1.xpose.msra.mxu0 0.0
    %2137 = vmatprep.subr.mxu0 0.0
    %2138 = vmatpush1.xpose.msra.mxu0 0.0
    %2139 = vmatprep.subr.mxu0 0.0
    %2140 = vmatpush1.xpose.msra.mxu0 0.0
    %2141 = vmatprep.subr.mxu0 0.0
    %2142 = vmatpush1.xpose.msra.mxu0 0.0
    %2143 = vmatprep.subr.mxu0 0.0
    %2144 = vmatpush1.xpose.msra.mxu0 0.0
    %2145 = vmatprep.subr.mxu0 0.0
    %2146 = vmatpush1.xpose.msra.mxu0 %v2113
    %2147 = vmatprep.subr.mxu0 0.0
    %2148 = vmatpush2.xpose.msra.mxu0 0.0
    %2149 = vmatprep.subr.mxu0 0.0
    %2150 = vmatpush2.xpose.msra.mxu0 0.0
    %2151 = vmatprep.subr.mxu0 0.0
    %2152 = vmatpush2.xpose.msra.mxu0 0.0
    %2153 = vmatprep.subr.mxu0 0.0
    %2154 = vmatpush2.xpose.msra.mxu0 0.0
    %2155 = vmatprep.subr.mxu0 0.0
    %2156 = vmatpush2.xpose.msra.mxu0 0.0
    %2157 = vmatprep.subr.mxu0 0.0
    %2158 = vmatpush2.xpose.msra.mxu0 0.0
    %2159 = vmatprep.subr.mxu0 0.0
    %2160 = vmatpush2.xpose.msra.mxu0 0.0
    %2161 = vmatprep.subr.mxu0 0.0
    %2162 = vmatpush2.xpose.msra.mxu0 0.0
    %2163 = vmatprep.subr.mxu0 0.0
    %2164 = vmatpush2.xpose.msra.mxu0 0.0
    %2165 = vmatprep.subr.mxu0 0.0
    %2166 = vmatpush2.xpose.msra.mxu0 0.0
    %2167 = vmatprep.subr.mxu0 0.0
    %2168 = vmatpush2.xpose.msra.mxu0 0.0
    %2169 = vmatprep.subr.mxu0 0.0
    %2170 = vmatpush2.xpose.msra.mxu0 0.0
    %2171 = vmatprep.subr.mxu0 0.0
    %2172 = vmatpush2.xpose.msra.mxu0 0.0
    %2173 = vmatprep.subr.mxu0 0.0
    %2174 = vmatpush2.xpose.msra.mxu0 0.0
    %2175 = vmatprep.subr.mxu0 0.0
    %2176 = vmatpush2.xpose.msra.mxu0 0.0
    %2177 = vmatprep.subr.mxu0 0.0
    %2178 = vmatpush2.xpose.msra.mxu0 0.0
    %2179 = vmatprep.mubr.f32.mxu0 0.0
    %2180 = vmatmul.mubr.f32.gmra.mxu0 %v2110
    %v2181 = vpop.f32.mrf.mxu0
    %v2182 = vadd.f32 0.0, %v2181
    %v2183 = vpop.f32.mrf.mxu0
    %2184 = vdwg.mxu0
    %v2186 = vsel %vm1880, %v487, 0
    %v2189 = vsel %vm1880, %v1077, 0
    %2191 = vmatprep.subr.mxu0 0.0
    %2192 = vmatpush1.xpose.msra.mxu0 0.0
    %2193 = vmatprep.subr.mxu0 0.0
    %2194 = vmatpush1.xpose.msra.mxu0 0.0
    %2195 = vmatprep.subr.mxu0 0.0
    %2196 = vmatpush1.xpose.msra.mxu0 0.0
    %2197 = vmatprep.subr.mxu0 0.0
    %2198 = vmatpush1.xpose.msra.mxu0 0.0
    %2199 = vmatprep.subr.mxu0 0.0
    %2200 = vmatpush1.xpose.msra.mxu0 0.0
    %2201 = vmatprep.subr.mxu0 0.0
    %2202 = vmatpush1.xpose.msra.mxu0 0.0
    %2203 = vmatprep.subr.mxu0 0.0
    %2204 = vmatpush1.xpose.msra.mxu0 0.0
    %2205 = vmatprep.subr.mxu0 0.0
    %2206 = vmatpush1.xpose.msra.mxu0 0.0
    %2207 = vmatprep.subr.mxu0 0.0
    %2208 = vmatpush1.xpose.msra.mxu0 0.0
    %2209 = vmatprep.subr.mxu0 0.0
    %2210 = vmatpush1.xpose.msra.mxu0 0.0
    %2211 = vmatprep.subr.mxu0 0.0
    %2212 = vmatpush1.xpose.msra.mxu0 0.0
    %2213 = vmatprep.subr.mxu0 0.0
    %2214 = vmatpush1.xpose.msra.mxu0 0.0
    %2215 = vmatprep.subr.mxu0 0.0
    %2216 = vmatpush1.xpose.msra.mxu0 0.0
    %2217 = vmatprep.subr.mxu0 0.0
    %2218 = vmatpush1.xpose.msra.mxu0 0.0
    %2219 = vmatprep.subr.mxu0 0.0
    %2220 = vmatpush1.xpose.msra.mxu0 0.0
    %2221 = vmatprep.subr.mxu0 0.0
    %2222 = vmatpush1.xpose.msra.mxu0 %v2189
    %2223 = vmatprep.subr.mxu0 0.0
    %2224 = vmatpush2.xpose.msra.mxu0 0.0
    %2225 = vmatprep.subr.mxu0 0.0
    %2226 = vmatpush2.xpose.msra.mxu0 0.0
    %2227 = vmatprep.subr.mxu0 0.0
    %2228 = vmatpush2.xpose.msra.mxu0 0.0
    %2229 = vmatprep.subr.mxu0 0.0
    %2230 = vmatpush2.xpose.msra.mxu0 0.0
    %2231 = vmatprep.subr.mxu0 0.0
    %2232 = vmatpush2.xpose.msra.mxu0 0.0
    %2233 = vmatprep.subr.mxu0 0.0
    %2234 = vmatpush2.xpose.msra.mxu0 0.0
    %2235 = vmatprep.subr.mxu0 0.0
    %2236 = vmatpush2.xpose.msra.mxu0 0.0
    %2237 = vmatprep.subr.mxu0 0.0
    %2238 = vmatpush2.xpose.msra.mxu0 0.0
    %2239 = vmatprep.subr.mxu0 0.0
    %2240 = vmatpush2.xpose.msra.mxu0 0.0
    %2241 = vmatprep.subr.mxu0 0.0
    %2242 = vmatpush2.xpose.msra.mxu0 0.0
    %2243 = vmatprep.subr.mxu0 0.0
    %2244 = vmatpush2.xpose.msra.mxu0 0.0
    %2245 = vmatprep.subr.mxu0 0.0
    %2246 = vmatpush2.xpose.msra.mxu0 0.0
    %2247 = vmatprep.subr.mxu0 0.0
    %2248 = vmatpush2.xpose.msra.mxu0 0.0
    %2249 = vmatprep.subr.mxu0 0.0
    %2250 = vmatpush2.xpose.msra.mxu0 0.0
    %2251 = vmatprep.subr.mxu0 0.0
    %2252 = vmatpush2.xpose.msra.mxu0 0.0
    %2253 = vmatprep.subr.mxu0 0.0
    %2254 = vmatpush2.xpose.msra.mxu0 0.0
    %2255 = vmatprep.mubr.f32.mxu0 0.0
    %2256 = vmatmul.mubr.f32.gmra.mxu0 %v2186
    %v2257 = vpop.f32.mrf.mxu0
    %v2258 = vadd.f32 0.0, %v2257
    %v2259 = vpop.f32.mrf.mxu0
    %2260 = vdwg.mxu0
    %v2262 = vsel %vm1880, %v557, 0
    %v2265 = vsel %vm1880, %v1147, 0
    %2267 = vmatprep.subr.mxu0 0.0
    %2268 = vmatpush1.xpose.msra.mxu0 0.0
    %2269 = vmatprep.subr.mxu0 0.0
    %2270 = vmatpush1.xpose.msra.mxu0 0.0
    %2271 = vmatprep.subr.mxu0 0.0
    %2272 = vmatpush1.xpose.msra.mxu0 0.0
    %2273 = vmatprep.subr.mxu0 0.0
    %2274 = vmatpush1.xpose.msra.mxu0 0.0
    %2275 = vmatprep.subr.mxu0 0.0
    %2276 = vmatpush1.xpose.msra.mxu0 0.0
    %2277 = vmatprep.subr.mxu0 0.0
    %2278 = vmatpush1.xpose.msra.mxu0 0.0
    %2279 = vmatprep.subr.mxu0 0.0
    %2280 = vmatpush1.xpose.msra.mxu0 0.0
    %2281 = vmatprep.subr.mxu0 0.0
    %2282 = vmatpush1.xpose.msra.mxu0 0.0
    %2283 = vmatprep.subr.mxu0 0.0
    %2284 = vmatpush1.xpose.msra.mxu0 0.0
    %2285 = vmatprep.subr.mxu0 0.0
    %2286 = vmatpush1.xpose.msra.mxu0 0.0
    %2287 = vmatprep.subr.mxu0 0.0
    %2288 = vmatpush1.xpose.msra.mxu0 0.0
    %2289 = vmatprep.subr.mxu0 0.0
    %2290 = vmatpush1.xpose.msra.mxu0 0.0
    %2291 = vmatprep.subr.mxu0 0.0
    %2292 = vmatpush1.xpose.msra.mxu0 0.0
    %2293 = vmatprep.subr.mxu0 0.0
    %2294 = vmatpush1.xpose.msra.mxu0 0.0
    %2295 = vmatprep.subr.mxu0 0.0
    %2296 = vmatpush1.xpose.msra.mxu0 0.0
    %2297 = vmatprep.subr.mxu0 0.0
    %2298 = vmatpush1.xpose.msra.mxu0 %v2265
    %2299 = vmatprep.subr.mxu0 0.0
    %2300 = vmatpush2.xpose.msra.mxu0 0.0
    %2301 = vmatprep.subr.mxu0 0.0
    %2302 = vmatpush2.xpose.msra.mxu0 0.0
    %2303 = vmatprep.subr.mxu0 0.0
    %2304 = vmatpush2.xpose.msra.mxu0 0.0
    %2305 = vmatprep.subr.mxu0 0.0
    %2306 = vmatpush2.xpose.msra.mxu0 0.0
    %2307 = vmatprep.subr.mxu0 0.0
    %2308 = vmatpush2.xpose.msra.mxu0 0.0
    %2309 = vmatprep.subr.mxu0 0.0
    %2310 = vmatpush2.xpose.msra.mxu0 0.0
    %2311 = vmatprep.subr.mxu0 0.0
    %2312 = vmatpush2.xpose.msra.mxu0 0.0
    %2313 = vmatprep.subr.mxu0 0.0
    %2314 = vmatpush2.xpose.msra.mxu0 0.0
    %2315 = vmatprep.subr.mxu0 0.0
    %2316 = vmatpush2.xpose.msra.mxu0 0.0
    %2317 = vmatprep.subr.mxu0 0.0
    %2318 = vmatpush2.xpose.msra.mxu0 0.0
    %2319 = vmatprep.subr.mxu0 0.0
    %2320 = vmatpush2.xpose.msra.mxu0 0.0
    %2321 = vmatprep.subr.mxu0 0.0
    %2322 = vmatpush2.xpose.msra.mxu0 0.0
    %2323 = vmatprep.subr.mxu0 0.0
    %2324 = vmatpush2.xpose.msra.mxu0 0.0
    %2325 = vmatprep.subr.mxu0 0.0
    %2326 = vmatpush2.xpose.msra.mxu0 0.0
    %2327 = vmatprep.subr.mxu0 0.0
    %2328 = vmatpush2.xpose.msra.mxu0 0.0
    %2329 = vmatprep.subr.mxu0 0.0
    %2330 = vmatpush2.xpose.msra.mxu0 0.0
    %2331 = vmatprep.mubr.f32.mxu0 0.0
    %2332 = vmatmul.mubr.f32.gmra.mxu0 %v2262
    %v2333 = vpop.f32.mrf.mxu0
    %v2334 = vadd.f32 0.0, %v2333
    %v2335 = vpop.f32.mrf.mxu0
    %2336 = vdwg.mxu0
    %v2338 = vsel %vm1880, %v627, 0
    %v2341 = vsel %vm1880, %v1217, 0
    %2343 = vmatprep.subr.mxu0 0.0
    %2344 = vmatpush1.xpose.msra.mxu0 0.0
    %2345 = vmatprep.subr.mxu0 0.0
    %2346 = vmatpush1.xpose.msra.mxu0 0.0
    %2347 = vmatprep.subr.mxu0 0.0
    %2348 = vmatpush1.xpose.msra.mxu0 0.0
    %2349 = vmatprep.subr.mxu0 0.0
    %2350 = vmatpush1.xpose.msra.mxu0 0.0
    %2351 = vmatprep.subr.mxu0 0.0
    %2352 = vmatpush1.xpose.msra.mxu0 0.0
    %2353 = vmatprep.subr.mxu0 0.0
    %2354 = vmatpush1.xpose.msra.mxu0 0.0
    %2355 = vmatprep.subr.mxu0 0.0
    %2356 = vmatpush1.xpose.msra.mxu0 0.0
    %2357 = vmatprep.subr.mxu0 0.0
    %2358 = vmatpush1.xpose.msra.mxu0 0.0
    %2359 = vmatprep.subr.mxu0 0.0
    %2360 = vmatpush1.xpose.msra.mxu0 0.0
    %2361 = vmatprep.subr.mxu0 0.0
    %2362 = vmatpush1.xpose.msra.mxu0 0.0
    %2363 = vmatprep.subr.mxu0 0.0
    %2364 = vmatpush1.xpose.msra.mxu0 0.0
    %2365 = vmatprep.subr.mxu0 0.0
    %2366 = vmatpush1.xpose.msra.mxu0 0.0
    %2367 = vmatprep.subr.mxu0 0.0
    %2368 = vmatpush1.xpose.msra.mxu0 0.0
    %2369 = vmatprep.subr.mxu0 0.0
    %2370 = vmatpush1.xpose.msra.mxu0 0.0
    %2371 = vmatprep.subr.mxu0 0.0
    %2372 = vmatpush1.xpose.msra.mxu0 0.0
    %2373 = vmatprep.subr.mxu0 0.0
    %2374 = vmatpush1.xpose.msra.mxu0 %v2341
    %2375 = vmatprep.subr.mxu0 0.0
    %2376 = vmatpush2.xpose.msra.mxu0 0.0
    %2377 = vmatprep.subr.mxu0 0.0
    %2378 = vmatpush2.xpose.msra.mxu0 0.0
    %2379 = vmatprep.subr.mxu0 0.0
    %2380 = vmatpush2.xpose.msra.mxu0 0.0
    %2381 = vmatprep.subr.mxu0 0.0
    %2382 = vmatpush2.xpose.msra.mxu0 0.0
    %2383 = vmatprep.subr.mxu0 0.0
    %2384 = vmatpush2.xpose.msra.mxu0 0.0
    %2385 = vmatprep.subr.mxu0 0.0
    %2386 = vmatpush2.xpose.msra.mxu0 0.0
    %2387 = vmatprep.subr.mxu0 0.0
    %2388 = vmatpush2.xpose.msra.mxu0 0.0
    %2389 = vmatprep.subr.mxu0 0.0
    %2390 = vmatpush2.xpose.msra.mxu0 0.0
    %2391 = vmatprep.subr.mxu0 0.0
    %2392 = vmatpush2.xpose.msra.mxu0 0.0
    %2393 = vmatprep.subr.mxu0 0.0
    %2394 = vmatpush2.xpose.msra.mxu0 0.0
    %2395 = vmatprep.subr.mxu0 0.0
    %2396 = vmatpush2.xpose.msra.mxu0 0.0
    %2397 = vmatprep.subr.mxu0 0.0
    %2398 = vmatpush2.xpose.msra.mxu0 0.0
    %2399 = vmatprep.subr.mxu0 0.0
    %2400 = vmatpush2.xpose.msra.mxu0 0.0
    %2401 = vmatprep.subr.mxu0 0.0
    %2402 = vmatpush2.xpose.msra.mxu0 0.0
    %2403 = vmatprep.subr.mxu0 0.0
    %2404 = vmatpush2.xpose.msra.mxu0 0.0
    %2405 = vmatprep.subr.mxu0 0.0
    %2406 = vmatpush2.xpose.msra.mxu0 0.0
    %2407 = vmatprep.mubr.f32.mxu0 0.0
    %2408 = vmatmul.mubr.f32.gmra.mxu0 %v2338
    %v2409 = vpop.f32.mrf.mxu0
    %v2410 = vadd.f32 0.0, %v2409
    %v2411 = vpop.f32.mrf.mxu0
    %2412 = vdwg.mxu0
    %v2414 = vsel %vm1880, %v697, 0
    %v2417 = vsel %vm1880, %v1287, 0
    %2419 = vmatprep.subr.mxu0 0.0
    %2420 = vmatpush1.xpose.msra.mxu0 0.0
    %2421 = vmatprep.subr.mxu0 0.0
    %2422 = vmatpush1.xpose.msra.mxu0 0.0
    %2423 = vmatprep.subr.mxu0 0.0
    %2424 = vmatpush1.xpose.msra.mxu0 0.0
    %2425 = vmatprep.subr.mxu0 0.0
    %2426 = vmatpush1.xpose.msra.mxu0 0.0
    %2427 = vmatprep.subr.mxu0 0.0
    %2428 = vmatpush1.xpose.msra.mxu0 0.0
    %2429 = vmatprep.subr.mxu0 0.0
    %2430 = vmatpush1.xpose.msra.mxu0 0.0
    %2431 = vmatprep.subr.mxu0 0.0
    %2432 = vmatpush1.xpose.msra.mxu0 0.0
    %2433 = vmatprep.subr.mxu0 0.0
    %2434 = vmatpush1.xpose.msra.mxu0 0.0
    %2435 = vmatprep.subr.mxu0 0.0
    %2436 = vmatpush1.xpose.msra.mxu0 0.0
    %2437 = vmatprep.subr.mxu0 0.0
    %2438 = vmatpush1.xpose.msra.mxu0 0.0
    %2439 = vmatprep.subr.mxu0 0.0
    %2440 = vmatpush1.xpose.msra.mxu0 0.0
    %2441 = vmatprep.subr.mxu0 0.0
    %2442 = vmatpush1.xpose.msra.mxu0 0.0
    %2443 = vmatprep.subr.mxu0 0.0
    %2444 = vmatpush1.xpose.msra.mxu0 0.0
    %2445 = vmatprep.subr.mxu0 0.0
    %2446 = vmatpush1.xpose.msra.mxu0 0.0
    %2447 = vmatprep.subr.mxu0 0.0
    %2448 = vmatpush1.xpose.msra.mxu0 0.0
    %2449 = vmatprep.subr.mxu0 0.0
    %2450 = vmatpush1.xpose.msra.mxu0 %v2417
    %2451 = vmatprep.subr.mxu0 0.0
    %2452 = vmatpush2.xpose.msra.mxu0 0.0
    %2453 = vmatprep.subr.mxu0 0.0
    %2454 = vmatpush2.xpose.msra.mxu0 0.0
    %2455 = vmatprep.subr.mxu0 0.0
    %2456 = vmatpush2.xpose.msra.mxu0 0.0
    %2457 = vmatprep.subr.mxu0 0.0
    %2458 = vmatpush2.xpose.msra.mxu0 0.0
    %2459 = vmatprep.subr.mxu0 0.0
    %2460 = vmatpush2.xpose.msra.mxu0 0.0
    %2461 = vmatprep.subr.mxu0 0.0
    %2462 = vmatpush2.xpose.msra.mxu0 0.0
    %2463 = vmatprep.subr.mxu0 0.0
    %2464 = vmatpush2.xpose.msra.mxu0 0.0
    %2465 = vmatprep.subr.mxu0 0.0
    %2466 = vmatpush2.xpose.msra.mxu0 0.0
    %2467 = vmatprep.subr.mxu0 0.0
    %2468 = vmatpush2.xpose.msra.mxu0 0.0
    %2469 = vmatprep.subr.mxu0 0.0
    %2470 = vmatpush2.xpose.msra.mxu0 0.0
    %2471 = vmatprep.subr.mxu0 0.0
    %2472 = vmatpush2.xpose.msra.mxu0 0.0
    %2473 = vmatprep.subr.mxu0 0.0
    %2474 = vmatpush2.xpose.msra.mxu0 0.0
    %2475 = vmatprep.subr.mxu0 0.0
    %2476 = vmatpush2.xpose.msra.mxu0 0.0
    %2477 = vmatprep.subr.mxu0 0.0
    %2478 = vmatpush2.xpose.msra.mxu0 0.0
    %2479 = vmatprep.subr.mxu0 0.0
    %2480 = vmatpush2.xpose.msra.mxu0 0.0
    %2481 = vmatprep.subr.mxu0 0.0
    %2482 = vmatpush2.xpose.msra.mxu0 0.0
    %2483 = vmatprep.mubr.f32.mxu0 0.0
    %2484 = vmatmul.mubr.f32.gmra.mxu0 %v2414
    %v2485 = vpop.f32.mrf.mxu0
    %v2486 = vadd.f32 0.0, %v2485
    %v2487 = vpop.f32.mrf.mxu0
    %2488 = vdwg.mxu0
    %v2489 = vmul.f32 %v1954, 0.35355338
    %v2490 = vmul.f32 %v2030, 0.35355338
    %v2491 = vmul.f32 %v2106, 0.35355338
    %v2492 = vmul.f32 %v2182, 0.35355338
    %v2493 = vmul.f32 %v2258, 0.35355338
    %v2494 = vmul.f32 %v2334, 0.35355338
    %v2495 = vmul.f32 %v2410, 0.35355338
    %v2496 = vmul.f32 %v2486, 0.35355338
    %v2497 = vsel %vm1880, %v2489, -inf
    %2498 = vmax.xlane.f32.xlu0 %v2497
    %v2499 = vpop.xlane.xlu0 %2498
    %v2500 = vsel %vm1880, %v2490, -inf
    %2501 = vmax.xlane.f32.xlu0 %v2500
    %v2502 = vpop.xlane.xlu0 %2501
    %v2503 = vsel %vm1880, %v2491, -inf
    %2504 = vmax.xlane.f32.xlu0 %v2503
    %v2505 = vpop.xlane.xlu0 %2504
    %v2506 = vsel %vm1880, %v2492, -inf
    %2507 = vmax.xlane.f32.xlu0 %v2506
    %v2508 = vpop.xlane.xlu0 %2507
    %v2509 = vsel %vm1880, %v2493, -inf
    %2510 = vmax.xlane.f32.xlu0 %v2509
    %v2511 = vpop.xlane.xlu0 %2510
    %v2512 = vsel %vm1880, %v2494, -inf
    %2513 = vmax.xlane.f32.xlu0 %v2512
    %v2514 = vpop.xlane.xlu0 %2513
    %v2515 = vsel %vm1880, %v2495, -inf
    %2516 = vmax.xlane.f32.xlu0 %v2515
    %v2517 = vpop.xlane.xlu0 %2516
    %v2518 = vsel %vm1880, %v2496, -inf
    %2519 = vmax.xlane.f32.xlu0 %v2518
    %v2520 = vpop.xlane.xlu0 %2519
    %v2521 = vsub.f32 %v2489, %v2499
    %v2522 = vsub.f32 %v2490, %v2502
    %v2523 = vsub.f32 %v2491, %v2505
    %v2524 = vsub.f32 %v2492, %v2508
    %v2525 = vsub.f32 %v2493, %v2511
    %v2526 = vsub.f32 %v2494, %v2514
    %v2527 = vsub.f32 %v2495, %v2517
    %v2528 = vsub.f32 %v2496, %v2520
    %v2529 = vmul.f32 %v2521, 1.442695
    %v2530 = vpow.pop %v2529
    %v2531 = vmul.f32 %v2522, 1.442695
    %v2532 = vpow.pop %v2531
    %v2533 = vmul.f32 %v2523, 1.442695
    %v2534 = vpow.pop %v2533
    %v2535 = vmul.f32 %v2524, 1.442695
    %v2536 = vpow.pop %v2535
    %v2537 = vmul.f32 %v2525, 1.442695
    %v2538 = vpow.pop %v2537
    %v2539 = vmul.f32 %v2526, 1.442695
    %v2540 = vpow.pop %v2539
    %v2541 = vmul.f32 %v2527, 1.442695
    %v2542 = vpow.pop %v2541
    %v2543 = vmul.f32 %v2528, 1.442695
    %v2544 = vpow.pop %v2543
    %v2545 = vsel %vm1880, %v2530, 0.0
    %2546 = vadd.xlane.f32.xlu0 %v2545
    %v2547 = vpop.xlane.xlu0 %2546
    %v2548 = vsel %vm1880, %v2532, 0.0
    %2549 = vadd.xlane.f32.xlu0 %v2548
    %v2550 = vpop.xlane.xlu0 %2549
    %v2551 = vsel %vm1880, %v2534, 0.0
    %2552 = vadd.xlane.f32.xlu0 %v2551
    %v2553 = vpop.xlane.xlu0 %2552
    %v2554 = vsel %vm1880, %v2536, 0.0
    %2555 = vadd.xlane.f32.xlu0 %v2554
    %v2556 = vpop.xlane.xlu0 %2555
    %v2557 = vsel %vm1880, %v2538, 0.0
    %2558 = vadd.xlane.f32.xlu0 %v2557
    %v2559 = vpop.xlane.xlu0 %2558
    %v2560 = vsel %vm1880, %v2540, 0.0
    %2561 = vadd.xlane.f32.xlu0 %v2560
    %v2562 = vpop.xlane.xlu0 %2561
    %v2563 = vsel %vm1880, %v2542, 0.0
    %2564 = vadd.xlane.f32.xlu0 %v2563
    %v2565 = vpop.xlane.xlu0 %2564
    %v2566 = vsel %vm1880, %v2544, 0.0
    %2567 = vadd.xlane.f32.xlu0 %v2566
    %v2568 = vpop.xlane.xlu0 %2567
    %v2569 = vrcp.pop %v2547
    %v2570 = vrcp.pop %v2550
    %v2571 = vrcp.pop %v2553
    %v2572 = vrcp.pop %v2556
    %v2573 = vrcp.pop %v2559
    %v2574 = vrcp.pop %v2562
    %v2575 = vrcp.pop %v2565
    %v2576 = vrcp.pop %v2568
    %v2577 = vmul.f32 %v2530, %v2569
    %v2578 = vmul.f32 %v2532, %v2570
    %v2579 = vmul.f32 %v2534, %v2571
    %v2580 = vmul.f32 %v2536, %v2572
    %v2581 = vmul.f32 %v2538, %v2573
    %v2582 = vmul.f32 %v2540, %v2574
    %v2583 = vmul.f32 %v2542, %v2575
    %v2584 = vmul.f32 %v2544, %v2576
    %v2586 = vsel %vm1880, %v2577, 0
    %2588 = vmatprep.subr.mxu0 0.0
    %2589 = vmatpush1.msra.mxu0 0.0
    %2590 = vmatprep.subr.mxu0 0.0
    %2591 = vmatpush1.msra.mxu0 0.0
    %2592 = vmatprep.subr.mxu0 0.0
    %2593 = vmatpush1.msra.mxu0 0.0
    %2594 = vmatprep.subr.mxu0 0.0
    %2595 = vmatpush1.msra.mxu0 0.0
    %2596 = vmatprep.subr.mxu0 0.0
    %2597 = vmatpush1.msra.mxu0 0.0
    %2598 = vmatprep.subr.mxu0 0.0
    %2599 = vmatpush1.msra.mxu0 0.0
    %2600 = vmatprep.subr.mxu0 0.0
    %2601 = vmatpush1.msra.mxu0 0.0
    %2602 = vmatprep.subr.mxu0 0.0
    %2603 = vmatpush1.msra.mxu0 0.0
    %2604 = vmatprep.subr.mxu0 0.0
    %2605 = vmatpush1.msra.mxu0 0.0
    %2606 = vmatprep.subr.mxu0 0.0
    %2607 = vmatpush1.msra.mxu0 0.0
    %2608 = vmatprep.subr.mxu0 0.0
    %2609 = vmatpush1.msra.mxu0 0.0
    %2610 = vmatprep.subr.mxu0 0.0
    %2611 = vmatpush1.msra.mxu0 0.0
    %2612 = vmatprep.subr.mxu0 0.0
    %2613 = vmatpush1.msra.mxu0 0.0
    %2614 = vmatprep.subr.mxu0 0.0
    %2615 = vmatpush1.msra.mxu0 0.0
    %2616 = vmatprep.subr.mxu0 0.0
    %2617 = vmatpush1.msra.mxu0 0.0
    %2618 = vmatprep.subr.mxu0 0.0
    %2619 = vmatpush1.msra.mxu0 %v1384
    %2620 = vmatprep.subr.mxu0 0.0
    %2621 = vmatpush2.msra.mxu0 0.0
    %2622 = vmatprep.subr.mxu0 0.0
    %2623 = vmatpush2.msra.mxu0 0.0
    %2624 = vmatprep.subr.mxu0 0.0
    %2625 = vmatpush2.msra.mxu0 0.0
    %2626 = vmatprep.subr.mxu0 0.0
    %2627 = vmatpush2.msra.mxu0 0.0
    %2628 = vmatprep.subr.mxu0 0.0
    %2629 = vmatpush2.msra.mxu0 0.0
    %2630 = vmatprep.subr.mxu0 0.0
    %2631 = vmatpush2.msra.mxu0 0.0
    %2632 = vmatprep.subr.mxu0 0.0
    %2633 = vmatpush2.msra.mxu0 0.0
    %2634 = vmatprep.subr.mxu0 0.0
    %2635 = vmatpush2.msra.mxu0 0.0
    %2636 = vmatprep.subr.mxu0 0.0
    %2637 = vmatpush2.msra.mxu0 0.0
    %2638 = vmatprep.subr.mxu0 0.0
    %2639 = vmatpush2.msra.mxu0 0.0
    %2640 = vmatprep.subr.mxu0 0.0
    %2641 = vmatpush2.msra.mxu0 0.0
    %2642 = vmatprep.subr.mxu0 0.0
    %2643 = vmatpush2.msra.mxu0 0.0
    %2644 = vmatprep.subr.mxu0 0.0
    %2645 = vmatpush2.msra.mxu0 0.0
    %2646 = vmatprep.subr.mxu0 0.0
    %2647 = vmatpush2.msra.mxu0 0.0
    %2648 = vmatprep.subr.mxu0 0.0
    %2649 = vmatpush2.msra.mxu0 0.0
    %2650 = vmatprep.subr.mxu0 0.0
    %2651 = vmatpush2.msra.mxu0 0.0
    %2652 = vmatprep.mubr.f32.mxu0 0.0
    %2653 = vmatmul.mubr.f32.gmra.mxu0 %v2586
    %v2654 = vpop.f32.mrf.mxu0
    %v2655 = vadd.f32 0.0, %v2654
    %v2656 = vpop.f32.mrf.mxu0
    %2657 = vdwg.mxu0
    %v2659 = vsel %vm1880, %v2578, 0
    %2661 = vmatprep.subr.mxu0 0.0
    %2662 = vmatpush1.msra.mxu0 0.0
    %2663 = vmatprep.subr.mxu0 0.0
    %2664 = vmatpush1.msra.mxu0 0.0
    %2665 = vmatprep.subr.mxu0 0.0
    %2666 = vmatpush1.msra.mxu0 0.0
    %2667 = vmatprep.subr.mxu0 0.0
    %2668 = vmatpush1.msra.mxu0 0.0
    %2669 = vmatprep.subr.mxu0 0.0
    %2670 = vmatpush1.msra.mxu0 0.0
    %2671 = vmatprep.subr.mxu0 0.0
    %2672 = vmatpush1.msra.mxu0 0.0
    %2673 = vmatprep.subr.mxu0 0.0
    %2674 = vmatpush1.msra.mxu0 0.0
    %2675 = vmatprep.subr.mxu0 0.0
    %2676 = vmatpush1.msra.mxu0 0.0
    %2677 = vmatprep.subr.mxu0 0.0
    %2678 = vmatpush1.msra.mxu0 0.0
    %2679 = vmatprep.subr.mxu0 0.0
    %2680 = vmatpush1.msra.mxu0 0.0
    %2681 = vmatprep.subr.mxu0 0.0
    %2682 = vmatpush1.msra.mxu0 0.0
    %2683 = vmatprep.subr.mxu0 0.0
    %2684 = vmatpush1.msra.mxu0 0.0
    %2685 = vmatprep.subr.mxu0 0.0
    %2686 = vmatpush1.msra.mxu0 0.0
    %2687 = vmatprep.subr.mxu0 0.0
    %2688 = vmatpush1.msra.mxu0 0.0
    %2689 = vmatprep.subr.mxu0 0.0
    %2690 = vmatpush1.msra.mxu0 0.0
    %2691 = vmatprep.subr.mxu0 0.0
    %2692 = vmatpush1.msra.mxu0 %v1454
    %2693 = vmatprep.subr.mxu0 0.0
    %2694 = vmatpush2.msra.mxu0 0.0
    %2695 = vmatprep.subr.mxu0 0.0
    %2696 = vmatpush2.msra.mxu0 0.0
    %2697 = vmatprep.subr.mxu0 0.0
    %2698 = vmatpush2.msra.mxu0 0.0
    %2699 = vmatprep.subr.mxu0 0.0
    %2700 = vmatpush2.msra.mxu0 0.0
    %2701 = vmatprep.subr.mxu0 0.0
    %2702 = vmatpush2.msra.mxu0 0.0
    %2703 = vmatprep.subr.mxu0 0.0
    %2704 = vmatpush2.msra.mxu0 0.0
    %2705 = vmatprep.subr.mxu0 0.0
    %2706 = vmatpush2.msra.mxu0 0.0
    %2707 = vmatprep.subr.mxu0 0.0
    %2708 = vmatpush2.msra.mxu0 0.0
    %2709 = vmatprep.subr.mxu0 0.0
    %2710 = vmatpush2.msra.mxu0 0.0
    %2711 = vmatprep.subr.mxu0 0.0
    %2712 = vmatpush2.msra.mxu0 0.0
    %2713 = vmatprep.subr.mxu0 0.0
    %2714 = vmatpush2.msra.mxu0 0.0
    %2715 = vmatprep.subr.mxu0 0.0
    %2716 = vmatpush2.msra.mxu0 0.0
    %2717 = vmatprep.subr.mxu0 0.0
    %2718 = vmatpush2.msra.mxu0 0.0
    %2719 = vmatprep.subr.mxu0 0.0
    %2720 = vmatpush2.msra.mxu0 0.0
    %2721 = vmatprep.subr.mxu0 0.0
    %2722 = vmatpush2.msra.mxu0 0.0
    %2723 = vmatprep.subr.mxu0 0.0
    %2724 = vmatpush2.msra.mxu0 0.0
    %2725 = vmatprep.mubr.f32.mxu0 0.0
    %2726 = vmatmul.mubr.f32.gmra.mxu0 %v2659
    %v2727 = vpop.f32.mrf.mxu0
    %v2728 = vadd.f32 0.0, %v2727
    %v2729 = vpop.f32.mrf.mxu0
    %2730 = vdwg.mxu0
    %v2732 = vsel %vm1880, %v2579, 0
    %2734 = vmatprep.subr.mxu0 0.0
    %2735 = vmatpush1.msra.mxu0 0.0
    %2736 = vmatprep.subr.mxu0 0.0
    %2737 = vmatpush1.msra.mxu0 0.0
    %2738 = vmatprep.subr.mxu0 0.0
    %2739 = vmatpush1.msra.mxu0 0.0
    %2740 = vmatprep.subr.mxu0 0.0
    %2741 = vmatpush1.msra.mxu0 0.0
    %2742 = vmatprep.subr.mxu0 0.0
    %2743 = vmatpush1.msra.mxu0 0.0
    %2744 = vmatprep.subr.mxu0 0.0
    %2745 = vmatpush1.msra.mxu0 0.0
    %2746 = vmatprep.subr.mxu0 0.0
    %2747 = vmatpush1.msra.mxu0 0.0
    %2748 = vmatprep.subr.mxu0 0.0
    %2749 = vmatpush1.msra.mxu0 0.0
    %2750 = vmatprep.subr.mxu0 0.0
    %2751 = vmatpush1.msra.mxu0 0.0
    %2752 = vmatprep.subr.mxu0 0.0
    %2753 = vmatpush1.msra.mxu0 0.0
    %2754 = vmatprep.subr.mxu0 0.0
    %2755 = vmatpush1.msra.mxu0 0.0
    %2756 = vmatprep.subr.mxu0 0.0
    %2757 = vmatpush1.msra.mxu0 0.0
    %2758 = vmatprep.subr.mxu0 0.0
    %2759 = vmatpush1.msra.mxu0 0.0
    %2760 = vmatprep.subr.mxu0 0.0
    %2761 = vmatpush1.msra.mxu0 0.0
    %2762 = vmatprep.subr.mxu0 0.0
    %2763 = vmatpush1.msra.mxu0 0.0
    %2764 = vmatprep.subr.mxu0 0.0
    %2765 = vmatpush1.msra.mxu0 %v1524
    %2766 = vmatprep.subr.mxu0 0.0
    %2767 = vmatpush2.msra.mxu0 0.0
    %2768 = vmatprep.subr.mxu0 0.0
    %2769 = vmatpush2.msra.mxu0 0.0
    %2770 = vmatprep.subr.mxu0 0.0
    %2771 = vmatpush2.msra.mxu0 0.0
    %2772 = vmatprep.subr.mxu0 0.0
    %2773 = vmatpush2.msra.mxu0 0.0
    %2774 = vmatprep.subr.mxu0 0.0
    %2775 = vmatpush2.msra.mxu0 0.0
    %2776 = vmatprep.subr.mxu0 0.0
    %2777 = vmatpush2.msra.mxu0 0.0
    %2778 = vmatprep.subr.mxu0 0.0
    %2779 = vmatpush2.msra.mxu0 0.0
    %2780 = vmatprep.subr.mxu0 0.0
    %2781 = vmatpush2.msra.mxu0 0.0
    %2782 = vmatprep.subr.mxu0 0.0
    %2783 = vmatpush2.msra.mxu0 0.0
    %2784 = vmatprep.subr.mxu0 0.0
    %2785 = vmatpush2.msra.mxu0 0.0
    %2786 = vmatprep.subr.mxu0 0.0
    %2787 = vmatpush2.msra.mxu0 0.0
    %2788 = vmatprep.subr.mxu0 0.0
    %2789 = vmatpush2.msra.mxu0 0.0
    %2790 = vmatprep.subr.mxu0 0.0
    %2791 = vmatpush2.msra.mxu0 0.0
    %2792 = vmatprep.subr.mxu0 0.0
    %2793 = vmatpush2.msra.mxu0 0.0
    %2794 = vmatprep.subr.mxu0 0.0
    %2795 = vmatpush2.msra.mxu0 0.0
    %2796 = vmatprep.subr.mxu0 0.0
    %2797 = vmatpush2.msra.mxu0 0.0
    %2798 = vmatprep.mubr.f32.mxu0 0.0
    %2799 = vmatmul.mubr.f32.gmra.mxu0 %v2732
    %v2800 = vpop.f32.mrf.mxu0
    %v2801 = vadd.f32 0.0, %v2800
    %v2802 = vpop.f32.mrf.mxu0
    %2803 = vdwg.mxu0
    %v2805 = vsel %vm1880, %v2580, 0
    %2807 = vmatprep.subr.mxu0 0.0
    %2808 = vmatpush1.msra.mxu0 0.0
    %2809 = vmatprep.subr.mxu0 0.0
    %2810 = vmatpush1.msra.mxu0 0.0
    %2811 = vmatprep.subr.mxu0 0.0
    %2812 = vmatpush1.msra.mxu0 0.0
    %2813 = vmatprep.subr.mxu0 0.0
    %2814 = vmatpush1.msra.mxu0 0.0
    %2815 = vmatprep.subr.mxu0 0.0
    %2816 = vmatpush1.msra.mxu0 0.0
    %2817 = vmatprep.subr.mxu0 0.0
    %2818 = vmatpush1.msra.mxu0 0.0
    %2819 = vmatprep.subr.mxu0 0.0
    %2820 = vmatpush1.msra.mxu0 0.0
    %2821 = vmatprep.subr.mxu0 0.0
    %2822 = vmatpush1.msra.mxu0 0.0
    %2823 = vmatprep.subr.mxu0 0.0
    %2824 = vmatpush1.msra.mxu0 0.0
    %2825 = vmatprep.subr.mxu0 0.0
    %2826 = vmatpush1.msra.mxu0 0.0
    %2827 = vmatprep.subr.mxu0 0.0
    %2828 = vmatpush1.msra.mxu0 0.0
    %2829 = vmatprep.subr.mxu0 0.0
    %2830 = vmatpush1.msra.mxu0 0.0
    %2831 = vmatprep.subr.mxu0 0.0
    %2832 = vmatpush1.msra.mxu0 0.0
    %2833 = vmatprep.subr.mxu0 0.0
    %2834 = vmatpush1.msra.mxu0 0.0
    %2835 = vmatprep.subr.mxu0 0.0
    %2836 = vmatpush1.msra.mxu0 0.0
    %2837 = vmatprep.subr.mxu0 0.0
    %2838 = vmatpush1.msra.mxu0 %v1594
    %2839 = vmatprep.subr.mxu0 0.0
    %2840 = vmatpush2.msra.mxu0 0.0
    %2841 = vmatprep.subr.mxu0 0.0
    %2842 = vmatpush2.msra.mxu0 0.0
    %2843 = vmatprep.subr.mxu0 0.0
    %2844 = vmatpush2.msra.mxu0 0.0
    %2845 = vmatprep.subr.mxu0 0.0
    %2846 = vmatpush2.msra.mxu0 0.0
    %2847 = vmatprep.subr.mxu0 0.0
    %2848 = vmatpush2.msra.mxu0 0.0
    %2849 = vmatprep.subr.mxu0 0.0
    %2850 = vmatpush2.msra.mxu0 0.0
    %2851 = vmatprep.subr.mxu0 0.0
    %2852 = vmatpush2.msra.mxu0 0.0
    %2853 = vmatprep.subr.mxu0 0.0
    %2854 = vmatpush2.msra.mxu0 0.0
    %2855 = vmatprep.subr.mxu0 0.0
    %2856 = vmatpush2.msra.mxu0 0.0
    %2857 = vmatprep.subr.mxu0 0.0
    %2858 = vmatpush2.msra.mxu0 0.0
    %2859 = vmatprep.subr.mxu0 0.0
    %2860 = vmatpush2.msra.mxu0 0.0
    %2861 = vmatprep.subr.mxu0 0.0
    %2862 = vmatpush2.msra.mxu0 0.0
    %2863 = vmatprep.subr.mxu0 0.0
    %2864 = vmatpush2.msra.mxu0 0.0
    %2865 = vmatprep.subr.mxu0 0.0
    %2866 = vmatpush2.msra.mxu0 0.0
    %2867 = vmatprep.subr.mxu0 0.0
    %2868 = vmatpush2.msra.mxu0 0.0
    %2869 = vmatprep.subr.mxu0 0.0
    %2870 = vmatpush2.msra.mxu0 0.0
    %2871 = vmatprep.mubr.f32.mxu0 0.0
    %2872 = vmatmul.mubr.f32.gmra.mxu0 %v2805
    %v2873 = vpop.f32.mrf.mxu0
    %v2874 = vadd.f32 0.0, %v2873
    %v2875 = vpop.f32.mrf.mxu0
    %2876 = vdwg.mxu0
    %v2878 = vsel %vm1880, %v2581, 0
    %2880 = vmatprep.subr.mxu0 0.0
    %2881 = vmatpush1.msra.mxu0 0.0
    %2882 = vmatprep.subr.mxu0 0.0
    %2883 = vmatpush1.msra.mxu0 0.0
    %2884 = vmatprep.subr.mxu0 0.0
    %2885 = vmatpush1.msra.mxu0 0.0
    %2886 = vmatprep.subr.mxu0 0.0
    %2887 = vmatpush1.msra.mxu0 0.0
    %2888 = vmatprep.subr.mxu0 0.0
    %2889 = vmatpush1.msra.mxu0 0.0
    %2890 = vmatprep.subr.mxu0 0.0
    %2891 = vmatpush1.msra.mxu0 0.0
    %2892 = vmatprep.subr.mxu0 0.0
    %2893 = vmatpush1.msra.mxu0 0.0
    %2894 = vmatprep.subr.mxu0 0.0
    %2895 = vmatpush1.msra.mxu0 0.0
    %2896 = vmatprep.subr.mxu0 0.0
    %2897 = vmatpush1.msra.mxu0 0.0
    %2898 = vmatprep.subr.mxu0 0.0
    %2899 = vmatpush1.msra.mxu0 0.0
    %2900 = vmatprep.subr.mxu0 0.0
    %2901 = vmatpush1.msra.mxu0 0.0
    %2902 = vmatprep.subr.mxu0 0.0
    %2903 = vmatpush1.msra.mxu0 0.0
    %2904 = vmatprep.subr.mxu0 0.0
    %2905 = vmatpush1.msra.mxu0 0.0
    %2906 = vmatprep.subr.mxu0 0.0
    %2907 = vmatpush1.msra.mxu0 0.0
    %2908 = vmatprep.subr.mxu0 0.0
    %2909 = vmatpush1.msra.mxu0 0.0
    %2910 = vmatprep.subr.mxu0 0.0
    %2911 = vmatpush1.msra.mxu0 %v1667
    %2912 = vmatprep.subr.mxu0 0.0
    %2913 = vmatpush2.msra.mxu0 0.0
    %2914 = vmatprep.subr.mxu0 0.0
    %2915 = vmatpush2.msra.mxu0 0.0
    %2916 = vmatprep.subr.mxu0 0.0
    %2917 = vmatpush2.msra.mxu0 0.0
    %2918 = vmatprep.subr.mxu0 0.0
    %2919 = vmatpush2.msra.mxu0 0.0
    %2920 = vmatprep.subr.mxu0 0.0
    %2921 = vmatpush2.msra.mxu0 0.0
    %2922 = vmatprep.subr.mxu0 0.0
    %2923 = vmatpush2.msra.mxu0 0.0
    %2924 = vmatprep.subr.mxu0 0.0
    %2925 = vmatpush2.msra.mxu0 0.0
    %2926 = vmatprep.subr.mxu0 0.0
    %2927 = vmatpush2.msra.mxu0 0.0
    %2928 = vmatprep.subr.mxu0 0.0
    %2929 = vmatpush2.msra.mxu0 0.0
    %2930 = vmatprep.subr.mxu0 0.0
    %2931 = vmatpush2.msra.mxu0 0.0
    %2932 = vmatprep.subr.mxu0 0.0
    %2933 = vmatpush2.msra.mxu0 0.0
    %2934 = vmatprep.subr.mxu0 0.0
    %2935 = vmatpush2.msra.mxu0 0.0
    %2936 = vmatprep.subr.mxu0 0.0
    %2937 = vmatpush2.msra.mxu0 0.0
    %2938 = vmatprep.subr.mxu0 0.0
    %2939 = vmatpush2.msra.mxu0 0.0
    %2940 = vmatprep.subr.mxu0 0.0
    %2941 = vmatpush2.msra.mxu0 0.0
    %2942 = vmatprep.subr.mxu0 0.0
    %2943 = vmatpush2.msra.mxu0 0.0
    %2944 = vmatprep.mubr.f32.mxu0 0.0
    %2945 = vmatmul.mubr.f32.gmra.mxu0 %v2878
    %v2946 = vpop.f32.mrf.mxu0
    %v2947 = vadd.f32 0.0, %v2946
    %v2948 = vpop.f32.mrf.mxu0
    %2949 = vdwg.mxu0
    %v2951 = vsel %vm1880, %v2582, 0
    %2953 = vmatprep.subr.mxu0 0.0
    %2954 = vmatpush1.msra.mxu0 0.0
    %2955 = vmatprep.subr.mxu0 0.0
    %2956 = vmatpush1.msra.mxu0 0.0
    %2957 = vmatprep.subr.mxu0 0.0
    %2958 = vmatpush1.msra.mxu0 0.0
    %2959 = vmatprep.subr.mxu0 0.0
    %2960 = vmatpush1.msra.mxu0 0.0
    %2961 = vmatprep.subr.mxu0 0.0
    %2962 = vmatpush1.msra.mxu0 0.0
    %2963 = vmatprep.subr.mxu0 0.0
    %2964 = vmatpush1.msra.mxu0 0.0
    %2965 = vmatprep.subr.mxu0 0.0
    %2966 = vmatpush1.msra.mxu0 0.0
    %2967 = vmatprep.subr.mxu0 0.0
    %2968 = vmatpush1.msra.mxu0 0.0
    %2969 = vmatprep.subr.mxu0 0.0
    %2970 = vmatpush1.msra.mxu0 0.0
    %2971 = vmatprep.subr.mxu0 0.0
    %2972 = vmatpush1.msra.mxu0 0.0
    %2973 = vmatprep.subr.mxu0 0.0
    %2974 = vmatpush1.msra.mxu0 0.0
    %2975 = vmatprep.subr.mxu0 0.0
    %2976 = vmatpush1.msra.mxu0 0.0
    %2977 = vmatprep.subr.mxu0 0.0
    %2978 = vmatpush1.msra.mxu0 0.0
    %2979 = vmatprep.subr.mxu0 0.0
    %2980 = vmatpush1.msra.mxu0 0.0
    %2981 = vmatprep.subr.mxu0 0.0
    %2982 = vmatpush1.msra.mxu0 0.0
    %2983 = vmatprep.subr.mxu0 0.0
    %2984 = vmatpush1.msra.mxu0 %v1737
    %2985 = vmatprep.subr.mxu0 0.0
    %2986 = vmatpush2.msra.mxu0 0.0
    %2987 = vmatprep.subr.mxu0 0.0
    %2988 = vmatpush2.msra.mxu0 0.0
    %2989 = vmatprep.subr.mxu0 0.0
    %2990 = vmatpush2.msra.mxu0 0.0
    %2991 = vmatprep.subr.mxu0 0.0
    %2992 = vmatpush2.msra.mxu0 0.0
    %2993 = vmatprep.subr.mxu0 0.0
    %2994 = vmatpush2.msra.mxu0 0.0
    %2995 = vmatprep.subr.mxu0 0.0
    %2996 = vmatpush2.msra.mxu0 0.0
    %2997 = vmatprep.subr.mxu0 0.0
    %2998 = vmatpush2.msra.mxu0 0.0
    %2999 = vmatprep.subr.mxu0 0.0
    %3000 = vmatpush2.msra.mxu0 0.0
    %3001 = vmatprep.subr.mxu0 0.0
    %3002 = vmatpush2.msra.mxu0 0.0
    %3003 = vmatprep.subr.mxu0 0.0
    %3004 = vmatpush2.msra.mxu0 0.0
    %3005 = vmatprep.subr.mxu0 0.0
    %3006 = vmatpush2.msra.mxu0 0.0
    %3007 = vmatprep.subr.mxu0 0.0
    %3008 = vmatpush2.msra.mxu0 0.0
    %3009 = vmatprep.subr.mxu0 0.0
    %3010 = vmatpush2.msra.mxu0 0.0
    %3011 = vmatprep.subr.mxu0 0.0
    %3012 = vmatpush2.msra.mxu0 0.0
    %3013 = vmatprep.subr.mxu0 0.0
    %3014 = vmatpush2.msra.mxu0 0.0
    %3015 = vmatprep.subr.mxu0 0.0
    %3016 = vmatpush2.msra.mxu0 0.0
    %3017 = vmatprep.mubr.f32.mxu0 0.0
    %3018 = vmatmul.mubr.f32.gmra.mxu0 %v2951
    %v3019 = vpop.f32.mrf.mxu0
    %v3020 = vadd.f32 0.0, %v3019
    %v3021 = vpop.f32.mrf.mxu0
    %3022 = vdwg.mxu0
    %v3024 = vsel %vm1880, %v2583, 0
    %3026 = vmatprep.subr.mxu0 0.0
    %3027 = vmatpush1.msra.mxu0 0.0
    %3028 = vmatprep.subr.mxu0 0.0
    %3029 = vmatpush1.msra.mxu0 0.0
    %3030 = vmatprep.subr.mxu0 0.0
    %3031 = vmatpush1.msra.mxu0 0.0
    %3032 = vmatprep.subr.mxu0 0.0
    %3033 = vmatpush1.msra.mxu0 0.0
    %3034 = vmatprep.subr.mxu0 0.0
    %3035 = vmatpush1.msra.mxu0 0.0
    %3036 = vmatprep.subr.mxu0 0.0
    %3037 = vmatpush1.msra.mxu0 0.0
    %3038 = vmatprep.subr.mxu0 0.0
    %3039 = vmatpush1.msra.mxu0 0.0
    %3040 = vmatprep.subr.mxu0 0.0
    %3041 = vmatpush1.msra.mxu0 0.0
    %3042 = vmatprep.subr.mxu0 0.0
    %3043 = vmatpush1.msra.mxu0 0.0
    %3044 = vmatprep.subr.mxu0 0.0
    %3045 = vmatpush1.msra.mxu0 0.0
    %3046 = vmatprep.subr.mxu0 0.0
    %3047 = vmatpush1.msra.mxu0 0.0
    %3048 = vmatprep.subr.mxu0 0.0
    %3049 = vmatpush1.msra.mxu0 0.0
    %3050 = vmatprep.subr.mxu0 0.0
    %3051 = vmatpush1.msra.mxu0 0.0
    %3052 = vmatprep.subr.mxu0 0.0
    %3053 = vmatpush1.msra.mxu0 0.0
    %3054 = vmatprep.subr.mxu0 0.0
    %3055 = vmatpush1.msra.mxu0 0.0
    %3056 = vmatprep.subr.mxu0 0.0
    %3057 = vmatpush1.msra.mxu0 %v1807
    %3058 = vmatprep.subr.mxu0 0.0
    %3059 = vmatpush2.msra.mxu0 0.0
    %3060 = vmatprep.subr.mxu0 0.0
    %3061 = vmatpush2.msra.mxu0 0.0
    %3062 = vmatprep.subr.mxu0 0.0
    %3063 = vmatpush2.msra.mxu0 0.0
    %3064 = vmatprep.subr.mxu0 0.0
    %3065 = vmatpush2.msra.mxu0 0.0
    %3066 = vmatprep.subr.mxu0 0.0
    %3067 = vmatpush2.msra.mxu0 0.0
    %3068 = vmatprep.subr.mxu0 0.0
    %3069 = vmatpush2.msra.mxu0 0.0
    %3070 = vmatprep.subr.mxu0 0.0
    %3071 = vmatpush2.msra.mxu0 0.0
    %3072 = vmatprep.subr.mxu0 0.0
    %3073 = vmatpush2.msra.mxu0 0.0
    %3074 = vmatprep.subr.mxu0 0.0
    %3075 = vmatpush2.msra.mxu0 0.0
    %3076 = vmatprep.subr.mxu0 0.0
    %3077 = vmatpush2.msra.mxu0 0.0
    %3078 = vmatprep.subr.mxu0 0.0
    %3079 = vmatpush2.msra.mxu0 0.0
    %3080 = vmatprep.subr.mxu0 0.0
    %3081 = vmatpush2.msra.mxu0 0.0
    %3082 = vmatprep.subr.mxu0 0.0
    %3083 = vmatpush2.msra.mxu0 0.0
    %3084 = vmatprep.subr.mxu0 0.0
    %3085 = vmatpush2.msra.mxu0 0.0
    %3086 = vmatprep.subr.mxu0 0.0
    %3087 = vmatpush2.msra.mxu0 0.0
    %3088 = vmatprep.subr.mxu0 0.0
    %3089 = vmatpush2.msra.mxu0 0.0
    %3090 = vmatprep.mubr.f32.mxu0 0.0
    %3091 = vmatmul.mubr.f32.gmra.mxu0 %v3024
    %v3092 = vpop.f32.mrf.mxu0
    %v3093 = vadd.f32 0.0, %v3092
    %v3094 = vpop.f32.mrf.mxu0
    %3095 = vdwg.mxu0
    %v3097 = vsel %vm1880, %v2584, 0
    %3099 = vmatprep.subr.mxu0 0.0
    %3100 = vmatpush1.msra.mxu0 0.0
    %3101 = vmatprep.subr.mxu0 0.0
    %3102 = vmatpush1.msra.mxu0 0.0
    %3103 = vmatprep.subr.mxu0 0.0
    %3104 = vmatpush1.msra.mxu0 0.0
    %3105 = vmatprep.subr.mxu0 0.0
    %3106 = vmatpush1.msra.mxu0 0.0
    %3107 = vmatprep.subr.mxu0 0.0
    %3108 = vmatpush1.msra.mxu0 0.0
    %3109 = vmatprep.subr.mxu0 0.0
    %3110 = vmatpush1.msra.mxu0 0.0
    %3111 = vmatprep.subr.mxu0 0.0
    %3112 = vmatpush1.msra.mxu0 0.0
    %3113 = vmatprep.subr.mxu0 0.0
    %3114 = vmatpush1.msra.mxu0 0.0
    %3115 = vmatprep.subr.mxu0 0.0
    %3116 = vmatpush1.msra.mxu0 0.0
    %3117 = vmatprep.subr.mxu0 0.0
    %3118 = vmatpush1.msra.mxu0 0.0
    %3119 = vmatprep.subr.mxu0 0.0
    %3120 = vmatpush1.msra.mxu0 0.0
    %3121 = vmatprep.subr.mxu0 0.0
    %3122 = vmatpush1.msra.mxu0 0.0
    %3123 = vmatprep.subr.mxu0 0.0
    %3124 = vmatpush1.msra.mxu0 0.0
    %3125 = vmatprep.subr.mxu0 0.0
    %3126 = vmatpush1.msra.mxu0 0.0
    %3127 = vmatprep.subr.mxu0 0.0
    %3128 = vmatpush1.msra.mxu0 0.0
    %3129 = vmatprep.subr.mxu0 0.0
    %3130 = vmatpush1.msra.mxu0 %v1877
    %3131 = vmatprep.subr.mxu0 0.0
    %3132 = vmatpush2.msra.mxu0 0.0
    %3133 = vmatprep.subr.mxu0 0.0
    %3134 = vmatpush2.msra.mxu0 0.0
    %3135 = vmatprep.subr.mxu0 0.0
    %3136 = vmatpush2.msra.mxu0 0.0
    %3137 = vmatprep.subr.mxu0 0.0
    %3138 = vmatpush2.msra.mxu0 0.0
    %3139 = vmatprep.subr.mxu0 0.0
    %3140 = vmatpush2.msra.mxu0 0.0
    %3141 = vmatprep.subr.mxu0 0.0
    %3142 = vmatpush2.msra.mxu0 0.0
    %3143 = vmatprep.subr.mxu0 0.0
    %3144 = vmatpush2.msra.mxu0 0.0
    %3145 = vmatprep.subr.mxu0 0.0
    %3146 = vmatpush2.msra.mxu0 0.0
    %3147 = vmatprep.subr.mxu0 0.0
    %3148 = vmatpush2.msra.mxu0 0.0
    %3149 = vmatprep.subr.mxu0 0.0
    %3150 = vmatpush2.msra.mxu0 0.0
    %3151 = vmatprep.subr.mxu0 0.0
    %3152 = vmatpush2.msra.mxu0 0.0
    %3153 = vmatprep.subr.mxu0 0.0
    %3154 = vmatpush2.msra.mxu0 0.0
    %3155 = vmatprep.subr.mxu0 0.0
    %3156 = vmatpush2.msra.mxu0 0.0
    %3157 = vmatprep.subr.mxu0 0.0
    %3158 = vmatpush2.msra.mxu0 0.0
    %3159 = vmatprep.subr.mxu0 0.0
    %3160 = vmatpush2.msra.mxu0 0.0
    %3161 = vmatprep.subr.mxu0 0.0
    %3162 = vmatpush2.msra.mxu0 0.0
    %3163 = vmatprep.mubr.f32.mxu0 0.0
    %3164 = vmatmul.mubr.f32.gmra.mxu0 %v3097
    %v3165 = vpop.f32.mrf.mxu0
    %v3166 = vadd.f32 0.0, %v3165
    %v3167 = vpop.f32.mrf.mxu0
    %3168 = vdwg.mxu0
    %v3170 = vsel %vm1880, %v2655, 0
    %3172 = vmatprep.subr.mxu0 0.0
    %3173 = vmatpush1.msra.mxu0 0.0
    %3174 = vmatprep.subr.mxu0 0.0
    %3175 = vmatpush1.msra.mxu0 0.0
    %3176 = vmatprep.subr.mxu0 0.0
    %3177 = vmatpush1.msra.mxu0 0.0
    %3178 = vmatprep.subr.mxu0 0.0
    %3179 = vmatpush1.msra.mxu0 0.0
    %3180 = vmatprep.subr.mxu0 0.0
    %3181 = vmatpush1.msra.mxu0 0.0
    %3182 = vmatprep.subr.mxu0 0.0
    %3183 = vmatpush1.msra.mxu0 0.0
    %3184 = vmatprep.subr.mxu0 0.0
    %3185 = vmatpush1.msra.mxu0 0.0
    %3186 = vmatprep.subr.mxu0 0.0
    %3187 = vmatpush1.msra.mxu0 0.0
    %3188 = vmatprep.subr.mxu0 0.0
    %3189 = vmatpush1.msra.mxu0 0.0
    %3190 = vmatprep.subr.mxu0 0.0
    %3191 = vmatpush1.msra.mxu0 0.0
    %3192 = vmatprep.subr.mxu0 0.0
    %3193 = vmatpush1.msra.mxu0 0.0
    %3194 = vmatprep.subr.mxu0 0.0
    %3195 = vmatpush1.msra.mxu0 0.0
    %3196 = vmatprep.subr.mxu0 0.0
    %3197 = vmatpush1.msra.mxu0 0.0
    %3198 = vmatprep.subr.mxu0 0.0
    %3199 = vmatpush1.msra.mxu0 0.0
    %3200 = vmatprep.subr.mxu0 0.0
    %3201 = vmatpush1.msra.mxu0 0.0
    %3202 = vmatprep.subr.mxu0 0.0
    %3203 = vmatpush1.msra.mxu0 %v93
    %3204 = vmatprep.subr.mxu0 0.0
    %3205 = vmatpush2.msra.mxu0 0.0
    %3206 = vmatprep.subr.mxu0 0.0
    %3207 = vmatpush2.msra.mxu0 0.0
    %3208 = vmatprep.subr.mxu0 0.0
    %3209 = vmatpush2.msra.mxu0 0.0
    %3210 = vmatprep.subr.mxu0 0.0
    %3211 = vmatpush2.msra.mxu0 0.0
    %3212 = vmatprep.subr.mxu0 0.0
    %3213 = vmatpush2.msra.mxu0 0.0
    %3214 = vmatprep.subr.mxu0 0.0
    %3215 = vmatpush2.msra.mxu0 0.0
    %3216 = vmatprep.subr.mxu0 0.0
    %3217 = vmatpush2.msra.mxu0 0.0
    %3218 = vmatprep.subr.mxu0 0.0
    %3219 = vmatpush2.msra.mxu0 0.0
    %3220 = vmatprep.subr.mxu0 0.0
    %3221 = vmatpush2.msra.mxu0 0.0
    %3222 = vmatprep.subr.mxu0 0.0
    %3223 = vmatpush2.msra.mxu0 0.0
    %3224 = vmatprep.subr.mxu0 0.0
    %3225 = vmatpush2.msra.mxu0 0.0
    %3226 = vmatprep.subr.mxu0 0.0
    %3227 = vmatpush2.msra.mxu0 0.0
    %3228 = vmatprep.subr.mxu0 0.0
    %3229 = vmatpush2.msra.mxu0 0.0
    %3230 = vmatprep.subr.mxu0 0.0
    %3231 = vmatpush2.msra.mxu0 0.0
    %3232 = vmatprep.subr.mxu0 0.0
    %3233 = vmatpush2.msra.mxu0 0.0
    %3234 = vmatprep.subr.mxu0 0.0
    %3235 = vmatpush2.msra.mxu0 0.0
    %3236 = vmatprep.mubr.f32.mxu0 0.0
    %3237 = vmatmul.mubr.f32.gmra.mxu0 %v3170
    %v3238 = vpop.f32.mrf.mxu0
    %v3239 = vadd.f32 0.0, %v3238
    %v3240 = vpop.f32.mrf.mxu0
    %3241 = vdwg.mxu0
    %v3243 = vsel %vm1880, %v2728, 0
    %3245 = vmatprep.subr.mxu0 0.0
    %3246 = vmatpush1.msra.mxu0 0.0
    %3247 = vmatprep.subr.mxu0 0.0
    %3248 = vmatpush1.msra.mxu0 0.0
    %3249 = vmatprep.subr.mxu0 0.0
    %3250 = vmatpush1.msra.mxu0 0.0
    %3251 = vmatprep.subr.mxu0 0.0
    %3252 = vmatpush1.msra.mxu0 0.0
    %3253 = vmatprep.subr.mxu0 0.0
    %3254 = vmatpush1.msra.mxu0 0.0
    %3255 = vmatprep.subr.mxu0 0.0
    %3256 = vmatpush1.msra.mxu0 0.0
    %3257 = vmatprep.subr.mxu0 0.0
    %3258 = vmatpush1.msra.mxu0 0.0
    %3259 = vmatprep.subr.mxu0 0.0
    %3260 = vmatpush1.msra.mxu0 0.0
    %3261 = vmatprep.subr.mxu0 0.0
    %3262 = vmatpush1.msra.mxu0 0.0
    %3263 = vmatprep.subr.mxu0 0.0
    %3264 = vmatpush1.msra.mxu0 0.0
    %3265 = vmatprep.subr.mxu0 0.0
    %3266 = vmatpush1.msra.mxu0 0.0
    %3267 = vmatprep.subr.mxu0 0.0
    %3268 = vmatpush1.msra.mxu0 0.0
    %3269 = vmatprep.subr.mxu0 0.0
    %3270 = vmatpush1.msra.mxu0 0.0
    %3271 = vmatprep.subr.mxu0 0.0
    %3272 = vmatpush1.msra.mxu0 0.0
    %3273 = vmatprep.subr.mxu0 0.0
    %3274 = vmatpush1.msra.mxu0 0.0
    %3275 = vmatprep.subr.mxu0 0.0
    %3276 = vmatpush1.msra.mxu0 %v94
    %3277 = vmatprep.subr.mxu0 0.0
    %3278 = vmatpush2.msra.mxu0 0.0
    %3279 = vmatprep.subr.mxu0 0.0
    %3280 = vmatpush2.msra.mxu0 0.0
    %3281 = vmatprep.subr.mxu0 0.0
    %3282 = vmatpush2.msra.mxu0 0.0
    %3283 = vmatprep.subr.mxu0 0.0
    %3284 = vmatpush2.msra.mxu0 0.0
    %3285 = vmatprep.subr.mxu0 0.0
    %3286 = vmatpush2.msra.mxu0 0.0
    %3287 = vmatprep.subr.mxu0 0.0
    %3288 = vmatpush2.msra.mxu0 0.0
    %3289 = vmatprep.subr.mxu0 0.0
    %3290 = vmatpush2.msra.mxu0 0.0
    %3291 = vmatprep.subr.mxu0 0.0
    %3292 = vmatpush2.msra.mxu0 0.0
    %3293 = vmatprep.subr.mxu0 0.0
    %3294 = vmatpush2.msra.mxu0 0.0
    %3295 = vmatprep.subr.mxu0 0.0
    %3296 = vmatpush2.msra.mxu0 0.0
    %3297 = vmatprep.subr.mxu0 0.0
    %3298 = vmatpush2.msra.mxu0 0.0
    %3299 = vmatprep.subr.mxu0 0.0
    %3300 = vmatpush2.msra.mxu0 0.0
    %3301 = vmatprep.subr.mxu0 0.0
    %3302 = vmatpush2.msra.mxu0 0.0
    %3303 = vmatprep.subr.mxu0 0.0
    %3304 = vmatpush2.msra.mxu0 0.0
    %3305 = vmatprep.subr.mxu0 0.0
    %3306 = vmatpush2.msra.mxu0 0.0
    %3307 = vmatprep.subr.mxu0 0.0
    %3308 = vmatpush2.msra.mxu0 0.0
    %3309 = vmatprep.mubr.f32.mxu0 0.0
    %3310 = vmatmul.mubr.f32.gmra.mxu0 %v3243
    %v3311 = vpop.f32.mrf.mxu0
    %v3312 = vadd.f32 0.0, %v3311
    %v3313 = vpop.f32.mrf.mxu0
    %3314 = vdwg.mxu0
    %v3316 = vsel %vm1880, %v2801, 0
    %3318 = vmatprep.subr.mxu0 0.0
    %3319 = vmatpush1.msra.mxu0 0.0
    %3320 = vmatprep.subr.mxu0 0.0
    %3321 = vmatpush1.msra.mxu0 0.0
    %3322 = vmatprep.subr.mxu0 0.0
    %3323 = vmatpush1.msra.mxu0 0.0
    %3324 = vmatprep.subr.mxu0 0.0
    %3325 = vmatpush1.msra.mxu0 0.0
    %3326 = vmatprep.subr.mxu0 0.0
    %3327 = vmatpush1.msra.mxu0 0.0
    %3328 = vmatprep.subr.mxu0 0.0
    %3329 = vmatpush1.msra.mxu0 0.0
    %3330 = vmatprep.subr.mxu0 0.0
    %3331 = vmatpush1.msra.mxu0 0.0
    %3332 = vmatprep.subr.mxu0 0.0
    %3333 = vmatpush1.msra.mxu0 0.0
    %3334 = vmatprep.subr.mxu0 0.0
    %3335 = vmatpush1.msra.mxu0 0.0
    %3336 = vmatprep.subr.mxu0 0.0
    %3337 = vmatpush1.msra.mxu0 0.0
    %3338 = vmatprep.subr.mxu0 0.0
    %3339 = vmatpush1.msra.mxu0 0.0
    %3340 = vmatprep.subr.mxu0 0.0
    %3341 = vmatpush1.msra.mxu0 0.0
    %3342 = vmatprep.subr.mxu0 0.0
    %3343 = vmatpush1.msra.mxu0 0.0
    %3344 = vmatprep.subr.mxu0 0.0
    %3345 = vmatpush1.msra.mxu0 0.0
    %3346 = vmatprep.subr.mxu0 0.0
    %3347 = vmatpush1.msra.mxu0 0.0
    %3348 = vmatprep.subr.mxu0 0.0
    %3349 = vmatpush1.msra.mxu0 %v95
    %3350 = vmatprep.subr.mxu0 0.0
    %3351 = vmatpush2.msra.mxu0 0.0
    %3352 = vmatprep.subr.mxu0 0.0
    %3353 = vmatpush2.msra.mxu0 0.0
    %3354 = vmatprep.subr.mxu0 0.0
    %3355 = vmatpush2.msra.mxu0 0.0
    %3356 = vmatprep.subr.mxu0 0.0
    %3357 = vmatpush2.msra.mxu0 0.0
    %3358 = vmatprep.subr.mxu0 0.0
    %3359 = vmatpush2.msra.mxu0 0.0
    %3360 = vmatprep.subr.mxu0 0.0
    %3361 = vmatpush2.msra.mxu0 0.0
    %3362 = vmatprep.subr.mxu0 0.0
    %3363 = vmatpush2.msra.mxu0 0.0
    %3364 = vmatprep.subr.mxu0 0.0
    %3365 = vmatpush2.msra.mxu0 0.0
    %3366 = vmatprep.subr.mxu0 0.0
    %3367 = vmatpush2.msra.mxu0 0.0
    %3368 = vmatprep.subr.mxu0 0.0
    %3369 = vmatpush2.msra.mxu0 0.0
    %3370 = vmatprep.subr.mxu0 0.0
    %3371 = vmatpush2.msra.mxu0 0.0
    %3372 = vmatprep.subr.mxu0 0.0
    %3373 = vmatpush2.msra.mxu0 0.0
    %3374 = vmatprep.subr.mxu0 0.0
    %3375 = vmatpush2.msra.mxu0 0.0
    %3376 = vmatprep.subr.mxu0 0.0
    %3377 = vmatpush2.msra.mxu0 0.0
    %3378 = vmatprep.subr.mxu0 0.0
    %3379 = vmatpush2.msra.mxu0 0.0
    %3380 = vmatprep.subr.mxu0 0.0
    %3381 = vmatpush2.msra.mxu0 0.0
    %3382 = vmatprep.mubr.f32.mxu0 0.0
    %3383 = vmatmul.mubr.f32.gmra.mxu0 %v3316
    %v3384 = vpop.f32.mrf.mxu0
    %v3385 = vadd.f32 0.0, %v3384
    %v3386 = vpop.f32.mrf.mxu0
    %3387 = vdwg.mxu0
    %v3389 = vsel %vm1880, %v2874, 0
    %3391 = vmatprep.subr.mxu0 0.0
    %3392 = vmatpush1.msra.mxu0 0.0
    %3393 = vmatprep.subr.mxu0 0.0
    %3394 = vmatpush1.msra.mxu0 0.0
    %3395 = vmatprep.subr.mxu0 0.0
    %3396 = vmatpush1.msra.mxu0 0.0
    %3397 = vmatprep.subr.mxu0 0.0
    %3398 = vmatpush1.msra.mxu0 0.0
    %3399 = vmatprep.subr.mxu0 0.0
    %3400 = vmatpush1.msra.mxu0 0.0
    %3401 = vmatprep.subr.mxu0 0.0
    %3402 = vmatpush1.msra.mxu0 0.0
    %3403 = vmatprep.subr.mxu0 0.0
    %3404 = vmatpush1.msra.mxu0 0.0
    %3405 = vmatprep.subr.mxu0 0.0
    %3406 = vmatpush1.msra.mxu0 0.0
    %3407 = vmatprep.subr.mxu0 0.0
    %3408 = vmatpush1.msra.mxu0 0.0
    %3409 = vmatprep.subr.mxu0 0.0
    %3410 = vmatpush1.msra.mxu0 0.0
    %3411 = vmatprep.subr.mxu0 0.0
    %3412 = vmatpush1.msra.mxu0 0.0
    %3413 = vmatprep.subr.mxu0 0.0
    %3414 = vmatpush1.msra.mxu0 0.0
    %3415 = vmatprep.subr.mxu0 0.0
    %3416 = vmatpush1.msra.mxu0 0.0
    %3417 = vmatprep.subr.mxu0 0.0
    %3418 = vmatpush1.msra.mxu0 0.0
    %3419 = vmatprep.subr.mxu0 0.0
    %3420 = vmatpush1.msra.mxu0 0.0
    %3421 = vmatprep.subr.mxu0 0.0
    %3422 = vmatpush1.msra.mxu0 %v96
    %3423 = vmatprep.subr.mxu0 0.0
    %3424 = vmatpush2.msra.mxu0 0.0
    %3425 = vmatprep.subr.mxu0 0.0
    %3426 = vmatpush2.msra.mxu0 0.0
    %3427 = vmatprep.subr.mxu0 0.0
    %3428 = vmatpush2.msra.mxu0 0.0
    %3429 = vmatprep.subr.mxu0 0.0
    %3430 = vmatpush2.msra.mxu0 0.0
    %3431 = vmatprep.subr.mxu0 0.0
    %3432 = vmatpush2.msra.mxu0 0.0
    %3433 = vmatprep.subr.mxu0 0.0
    %3434 = vmatpush2.msra.mxu0 0.0
    %3435 = vmatprep.subr.mxu0 0.0
    %3436 = vmatpush2.msra.mxu0 0.0
    %3437 = vmatprep.subr.mxu0 0.0
    %3438 = vmatpush2.msra.mxu0 0.0
    %3439 = vmatprep.subr.mxu0 0.0
    %3440 = vmatpush2.msra.mxu0 0.0
    %3441 = vmatprep.subr.mxu0 0.0
    %3442 = vmatpush2.msra.mxu0 0.0
    %3443 = vmatprep.subr.mxu0 0.0
    %3444 = vmatpush2.msra.mxu0 0.0
    %3445 = vmatprep.subr.mxu0 0.0
    %3446 = vmatpush2.msra.mxu0 0.0
    %3447 = vmatprep.subr.mxu0 0.0
    %3448 = vmatpush2.msra.mxu0 0.0
    %3449 = vmatprep.subr.mxu0 0.0
    %3450 = vmatpush2.msra.mxu0 0.0
    %3451 = vmatprep.subr.mxu0 0.0
    %3452 = vmatpush2.msra.mxu0 0.0
    %3453 = vmatprep.subr.mxu0 0.0
    %3454 = vmatpush2.msra.mxu0 0.0
    %3455 = vmatprep.mubr.f32.mxu0 0.0
    %3456 = vmatmul.mubr.f32.gmra.mxu0 %v3389
    %v3457 = vpop.f32.mrf.mxu0
    %v3458 = vadd.f32 0.0, %v3457
    %v3459 = vpop.f32.mrf.mxu0
    %3460 = vdwg.mxu0
    %v3462 = vsel %vm1880, %v2947, 0
    %3464 = vmatprep.subr.mxu0 0.0
    %3465 = vmatpush1.msra.mxu0 0.0
    %3466 = vmatprep.subr.mxu0 0.0
    %3467 = vmatpush1.msra.mxu0 0.0
    %3468 = vmatprep.subr.mxu0 0.0
    %3469 = vmatpush1.msra.mxu0 0.0
    %3470 = vmatprep.subr.mxu0 0.0
    %3471 = vmatpush1.msra.mxu0 0.0
    %3472 = vmatprep.subr.mxu0 0.0
    %3473 = vmatpush1.msra.mxu0 0.0
    %3474 = vmatprep.subr.mxu0 0.0
    %3475 = vmatpush1.msra.mxu0 0.0
    %3476 = vmatprep.subr.mxu0 0.0
    %3477 = vmatpush1.msra.mxu0 0.0
    %3478 = vmatprep.subr.mxu0 0.0
    %3479 = vmatpush1.msra.mxu0 0.0
    %3480 = vmatprep.subr.mxu0 0.0
    %3481 = vmatpush1.msra.mxu0 0.0
    %3482 = vmatprep.subr.mxu0 0.0
    %3483 = vmatpush1.msra.mxu0 0.0
    %3484 = vmatprep.subr.mxu0 0.0
    %3485 = vmatpush1.msra.mxu0 0.0
    %3486 = vmatprep.subr.mxu0 0.0
    %3487 = vmatpush1.msra.mxu0 0.0
    %3488 = vmatprep.subr.mxu0 0.0
    %3489 = vmatpush1.msra.mxu0 0.0
    %3490 = vmatprep.subr.mxu0 0.0
    %3491 = vmatpush1.msra.mxu0 0.0
    %3492 = vmatprep.subr.mxu0 0.0
    %3493 = vmatpush1.msra.mxu0 0.0
    %3494 = vmatprep.subr.mxu0 0.0
    %3495 = vmatpush1.msra.mxu0 %v93
    %3496 = vmatprep.subr.mxu0 0.0
    %3497 = vmatpush2.msra.mxu0 0.0
    %3498 = vmatprep.subr.mxu0 0.0
    %3499 = vmatpush2.msra.mxu0 0.0
    %3500 = vmatprep.subr.mxu0 0.0
    %3501 = vmatpush2.msra.mxu0 0.0
    %3502 = vmatprep.subr.mxu0 0.0
    %3503 = vmatpush2.msra.mxu0 0.0
    %3504 = vmatprep.subr.mxu0 0.0
    %3505 = vmatpush2.msra.mxu0 0.0
    %3506 = vmatprep.subr.mxu0 0.0
    %3507 = vmatpush2.msra.mxu0 0.0
    %3508 = vmatprep.subr.mxu0 0.0
    %3509 = vmatpush2.msra.mxu0 0.0
    %3510 = vmatprep.subr.mxu0 0.0
    %3511 = vmatpush2.msra.mxu0 0.0
    %3512 = vmatprep.subr.mxu0 0.0
    %3513 = vmatpush2.msra.mxu0 0.0
    %3514 = vmatprep.subr.mxu0 0.0
    %3515 = vmatpush2.msra.mxu0 0.0
    %3516 = vmatprep.subr.mxu0 0.0
    %3517 = vmatpush2.msra.mxu0 0.0
    %3518 = vmatprep.subr.mxu0 0.0
    %3519 = vmatpush2.msra.mxu0 0.0
    %3520 = vmatprep.subr.mxu0 0.0
    %3521 = vmatpush2.msra.mxu0 0.0
    %3522 = vmatprep.subr.mxu0 0.0
    %3523 = vmatpush2.msra.mxu0 0.0
    %3524 = vmatprep.subr.mxu0 0.0
    %3525 = vmatpush2.msra.mxu0 0.0
    %3526 = vmatprep.subr.mxu0 0.0
    %3527 = vmatpush2.msra.mxu0 0.0
    %3528 = vmatprep.mubr.f32.mxu0 0.0
    %3529 = vmatmul.mubr.f32.gmra.mxu0 %v3462
    %v3530 = vpop.f32.mrf.mxu0
    %v3531 = vadd.f32 0.0, %v3530
    %v3532 = vpop.f32.mrf.mxu0
    %3533 = vdwg.mxu0
    %v3535 = vsel %vm1880, %v3020, 0
    %3537 = vmatprep.subr.mxu0 0.0
    %3538 = vmatpush1.msra.mxu0 0.0
    %3539 = vmatprep.subr.mxu0 0.0
    %3540 = vmatpush1.msra.mxu0 0.0
    %3541 = vmatprep.subr.mxu0 0.0
    %3542 = vmatpush1.msra.mxu0 0.0
    %3543 = vmatprep.subr.mxu0 0.0
    %3544 = vmatpush1.msra.mxu0 0.0
    %3545 = vmatprep.subr.mxu0 0.0
    %3546 = vmatpush1.msra.mxu0 0.0
    %3547 = vmatprep.subr.mxu0 0.0
    %3548 = vmatpush1.msra.mxu0 0.0
    %3549 = vmatprep.subr.mxu0 0.0
    %3550 = vmatpush1.msra.mxu0 0.0
    %3551 = vmatprep.subr.mxu0 0.0
    %3552 = vmatpush1.msra.mxu0 0.0
    %3553 = vmatprep.subr.mxu0 0.0
    %3554 = vmatpush1.msra.mxu0 0.0
    %3555 = vmatprep.subr.mxu0 0.0
    %3556 = vmatpush1.msra.mxu0 0.0
    %3557 = vmatprep.subr.mxu0 0.0
    %3558 = vmatpush1.msra.mxu0 0.0
    %3559 = vmatprep.subr.mxu0 0.0
    %3560 = vmatpush1.msra.mxu0 0.0
    %3561 = vmatprep.subr.mxu0 0.0
    %3562 = vmatpush1.msra.mxu0 0.0
    %3563 = vmatprep.subr.mxu0 0.0
    %3564 = vmatpush1.msra.mxu0 0.0
    %3565 = vmatprep.subr.mxu0 0.0
    %3566 = vmatpush1.msra.mxu0 0.0
    %3567 = vmatprep.subr.mxu0 0.0
    %3568 = vmatpush1.msra.mxu0 %v94
    %3569 = vmatprep.subr.mxu0 0.0
    %3570 = vmatpush2.msra.mxu0 0.0
    %3571 = vmatprep.subr.mxu0 0.0
    %3572 = vmatpush2.msra.mxu0 0.0
    %3573 = vmatprep.subr.mxu0 0.0
    %3574 = vmatpush2.msra.mxu0 0.0
    %3575 = vmatprep.subr.mxu0 0.0
    %3576 = vmatpush2.msra.mxu0 0.0
    %3577 = vmatprep.subr.mxu0 0.0
    %3578 = vmatpush2.msra.mxu0 0.0
    %3579 = vmatprep.subr.mxu0 0.0
    %3580 = vmatpush2.msra.mxu0 0.0
    %3581 = vmatprep.subr.mxu0 0.0
    %3582 = vmatpush2.msra.mxu0 0.0
    %3583 = vmatprep.subr.mxu0 0.0
    %3584 = vmatpush2.msra.mxu0 0.0
    %3585 = vmatprep.subr.mxu0 0.0
    %3586 = vmatpush2.msra.mxu0 0.0
    %3587 = vmatprep.subr.mxu0 0.0
    %3588 = vmatpush2.msra.mxu0 0.0
    %3589 = vmatprep.subr.mxu0 0.0
    %3590 = vmatpush2.msra.mxu0 0.0
    %3591 = vmatprep.subr.mxu0 0.0
    %3592 = vmatpush2.msra.mxu0 0.0
    %3593 = vmatprep.subr.mxu0 0.0
    %3594 = vmatpush2.msra.mxu0 0.0
    %3595 = vmatprep.subr.mxu0 0.0
    %3596 = vmatpush2.msra.mxu0 0.0
    %3597 = vmatprep.subr.mxu0 0.0
    %3598 = vmatpush2.msra.mxu0 0.0
    %3599 = vmatprep.subr.mxu0 0.0
    %3600 = vmatpush2.msra.mxu0 0.0
    %3601 = vmatprep.mubr.f32.mxu0 0.0
    %3602 = vmatmul.mubr.f32.gmra.mxu0 %v3535
    %v3603 = vpop.f32.mrf.mxu0
    %v3604 = vadd.f32 0.0, %v3603
    %v3605 = vpop.f32.mrf.mxu0
    %3606 = vdwg.mxu0
    %v3608 = vsel %vm1880, %v3093, 0
    %3610 = vmatprep.subr.mxu0 0.0
    %3611 = vmatpush1.msra.mxu0 0.0
    %3612 = vmatprep.subr.mxu0 0.0
    %3613 = vmatpush1.msra.mxu0 0.0
    %3614 = vmatprep.subr.mxu0 0.0
    %3615 = vmatpush1.msra.mxu0 0.0
    %3616 = vmatprep.subr.mxu0 0.0
    %3617 = vmatpush1.msra.mxu0 0.0
    %3618 = vmatprep.subr.mxu0 0.0
    %3619 = vmatpush1.msra.mxu0 0.0
    %3620 = vmatprep.subr.mxu0 0.0
    %3621 = vmatpush1.msra.mxu0 0.0
    %3622 = vmatprep.subr.mxu0 0.0
    %3623 = vmatpush1.msra.mxu0 0.0
    %3624 = vmatprep.subr.mxu0 0.0
    %3625 = vmatpush1.msra.mxu0 0.0
    %3626 = vmatprep.subr.mxu0 0.0
    %3627 = vmatpush1.msra.mxu0 0.0
    %3628 = vmatprep.subr.mxu0 0.0
    %3629 = vmatpush1.msra.mxu0 0.0
    %3630 = vmatprep.subr.mxu0 0.0
    %3631 = vmatpush1.msra.mxu0 0.0
    %3632 = vmatprep.subr.mxu0 0.0
    %3633 = vmatpush1.msra.mxu0 0.0
    %3634 = vmatprep.subr.mxu0 0.0
    %3635 = vmatpush1.msra.mxu0 0.0
    %3636 = vmatprep.subr.mxu0 0.0
    %3637 = vmatpush1.msra.mxu0 0.0
    %3638 = vmatprep.subr.mxu0 0.0
    %3639 = vmatpush1.msra.mxu0 0.0
    %3640 = vmatprep.subr.mxu0 0.0
    %3641 = vmatpush1.msra.mxu0 %v95
    %3642 = vmatprep.subr.mxu0 0.0
    %3643 = vmatpush2.msra.mxu0 0.0
    %3644 = vmatprep.subr.mxu0 0.0
    %3645 = vmatpush2.msra.mxu0 0.0
    %3646 = vmatprep.subr.mxu0 0.0
    %3647 = vmatpush2.msra.mxu0 0.0
    %3648 = vmatprep.subr.mxu0 0.0
    %3649 = vmatpush2.msra.mxu0 0.0
    %3650 = vmatprep.subr.mxu0 0.0
    %3651 = vmatpush2.msra.mxu0 0.0
    %3652 = vmatprep.subr.mxu0 0.0
    %3653 = vmatpush2.msra.mxu0 0.0
    %3654 = vmatprep.subr.mxu0 0.0
    %3655 = vmatpush2.msra.mxu0 0.0
    %3656 = vmatprep.subr.mxu0 0.0
    %3657 = vmatpush2.msra.mxu0 0.0
    %3658 = vmatprep.subr.mxu0 0.0
    %3659 = vmatpush2.msra.mxu0 0.0
    %3660 = vmatprep.subr.mxu0 0.0
    %3661 = vmatpush2.msra.mxu0 0.0
    %3662 = vmatprep.subr.mxu0 0.0
    %3663 = vmatpush2.msra.mxu0 0.0
    %3664 = vmatprep.subr.mxu0 0.0
    %3665 = vmatpush2.msra.mxu0 0.0
    %3666 = vmatprep.subr.mxu0 0.0
    %3667 = vmatpush2.msra.mxu0 0.0
    %3668 = vmatprep.subr.mxu0 0.0
    %3669 = vmatpush2.msra.mxu0 0.0
    %3670 = vmatprep.subr.mxu0 0.0
    %3671 = vmatpush2.msra.mxu0 0.0
    %3672 = vmatprep.subr.mxu0 0.0
    %3673 = vmatpush2.msra.mxu0 0.0
    %3674 = vmatprep.mubr.f32.mxu0 0.0
    %3675 = vmatmul.mubr.f32.gmra.mxu0 %v3608
    %v3676 = vpop.f32.mrf.mxu0
    %v3677 = vadd.f32 0.0, %v3676
    %v3678 = vpop.f32.mrf.mxu0
    %3679 = vdwg.mxu0
    %v3681 = vsel %vm1880, %v3166, 0
    %3683 = vmatprep.subr.mxu0 0.0
    %3684 = vmatpush1.msra.mxu0 0.0
    %3685 = vmatprep.subr.mxu0 0.0
    %3686 = vmatpush1.msra.mxu0 0.0
    %3687 = vmatprep.subr.mxu0 0.0
    %3688 = vmatpush1.msra.mxu0 0.0
    %3689 = vmatprep.subr.mxu0 0.0
    %3690 = vmatpush1.msra.mxu0 0.0
    %3691 = vmatprep.subr.mxu0 0.0
    %3692 = vmatpush1.msra.mxu0 0.0
    %3693 = vmatprep.subr.mxu0 0.0
    %3694 = vmatpush1.msra.mxu0 0.0
    %3695 = vmatprep.subr.mxu0 0.0
    %3696 = vmatpush1.msra.mxu0 0.0
    %3697 = vmatprep.subr.mxu0 0.0
    %3698 = vmatpush1.msra.mxu0 0.0
    %3699 = vmatprep.subr.mxu0 0.0
    %3700 = vmatpush1.msra.mxu0 0.0
    %3701 = vmatprep.subr.mxu0 0.0
    %3702 = vmatpush1.msra.mxu0 0.0
    %3703 = vmatprep.subr.mxu0 0.0
    %3704 = vmatpush1.msra.mxu0 0.0
    %3705 = vmatprep.subr.mxu0 0.0
    %3706 = vmatpush1.msra.mxu0 0.0
    %3707 = vmatprep.subr.mxu0 0.0
    %3708 = vmatpush1.msra.mxu0 0.0
    %3709 = vmatprep.subr.mxu0 0.0
    %3710 = vmatpush1.msra.mxu0 0.0
    %3711 = vmatprep.subr.mxu0 0.0
    %3712 = vmatpush1.msra.mxu0 0.0
    %3713 = vmatprep.subr.mxu0 0.0
    %3714 = vmatpush1.msra.mxu0 %v96
    %3715 = vmatprep.subr.mxu0 0.0
    %3716 = vmatpush2.msra.mxu0 0.0
    %3717 = vmatprep.subr.mxu0 0.0
    %3718 = vmatpush2.msra.mxu0 0.0
    %3719 = vmatprep.subr.mxu0 0.0
    %3720 = vmatpush2.msra.mxu0 0.0
    %3721 = vmatprep.subr.mxu0 0.0
    %3722 = vmatpush2.msra.mxu0 0.0
    %3723 = vmatprep.subr.mxu0 0.0
    %3724 = vmatpush2.msra.mxu0 0.0
    %3725 = vmatprep.subr.mxu0 0.0
    %3726 = vmatpush2.msra.mxu0 0.0
    %3727 = vmatprep.subr.mxu0 0.0
    %3728 = vmatpush2.msra.mxu0 0.0
    %3729 = vmatprep.subr.mxu0 0.0
    %3730 = vmatpush2.msra.mxu0 0.0
    %3731 = vmatprep.subr.mxu0 0.0
    %3732 = vmatpush2.msra.mxu0 0.0
    %3733 = vmatprep.subr.mxu0 0.0
    %3734 = vmatpush2.msra.mxu0 0.0
    %3735 = vmatprep.subr.mxu0 0.0
    %3736 = vmatpush2.msra.mxu0 0.0
    %3737 = vmatprep.subr.mxu0 0.0
    %3738 = vmatpush2.msra.mxu0 0.0
    %3739 = vmatprep.subr.mxu0 0.0
    %3740 = vmatpush2.msra.mxu0 0.0
    %3741 = vmatprep.subr.mxu0 0.0
    %3742 = vmatpush2.msra.mxu0 0.0
    %3743 = vmatprep.subr.mxu0 0.0
    %3744 = vmatpush2.msra.mxu0 0.0
    %3745 = vmatprep.subr.mxu0 0.0
    %3746 = vmatpush2.msra.mxu0 0.0
    %3747 = vmatprep.mubr.f32.mxu0 0.0
    %3748 = vmatmul.mubr.f32.gmra.mxu0 %v3681
    %v3749 = vpop.f32.mrf.mxu0
    %v3750 = vadd.f32 0.0, %v3749
    %v3751 = vpop.f32.mrf.mxu0
    %3752 = vdwg.mxu0
    %v3753 = vsel %vm133, %v3239, 0.0
    %v3754 = vsel %vm133, %v3312, 0.0
    %v3755 = vadd.f32 %v3753, %v3754
    %v3756 = vsel %vm133, %v3385, 0.0
    %v3757 = vadd.f32 %v3755, %v3756
    %v3758 = vsel %vm133, %v3458, 0.0
    %v3759 = vadd.f32 %v3757, %v3758
    %v3760 = vsel %vm133, %v3531, 0.0
    %v3761 = vsel %vm133, %v3604, 0.0
    %v3762 = vadd.f32 %v3760, %v3761
    %v3763 = vsel %vm133, %v3677, 0.0
    %v3764 = vadd.f32 %v3762, %v3763
    %v3765 = vsel %vm133, %v3750, 0.0
    %v3766 = vadd.f32 %v3764, %v3765
    %v3767 = vld [vmem:[%s10] sm:$0x1]
    %v3769 = vlaneseq
    %v3770 = vshrl.u32 %v3769, 7
    %v3771 = vsub.s32 0, %v3770
    %v3772 = vrot.slane %v3767, %v3771
    %v3774 = vadd.f32 %v3759, %v3772
    %v3775 = vadd.f32 %v3766, %v3772
    %3776 = vst.msk [vmem:[#allocation2] sm:$0xff] %vm133, %v3774
    %3777 = vst.msk [vmem:[#allocation2 + $0x8] sm:$0xff] %vm133, %v3775
    // Predicated region
    $region46: #{tpu_custom_call.1} parent=1 // pred_check
      _
    $region47: #{tpu_custom_call.1} parent=1 // pred_check_branch
      %3779 = sbr.rel (0) target = $region49
    $region48: #{tpu_custom_call.1} parent=1 // pred_region
      %s3781 = ssub.s32 256, 256
      %3782 = vsyncadd [#allocation3], %s3781
      %s3783 = sshll.u32 [#allocation2], 4
      %s3784 = int_to_ptr.vmem [resolvable:$true] %s3783
      %3789 = dma.vmem_to_hbm [thread:$0]  %s3784, 256, %s11, [#allocation3], 128, 128, 8
    $region49: #{tpu_custom_call.1} parent=1 // pred_fallthru
      _
    // Predicated region
    $region50: #{tpu_custom_call.1} parent=1 // pred_check
      _
    $region51: #{tpu_custom_call.1} parent=1 // pred_check_branch
      %3791 = sbr.rel (0) target = $region53
    $region52: #{tpu_custom_call.1} parent=1 // pred_region
      %3792 = dma.done [#allocation3], 256
    $region53: #{tpu_custom_call.1} parent=1 // pred_fallthru
      _
    %3793 = vsyncpa [#allocation3], 1

</llo_original>
